<compile_context>
chip_gen: v7x
topology: tpu7x:2x2x1
jax: 0.10.0
libtpu: 0.0.40
codegen_flags: <defaults>
</compile_context>

<pallas_src>
import functools
import math

import jax
import jax.numpy as jnp
from jax import lax
from jax.experimental import pallas as pl
from jax.experimental.pallas import tpu as pltpu

_PAD = 8  # sublane-aligned rows reserved for the causal-conv left context


def _silu(x):
    return x * jax.nn.sigmoid(x)


def _mm(a, w_ref):
    """a @ W with a pre-transposed (K, N) weight; bf16 operands, f32 accumulate."""
    w = w_ref[...]
    return jnp.dot(a.astype(w.dtype), w, preferred_element_type=jnp.float32)


def mamba_block_kernel(x_ref, in_w_ref, conv_w_ref, conv_b_ref, xproj_w_ref,
                       dt_w_ref, dt_b_ref, A_ref, D_ref, out_w_ref,
                       o_ref,
                       h_scr, pad_scr, dA_scr, dBu_scr, cbc_scr, y_scr,
                       *, Tc, d_inner, d_state, d_conv, dt_rank, s_blk,
                       unroll):
    f32 = jnp.float32
    tc = pl.program_id(1)

    # ---- reset carried state (SSM h, conv left context) at the first chunk --
    @pl.when(tc == 0)
    def _():
        h_scr[...] = jnp.zeros_like(h_scr)
        pad_scr[0:_PAD, :] = jnp.zeros((_PAD, d_inner), f32)

    x = x_ref[0]                                            # (Tc, d_model)

    # ---- fused in_proj (bias=False): [conv branch | gate] in one bf16 matmul
    xz = _mm(x, in_w_ref)                                   # (Tc, 2*d_inner) f32
    xa = xz[:, :d_inner]
    z = xz[:, d_inner:]

    # ---- causal depthwise conv1d via shifted slices of a padded scratch -----
    base = _PAD - (d_conv - 1)
    pad_scr[_PAD:_PAD + Tc, :] = xa                         # sublane-aligned store
    u = conv_w_ref[0:1, :] * pad_scr[base:base + Tc, :]
    for k in range(1, d_conv):
        u = u + conv_w_ref[k:k + 1, :] * pad_scr[base + k:base + k + Tc, :]
    u = _silu(u + conv_b_ref[...])                          # (Tc, d_inner) f32
    # carry the last (d_conv-1) rows of xa into the next chunk's left context
    pad_scr[base:_PAD, :] = pad_scr[base + Tc:_PAD + Tc, :]

    # ---- fused x_proj (bias=False): [dt | B | C] in one bf16 matmul ----------
    dbc = _mm(u, xproj_w_ref)                               # (Tc, R+2S) f32
    dt_in = dbc[:, :dt_rank]
    Brow = dbc[:, dt_rank:dt_rank + d_state]                # (Tc, S)
    Crow = dbc[:, dt_rank + d_state:]                       # (Tc, S)

    # ---- dt_proj (+ f32 bias) and softplus -----------------------------------
    dt = jax.nn.softplus(_mm(dt_in, dt_w_ref) + dt_b_ref[...])   # (Tc, d_inner)
    du = dt * u

    y_scr[...] = jnp.zeros_like(y_scr)

    # ---- state-blocked selective scan ----------------------------------------
    for s0 in range(0, d_state, s_blk):
        # Hoist exp(dt*A), dt*u*B and broadcast(C) for this state block out of
        # the serial scan (vectorized over the chunk).
        # TODO(synk): dense (Tc, s_blk, d_inner) broadcast stores here.
        for si in range(s_blk):
            s = s0 + si
            dA_scr[:, si, :] = jnp.exp(dt * A_ref[s:s + 1, :])
            dBu_scr[:, si, :] = Brow[:, s:s + 1] * du
            cbc_scr[:, si, :] = jnp.broadcast_to(Crow[:, s:s + 1], (Tc, d_inner))

        # Serial recurrence: h carried as a register (fori carry); y fused into
        # the scan (no per-step h writeback, no h history in VMEM).
        def scan_step(t, h):
            h = dA_scr[t] * h + dBu_scr[t]                  # (s_blk, d_inner)
            y_scr[t] = y_scr[t] + jnp.sum(cbc_scr[t] * h, axis=0, keepdims=True)
            return h

        h_new = lax.fori_loop(0, Tc, scan_step, h_scr[s0:s0 + s_blk, :],
                              unroll=unroll)
        h_scr[s0:s0 + s_blk, :] = h_new                     # carry to next chunk

    # ---- skip term, gate, out_proj (bias=False) ------------------------------
    y = (y_scr[:, 0, :] + D_ref[...] * u) * _silu(z)
    o_ref[0] = _mm(y, out_w_ref).astype(o_ref.dtype)


def _tpu_defaults():
    """Generation-aware (seq_chunk, vmem_limit_bytes)."""
    kind = ""
    try:
        kind = jax.devices()[0].device_kind.lower()
    except Exception:
        pass
    if "v7" in kind:
        return 128, 48 * 1024 * 1024     # 64 MiB physical per TC: keep headroom
    if "v6" in kind:
        return 256, 100 * 1024 * 1024    # 128 MiB VMEM, 256-wide MXU
    return 128, 96 * 1024 * 1024         # v5e/v5p/v4: raise the 16 MiB default


def mamba_block_forward(x, p, *, seq_chunk=None, vmem_limit_bytes=None):
    B, L, E = x.shape
    d_conv, d_inner = p["conv_w"].shape
    d_state = p["A"].shape[0]
    dt_rank = p["dt_w"].shape[0]
    assert 2 <= d_conv <= _PAD + 1, "conv left context must fit the aligned pad"

    dflt_tc, dflt_vmem = _tpu_defaults()
    seq_chunk = seq_chunk or dflt_tc
    vmem_limit_bytes = vmem_limit_bytes or dflt_vmem

    # Host-side padding of L to a multiple of the chunk (never a full-length
    # fallback chunk -> scratch VMEM stays bounded).
    if L <= seq_chunk:
        Tc, NT, L_pad = L, 1, L
    else:
        Tc = max(8, (seq_chunk // 8) * 8)
        NT = pl.cdiv(L, Tc)
        L_pad = NT * Tc
    x_in = x if L_pad == L else jnp.pad(x, ((0, 0), (0, L_pad - L), (0, 0)))

    s_blk = 8 if d_state % 8 == 0 else d_state

    kernel = functools.partial(
        mamba_block_kernel, Tc=Tc, d_inner=d_inner, d_state=d_state,
        d_conv=d_conv, dt_rank=dt_rank, s_blk=s_blk, unroll=min(8, Tc))

    weight_names = ["in_w", "conv_w", "conv_b", "x_proj_w", "dt_w", "dt_b",
                    "A", "D", "out_w"]
    weights = [p[n] for n in weight_names]

    in_specs = [pl.BlockSpec((1, Tc, E), lambda b, t: (b, t, 0))]
    for w in weights:
        # Constant index_map -> single-buffered, whole weight resident in VMEM.
        in_specs.append(pl.BlockSpec(w.shape, lambda b, t, n=w.ndim: (0,) * n,
                                     pipeline_mode=pl.Buffered(1)))

    scratch_shapes = [
        pltpu.VMEM((d_state, d_inner), jnp.float32),        # h carry
        pltpu.VMEM((Tc + _PAD, d_inner), jnp.float32),      # conv pad (aligned)
        pltpu.VMEM((Tc, s_blk, d_inner), jnp.float32),      # exp(dt*A)
        pltpu.VMEM((Tc, s_blk, d_inner), jnp.float32),      # dt*u*B
        pltpu.VMEM((Tc, s_blk, d_inner), jnp.float32),      # broadcast C
        pltpu.VMEM((Tc, 1, d_inner), jnp.float32),          # y accumulator
    ]

    out = pl.pallas_call(
        kernel,
        out_shape=jax.ShapeDtypeStruct((B, L_pad, E), x.dtype),
        grid=(B, NT),
        in_specs=in_specs,
        out_specs=pl.BlockSpec((1, Tc, E), lambda b, t: (b, t, 0)),
        scratch_shapes=scratch_shapes,
        compiler_params=pltpu.CompilerParams(
            dimension_semantics=("parallel", "arbitrary"),
            vmem_limit_bytes=vmem_limit_bytes),
    )(x_in, *weights)
    return out if L_pad == L else out[:, :L, :]


def mamba_blocks_forward(x, params_list, *, seq_chunk=None):
    # nn.Sequential of Mamba blocks -> loop of per-block kernels.
    # TODO(synk): fuse the layer loop into one pallas_call (stacked weights +
    # layer grid axis) to keep activations resident and skip HBM round trips.
    for p in params_list:
        x = mamba_block_forward(x, p, seq_chunk=seq_chunk)
    return x


# ----------------------- deterministic parameter init ------------------------
def init_mamba_params(key, d_model, d_state, d_conv, expand):
    d_inner = int(expand * d_model)
    dt_rank = math.ceil(d_model / 16)
    ks = jax.random.split(key, 7)
    bf16 = jnp.bfloat16

    def uni(k, shape, bound):
        return jax.random.uniform(k, shape, jnp.float32, -bound, bound)

    in_w = uni(ks[0], (2 * d_inner, d_model), 1.0 / math.sqrt(d_model))
    conv_w = uni(ks[1], (d_inner, d_conv), 1.0 / math.sqrt(d_conv))
    conv_b = uni(ks[2], (d_inner,), 1.0 / math.sqrt(d_conv))
    x_proj_w = uni(ks[3], (dt_rank + 2 * d_state, d_inner), 1.0 / math.sqrt(d_inner))
    dt_w = uni(ks[4], (d_inner, dt_rank), dt_rank ** -0.5)

    dt_min, dt_max = 1e-3, 1e-1
    rnd = jax.random.uniform(ks[5], (d_inner,), jnp.float32)
    dt = jnp.exp(rnd * (math.log(dt_max) - math.log(dt_min)) + math.log(dt_min))
    dt = jnp.maximum(dt, 1e-4)
    dt_b = dt + jnp.log(-jnp.expm1(-dt))

    A_log = jnp.log(jnp.broadcast_to(
        jnp.arange(1, d_state + 1, dtype=jnp.float32), (d_inner, d_state)))
    D = jnp.ones((d_inner,), jnp.float32)
    out_w = uni(ks[6], (d_model, d_inner), 1.0 / math.sqrt(d_inner))

    # Kernel layout: matmul weights pre-transposed to (K, N) and stored bf16
    # (MXU-native, half the DMA/VMEM); dt/A/conv/D parameters kept in f32.
    return dict(
        in_w=jnp.transpose(in_w).astype(bf16),          # (d_model, 2*d_inner)
        conv_w=jnp.transpose(conv_w),                   # (d_conv, d_inner)   f32
        conv_b=conv_b[None, :],                         # (1, d_inner)        f32
        x_proj_w=jnp.transpose(x_proj_w).astype(bf16),  # (d_inner, R+2S)
        dt_w=jnp.transpose(dt_w).astype(bf16),          # (dt_rank, d_inner)
        dt_b=dt_b[None, :],                             # (1, d_inner)        f32
        A=-jnp.exp(jnp.transpose(A_log)),               # (d_state, d_inner)  f32
        D=D[None, :],                                   # (1, d_inner)        f32
        out_w=jnp.transpose(out_w).astype(bf16),        # (d_inner, d_model)
    )


# -------------------------- pure-JAX reference --------------------------------
def mamba_block_reference(x, p):
    f32 = jnp.float32

    def mm(a, w):  # emulate the kernel: bf16 operands, f32 accumulation
        return jnp.dot(a.astype(w.dtype), w, preferred_element_type=f32)

    B, L, E = x.shape
    d_conv, d_inner = p["conv_w"].shape
    d_state = p["A"].shape[0]
    dt_rank = p["dt_w"].shape[0]

    xz = mm(x, p["in_w"])
    xa, z = xz[..., :d_inner], xz[..., d_inner:]
    pad = jnp.pad(xa, ((0, 0), (d_conv - 1, 0), (0, 0)))
    u = jnp.zeros((B, L, d_inner), f32) + p["conv_b"]
    for k in range(d_conv):
        u = u + p["conv_w"][k] * pad[:, k:k + L, :]
    u = jax.nn.silu(u)

    dbc = mm(u, p["x_proj_w"])
    dt_in = dbc[..., :dt_rank]
    Bm = dbc[..., dt_rank:dt_rank + d_state]
    Cm = dbc[..., dt_rank + d_state:]
    dt = jax.nn.softplus(mm(dt_in, p["dt_w"]) + p["dt_b"])
    A = p["A"]                                            # (d_state, d_inner)

    h = jnp.zeros((B, d_state, d_inner), f32)
    ys = []
    for t in range(L):
        dt_t = dt[:, t, :]
        h = (jnp.exp(dt_t[:, None, :] * A[None]) * h
             + Bm[:, t, :][:, :, None] * (dt_t * u[:, t, :])[:, None, :])
        y_t = jnp.sum(Cm[:, t, :][:, :, None] * h, axis=1) + p["D"][0] * u[:, t, :]
        ys.append(y_t)
    y = jnp.stack(ys, axis=1)
    y = y * jax.nn.silu(z)
    return mm(y, p["out_w"])


def mamba_blocks_reference(x, params_list):
    for p in params_list:
        x = mamba_block_reference(x, p)
    return x


if __name__ == "__main__":
    num, d_model, d_state, d_conv, expand = 2, 32, 16, 4, 2
    B, T = 2, 16          # T=16 with seq_chunk=8 exercises the chunked-scan carry

    key = jax.random.PRNGKey(0)
    kx, kp = jax.random.split(key)
    x = jax.random.normal(kx, (B, T, d_model), jnp.float32)
    params_list = [init_mamba_params(k, d_model, d_state, d_conv, expand)
                   for k in jax.random.split(kp, num)]

    out = mamba_blocks_forward(x, params_list, seq_chunk=8)
    out = jax.block_until_ready(out)
    assert out.shape == (B, T, d_model)
    assert bool(jnp.all(jnp.isfinite(out)))

    ref = mamba_blocks_reference(x, params_list)
    err = float(jnp.max(jnp.abs(out - ref)))
    assert err < 1e-2, f"kernel/reference mismatch: max abs err = {err}"

    print("KERNEL_OK")
</pallas_src>

<mosaic_0001>
module attributes {stable_mosaic.version = 11 : i64} {
  func.func @mamba_block_kernel(%arg0: i32, %arg1: i32, %arg2: memref<1x8x32xf32, #tpu.memory_space<vmem>>, %arg3: memref<32x128xbf16, #tpu.memory_space<vmem>>, %arg4: memref<4x64xf32, #tpu.memory_space<vmem>>, %arg5: memref<1x64xf32, #tpu.memory_space<vmem>>, %arg6: memref<64x34xbf16, #tpu.memory_space<vmem>>, %arg7: memref<2x64xbf16, #tpu.memory_space<vmem>>, %arg8: memref<1x64xf32, #tpu.memory_space<vmem>>, %arg9: memref<16x64xf32, #tpu.memory_space<vmem>>, %arg10: memref<1x64xf32, #tpu.memory_space<vmem>>, %arg11: memref<64x32xbf16, #tpu.memory_space<vmem>>, %arg12: memref<1x8x32xf32, #tpu.memory_space<vmem>>, %arg13: memref<16x64xf32, #tpu.memory_space<vmem>>, %arg14: memref<16x64xf32, #tpu.memory_space<vmem>>, %arg15: memref<8x8x64xf32, #tpu.memory_space<vmem>>, %arg16: memref<8x8x64xf32, #tpu.memory_space<vmem>>, %arg17: memref<8x8x64xf32, #tpu.memory_space<vmem>>, %arg18: memref<8x1x64xf32, #tpu.memory_space<vmem>>) attributes {dimension_semantics = [#tpu.dimension_semantics<parallel>, #tpu.dimension_semantics<arbitrary>], iteration_bounds = array<i64: 2, 2>, scalar_prefetch = 0 : i64, scratch_operands = 6 : i64, tpu.core_type = #tpu.core_type<tc>, window_params = [{transform_indices = @transform_0, window_bounds = array<i64: 1, 8, 32>}, {pipeline_mode = #tpu.pipeline_mode<synchronous>, transform_indices = @transform_1, window_bounds = array<i64: 32, 128>}, {pipeline_mode = #tpu.pipeline_mode<synchronous>, transform_indices = @transform_2, window_bounds = array<i64: 4, 64>}, {pipeline_mode = #tpu.pipeline_mode<synchronous>, transform_indices = @transform_3, window_bounds = array<i64: 1, 64>}, {pipeline_mode = #tpu.pipeline_mode<synchronous>, transform_indices = @transform_4, window_bounds = array<i64: 64, 34>}, {pipeline_mode = #tpu.pipeline_mode<synchronous>, transform_indices = @transform_5, window_bounds = array<i64: 2, 64>}, {pipeline_mode = #tpu.pipeline_mode<synchronous>, transform_indices = @transform_6, window_bounds = array<i64: 1, 64>}, {pipeline_mode = #tpu.pipeline_mode<synchronous>, transform_indices = @transform_7, window_bounds = array<i64: 16, 64>}, {pipeline_mode = #tpu.pipeline_mode<synchronous>, transform_indices = @transform_8, window_bounds = array<i64: 1, 64>}, {pipeline_mode = #tpu.pipeline_mode<synchronous>, transform_indices = @transform_9, window_bounds = array<i64: 64, 32>}, {transform_indices = @transform_10, window_bounds = array<i64: 1, 8, 32>}]} {
    %c0_i32 = arith.constant 0 : i32
    %0 = arith.cmpi eq, %arg1, %c0_i32 : i32
    %1 = arith.extui %0 : i1 to i32
    %c0_i32_0 = arith.constant 0 : i32
    %2 = arith.cmpi ne, %1, %c0_i32_0 : i32
    scf.if %2 {
      %cst_411 = arith.constant 0.000000e+00 : f32
      %749 = vector.broadcast %cst_411 : f32 to vector<16x64xf32>
      %c0_412 = arith.constant 0 : index
      %c0_413 = arith.constant 0 : index
      %750 = vector.load %arg13[%c0_412, %c0_413] : memref<16x64xf32, #tpu.memory_space<vmem>>, vector<16x64xf32>
      tpu.vector_store %arg13[%c0_412, %c0_413], %749 {strides = array<i32>} : memref<16x64xf32, #tpu.memory_space<vmem>>, vector<16x64xf32>,
      %cst_414 = arith.constant 0.000000e+00 : f32
      %751 = vector.broadcast %cst_414 : f32 to vector<8x64xf32>
      %c0_415 = arith.constant 0 : index
      %c0_416 = arith.constant 0 : index
      %752 = vector.load %arg14[%c0_415, %c0_416] : memref<16x64xf32, #tpu.memory_space<vmem>>, vector<8x64xf32>
      tpu.vector_store %arg14[%c0_415, %c0_416], %751 {strides = array<i32>} : memref<16x64xf32, #tpu.memory_space<vmem>>, vector<8x64xf32>,
    } else {
    }
    %c0 = arith.constant 0 : index
    %c0_1 = arith.constant 0 : index
    %c0_2 = arith.constant 0 : index
    %3 = vector.load %arg2[%c0, %c0_1, %c0_2] : memref<1x8x32xf32, #tpu.memory_space<vmem>>, vector<1x8x32xf32>
    %4 = vector.shape_cast %3 : vector<1x8x32xf32> to vector<8x32xf32>
    %c0_3 = arith.constant 0 : index
    %c0_4 = arith.constant 0 : index
    %5 = vector.load %arg3[%c0_3, %c0_4] : memref<32x128xbf16, #tpu.memory_space<vmem>>, vector<32x128xbf16>
    %6 = arith.truncf %4 : vector<8x32xf32> to vector<8x32xbf16>
    %cst = arith.constant dense<0.000000e+00> : vector<8x128xf32>
    %7 = tpu.matmul %6, %5, %cst {dimension_numbers = #tpu.dot_dimension_numbers<[1], [0], [0], [1], [0, 0, 1, 1], [], []>} : vector<8x32xbf16>, vector<32x128xbf16>, vector<8x128xf32> -> vector<8x128xf32>
    %8 = vector.extract_strided_slice %7 {offsets = [0, 0], sizes = [8, 64], strides = [1, 1]} : vector<8x128xf32> to vector<8x64xf32>
    %9 = vector.extract_strided_slice %7 {offsets = [0, 64], sizes = [8, 64], strides = [1, 1]} : vector<8x128xf32> to vector<8x64xf32>
    %c8 = arith.constant 8 : index
    %c0_5 = arith.constant 0 : index
    %10 = vector.load %arg14[%c8, %c0_5] : memref<16x64xf32, #tpu.memory_space<vmem>>, vector<8x64xf32>
    tpu.vector_store %arg14[%c8, %c0_5], %8 {strides = array<i32>} : memref<16x64xf32, #tpu.memory_space<vmem>>, vector<8x64xf32>,
    %c0_6 = arith.constant 0 : index
    %c0_7 = arith.constant 0 : index
    %11 = vector.load %arg4[%c0_6, %c0_7] : memref<4x64xf32, #tpu.memory_space<vmem>>, vector<1x64xf32>
    %c5 = arith.constant 5 : index
    %c0_8 = arith.constant 0 : index
    %12 = vector.load %arg14[%c5, %c0_8] : memref<16x64xf32, #tpu.memory_space<vmem>>, vector<8x64xf32>
    %13 = vector.broadcast %11 : vector<1x64xf32> to vector<8x64xf32>
    %14 = arith.mulf %13, %12 : vector<8x64xf32>
    %c1 = arith.constant 1 : index
    %c0_9 = arith.constant 0 : index
    %15 = vector.load %arg4[%c1, %c0_9] : memref<4x64xf32, #tpu.memory_space<vmem>>, vector<1x64xf32>
    %c6 = arith.constant 6 : index
    %c0_10 = arith.constant 0 : index
    %16 = vector.load %arg14[%c6, %c0_10] : memref<16x64xf32, #tpu.memory_space<vmem>>, vector<8x64xf32>
    %17 = vector.broadcast %15 : vector<1x64xf32> to vector<8x64xf32>
    %18 = arith.mulf %17, %16 : vector<8x64xf32>
    %19 = arith.addf %14, %18 : vector<8x64xf32>
    %c2 = arith.constant 2 : index
    %c0_11 = arith.constant 0 : index
    %20 = vector.load %arg4[%c2, %c0_11] : memref<4x64xf32, #tpu.memory_space<vmem>>, vector<1x64xf32>
    %c7 = arith.constant 7 : index
    %c0_12 = arith.constant 0 : index
    %21 = vector.load %arg14[%c7, %c0_12] : memref<16x64xf32, #tpu.memory_space<vmem>>, vector<8x64xf32>
    %22 = vector.broadcast %20 : vector<1x64xf32> to vector<8x64xf32>
    %23 = arith.mulf %22, %21 : vector<8x64xf32>
    %24 = arith.addf %19, %23 : vector<8x64xf32>
    %c3 = arith.constant 3 : index
    %c0_13 = arith.constant 0 : index
    %25 = vector.load %arg4[%c3, %c0_13] : memref<4x64xf32, #tpu.memory_space<vmem>>, vector<1x64xf32>
    %c8_14 = arith.constant 8 : index
    %c0_15 = arith.constant 0 : index
    %26 = vector.load %arg14[%c8_14, %c0_15] : memref<16x64xf32, #tpu.memory_space<vmem>>, vector<8x64xf32>
    %27 = vector.broadcast %25 : vector<1x64xf32> to vector<8x64xf32>
    %28 = arith.mulf %27, %26 : vector<8x64xf32>
    %29 = arith.addf %24, %28 : vector<8x64xf32>
    %c0_16 = arith.constant 0 : index
    %c0_17 = arith.constant 0 : index
    %30 = vector.load %arg5[%c0_16, %c0_17] : memref<1x64xf32, #tpu.memory_space<vmem>>, vector<1x64xf32>
    %31 = vector.broadcast %30 : vector<1x64xf32> to vector<8x64xf32>
    %32 = arith.addf %29, %31 : vector<8x64xf32>
    %33 = arith.negf %32 : vector<8x64xf32>
    %34 = math.exp %33 : vector<8x64xf32>
    %cst_18 = arith.constant 1.000000e+00 : f32
    %35 = vector.broadcast %cst_18 : f32 to vector<8x64xf32>
    %36 = arith.addf %35, %34 : vector<8x64xf32>
    %37 = arith.divf %35, %36 : vector<8x64xf32>
    %38 = arith.mulf %32, %37 : vector<8x64xf32>
    %c13 = arith.constant 13 : index
    %c0_19 = arith.constant 0 : index
    %39 = vector.load %arg14[%c13, %c0_19] : memref<16x64xf32, #tpu.memory_space<vmem>>, vector<3x64xf32>
    %c5_20 = arith.constant 5 : index
    %c0_21 = arith.constant 0 : index
    %40 = vector.load %arg14[%c5_20, %c0_21] : memref<16x64xf32, #tpu.memory_space<vmem>>, vector<3x64xf32>
    tpu.vector_store %arg14[%c5_20, %c0_21], %39 {strides = array<i32>} : memref<16x64xf32, #tpu.memory_space<vmem>>, vector<3x64xf32>,
    %c0_22 = arith.constant 0 : index
    %c0_23 = arith.constant 0 : index
    %41 = vector.load %arg6[%c0_22, %c0_23] : memref<64x34xbf16, #tpu.memory_space<vmem>>, vector<64x34xbf16>
    %42 = arith.truncf %38 : vector<8x64xf32> to vector<8x64xbf16>
    %cst_24 = arith.constant dense<0.000000e+00> : vector<8x34xf32>
    %43 = tpu.matmul %42, %41, %cst_24 {dimension_numbers = #tpu.dot_dimension_numbers<[1], [0], [0], [1], [0, 0, 1, 1], [], []>} : vector<8x64xbf16>, vector<64x34xbf16>, vector<8x34xf32> -> vector<8x34xf32>
    %44 = vector.extract_strided_slice %43 {offsets = [0, 0], sizes = [8, 2], strides = [1, 1]} : vector<8x34xf32> to vector<8x2xf32>
    %45 = vector.extract_strided_slice %43 {offsets = [0, 2], sizes = [8, 16], strides = [1, 1]} : vector<8x34xf32> to vector<8x16xf32>
    %46 = vector.extract_strided_slice %43 {offsets = [0, 18], sizes = [8, 16], strides = [1, 1]} : vector<8x34xf32> to vector<8x16xf32>
    %c0_25 = arith.constant 0 : index
    %c0_26 = arith.constant 0 : index
    %47 = vector.load %arg7[%c0_25, %c0_26] : memref<2x64xbf16, #tpu.memory_space<vmem>>, vector<2x64xbf16>
    %48 = arith.truncf %44 : vector<8x2xf32> to vector<8x2xbf16>
    %cst_27 = arith.constant dense<0.000000e+00> : vector<8x64xf32>
    %49 = tpu.matmul %48, %47, %cst_27 {dimension_numbers = #tpu.dot_dimension_numbers<[1], [0], [0], [1], [0, 0, 1, 1], [], []>} : vector<8x2xbf16>, vector<2x64xbf16>, vector<8x64xf32> -> vector<8x64xf32>
    %c0_28 = arith.constant 0 : index
    %c0_29 = arith.constant 0 : index
    %50 = vector.load %arg8[%c0_28, %c0_29] : memref<1x64xf32, #tpu.memory_space<vmem>>, vector<1x64xf32>
    %51 = vector.broadcast %50 : vector<1x64xf32> to vector<8x64xf32>
    %52 = arith.addf %49, %51 : vector<8x64xf32>
    %cst_30 = arith.constant 0.000000e+00 : f32
    %53 = vector.broadcast %cst_30 : f32 to vector<8x64xf32>
    %54 = arith.maximumf %52, %53 : vector<8x64xf32>
    %55 = vector.broadcast %cst_30 : f32 to vector<8x64xf32>
    %56 = arith.subf %52, %55 : vector<8x64xf32>
    %57 = arith.cmpf one, %56, %56 : vector<8x64xf32>
    %58 = vector.broadcast %cst_30 : f32 to vector<8x64xf32>
    %59 = arith.addf %52, %58 : vector<8x64xf32>
    %60 = math.absf %56 : vector<8x64xf32>
    %cst_31 = arith.constant 0.000000e+00 : f32
    %61 = vector.broadcast %cst_31 : f32 to vector<8x64xf32>
    %62 = arith.subf %61, %60 : vector<8x64xf32>
    %63 = math.exp %62 : vector<8x64xf32>
    %64 = math.log1p %63 : vector<8x64xf32>
    %65 = arith.addf %54, %64 : vector<8x64xf32>
    %66 = arith.select %57, %59, %65 : vector<8x64xi1>, vector<8x64xf32>
    %67 = arith.mulf %66, %38 : vector<8x64xf32>
    %cst_32 = arith.constant 0.000000e+00 : f32
    %68 = vector.broadcast %cst_32 : f32 to vector<8x1x64xf32>
    %c0_33 = arith.constant 0 : index
    %c0_34 = arith.constant 0 : index
    %c0_35 = arith.constant 0 : index
    %69 = vector.load %arg18[%c0_33, %c0_34, %c0_35] : memref<8x1x64xf32, #tpu.memory_space<vmem>>, vector<8x1x64xf32>
    tpu.vector_store %arg18[%c0_33, %c0_34, %c0_35], %68 {strides = array<i32>} : memref<8x1x64xf32, #tpu.memory_space<vmem>>, vector<8x1x64xf32>,
    %c0_36 = arith.constant 0 : index
    %c0_37 = arith.constant 0 : index
    %70 = vector.load %arg9[%c0_36, %c0_37] : memref<16x64xf32, #tpu.memory_space<vmem>>, vector<1x64xf32>
    %71 = vector.broadcast %70 : vector<1x64xf32> to vector<8x64xf32>
    %72 = arith.mulf %66, %71 : vector<8x64xf32>
    %73 = math.exp %72 : vector<8x64xf32>
    %c0_38 = arith.constant 0 : index
    %c0_39 = arith.constant 0 : index
    %c0_40 = arith.constant 0 : index
    %74 = vector.load %arg15[%c0_38, %c0_39, %c0_40] : memref<8x8x64xf32, #tpu.memory_space<vmem>>, vector<8x1x64xf32>
    %75 = vector.shape_cast %74 : vector<8x1x64xf32> to vector<8x64xf32>
    %76 = vector.shape_cast %73 : vector<8x64xf32> to vector<8x1x64xf32>
    tpu.vector_store %arg15[%c0_38, %c0_39, %c0_40], %76 {strides = array<i32>} : memref<8x8x64xf32, #tpu.memory_space<vmem>>, vector<8x1x64xf32>,
    %77 = vector.extract_strided_slice %45 {offsets = [0, 0], sizes = [8, 1], strides = [1, 1]} : vector<8x16xf32> to vector<8x1xf32>
    %78 = vector.broadcast %77 : vector<8x1xf32> to vector<8x64xf32>
    %79 = arith.mulf %78, %67 : vector<8x64xf32>
    %c0_41 = arith.constant 0 : index
    %c0_42 = arith.constant 0 : index
    %c0_43 = arith.constant 0 : index
    %80 = vector.load %arg16[%c0_41, %c0_42, %c0_43] : memref<8x8x64xf32, #tpu.memory_space<vmem>>, vector<8x1x64xf32>
    %81 = vector.shape_cast %80 : vector<8x1x64xf32> to vector<8x64xf32>
    %82 = vector.shape_cast %79 : vector<8x64xf32> to vector<8x1x64xf32>
    tpu.vector_store %arg16[%c0_41, %c0_42, %c0_43], %82 {strides = array<i32>} : memref<8x8x64xf32, #tpu.memory_space<vmem>>, vector<8x1x64xf32>,
    %83 = vector.extract_strided_slice %46 {offsets = [0, 0], sizes = [8, 1], strides = [1, 1]} : vector<8x16xf32> to vector<8x1xf32>
    %84 = vector.shape_cast %83 : vector<8x1xf32> to vector<8x1xf32>
    %85 = vector.broadcast %84 : vector<8x1xf32> to vector<8x64xf32>
    %c0_44 = arith.constant 0 : index
    %c0_45 = arith.constant 0 : index
    %c0_46 = arith.constant 0 : index
    %86 = vector.load %arg17[%c0_44, %c0_45, %c0_46] : memref<8x8x64xf32, #tpu.memory_space<vmem>>, vector<8x1x64xf32>
    %87 = vector.shape_cast %86 : vector<8x1x64xf32> to vector<8x64xf32>
    %88 = vector.shape_cast %85 : vector<8x64xf32> to vector<8x1x64xf32>
    tpu.vector_store %arg17[%c0_44, %c0_45, %c0_46], %88 {strides = array<i32>} : memref<8x8x64xf32, #tpu.memory_space<vmem>>, vector<8x1x64xf32>,
    %c1_47 = arith.constant 1 : index
    %c0_48 = arith.constant 0 : index
    %89 = vector.load %arg9[%c1_47, %c0_48] : memref<16x64xf32, #tpu.memory_space<vmem>>, vector<1x64xf32>
    %90 = vector.broadcast %89 : vector<1x64xf32> to vector<8x64xf32>
    %91 = arith.mulf %66, %90 : vector<8x64xf32>
    %92 = math.exp %91 : vector<8x64xf32>
    %c0_49 = arith.constant 0 : index
    %c1_50 = arith.constant 1 : index
    %c0_51 = arith.constant 0 : index
    %93 = vector.load %arg15[%c0_49, %c1_50, %c0_51] : memref<8x8x64xf32, #tpu.memory_space<vmem>>, vector<8x1x64xf32>
    %94 = vector.shape_cast %93 : vector<8x1x64xf32> to vector<8x64xf32>
    %95 = vector.shape_cast %92 : vector<8x64xf32> to vector<8x1x64xf32>
    tpu.vector_store %arg15[%c0_49, %c1_50, %c0_51], %95 {strides = array<i32>} : memref<8x8x64xf32, #tpu.memory_space<vmem>>, vector<8x1x64xf32>,
    %96 = vector.extract_strided_slice %45 {offsets = [0, 1], sizes = [8, 1], strides = [1, 1]} : vector<8x16xf32> to vector<8x1xf32>
    %97 = vector.broadcast %96 : vector<8x1xf32> to vector<8x64xf32>
    %98 = arith.mulf %97, %67 : vector<8x64xf32>
    %c0_52 = arith.constant 0 : index
    %c1_53 = arith.constant 1 : index
    %c0_54 = arith.constant 0 : index
    %99 = vector.load %arg16[%c0_52, %c1_53, %c0_54] : memref<8x8x64xf32, #tpu.memory_space<vmem>>, vector<8x1x64xf32>
    %100 = vector.shape_cast %99 : vector<8x1x64xf32> to vector<8x64xf32>
    %101 = vector.shape_cast %98 : vector<8x64xf32> to vector<8x1x64xf32>
    tpu.vector_store %arg16[%c0_52, %c1_53, %c0_54], %101 {strides = array<i32>} : memref<8x8x64xf32, #tpu.memory_space<vmem>>, vector<8x1x64xf32>,
    %102 = vector.extract_strided_slice %46 {offsets = [0, 1], sizes = [8, 1], strides = [1, 1]} : vector<8x16xf32> to vector<8x1xf32>
    %103 = vector.shape_cast %102 : vector<8x1xf32> to vector<8x1xf32>
    %104 = vector.broadcast %103 : vector<8x1xf32> to vector<8x64xf32>
    %c0_55 = arith.constant 0 : index
    %c1_56 = arith.constant 1 : index
    %c0_57 = arith.constant 0 : index
    %105 = vector.load %arg17[%c0_55, %c1_56, %c0_57] : memref<8x8x64xf32, #tpu.memory_space<vmem>>, vector<8x1x64xf32>
    %106 = vector.shape_cast %105 : vector<8x1x64xf32> to vector<8x64xf32>
    %107 = vector.shape_cast %104 : vector<8x64xf32> to vector<8x1x64xf32>
    tpu.vector_store %arg17[%c0_55, %c1_56, %c0_57], %107 {strides = array<i32>} : memref<8x8x64xf32, #tpu.memory_space<vmem>>, vector<8x1x64xf32>,
    %c2_58 = arith.constant 2 : index
    %c0_59 = arith.constant 0 : index
    %108 = vector.load %arg9[%c2_58, %c0_59] : memref<16x64xf32, #tpu.memory_space<vmem>>, vector<1x64xf32>
    %109 = vector.broadcast %108 : vector<1x64xf32> to vector<8x64xf32>
    %110 = arith.mulf %66, %109 : vector<8x64xf32>
    %111 = math.exp %110 : vector<8x64xf32>
    %c0_60 = arith.constant 0 : index
    %c2_61 = arith.constant 2 : index
    %c0_62 = arith.constant 0 : index
    %112 = vector.load %arg15[%c0_60, %c2_61, %c0_62] : memref<8x8x64xf32, #tpu.memory_space<vmem>>, vector<8x1x64xf32>
    %113 = vector.shape_cast %112 : vector<8x1x64xf32> to vector<8x64xf32>
    %114 = vector.shape_cast %111 : vector<8x64xf32> to vector<8x1x64xf32>
    tpu.vector_store %arg15[%c0_60, %c2_61, %c0_62], %114 {strides = array<i32>} : memref<8x8x64xf32, #tpu.memory_space<vmem>>, vector<8x1x64xf32>,
    %115 = vector.extract_strided_slice %45 {offsets = [0, 2], sizes = [8, 1], strides = [1, 1]} : vector<8x16xf32> to vector<8x1xf32>
    %116 = vector.broadcast %115 : vector<8x1xf32> to vector<8x64xf32>
    %117 = arith.mulf %116, %67 : vector<8x64xf32>
    %c0_63 = arith.constant 0 : index
    %c2_64 = arith.constant 2 : index
    %c0_65 = arith.constant 0 : index
    %118 = vector.load %arg16[%c0_63, %c2_64, %c0_65] : memref<8x8x64xf32, #tpu.memory_space<vmem>>, vector<8x1x64xf32>
    %119 = vector.shape_cast %118 : vector<8x1x64xf32> to vector<8x64xf32>
    %120 = vector.shape_cast %117 : vector<8x64xf32> to vector<8x1x64xf32>
    tpu.vector_store %arg16[%c0_63, %c2_64, %c0_65], %120 {strides = array<i32>} : memref<8x8x64xf32, #tpu.memory_space<vmem>>, vector<8x1x64xf32>,
    %121 = vector.extract_strided_slice %46 {offsets = [0, 2], sizes = [8, 1], strides = [1, 1]} : vector<8x16xf32> to vector<8x1xf32>
    %122 = vector.shape_cast %121 : vector<8x1xf32> to vector<8x1xf32>
    %123 = vector.broadcast %122 : vector<8x1xf32> to vector<8x64xf32>
    %c0_66 = arith.constant 0 : index
    %c2_67 = arith.constant 2 : index
    %c0_68 = arith.constant 0 : index
    %124 = vector.load %arg17[%c0_66, %c2_67, %c0_68] : memref<8x8x64xf32, #tpu.memory_space<vmem>>, vector<8x1x64xf32>
    %125 = vector.shape_cast %124 : vector<8x1x64xf32> to vector<8x64xf32>
    %126 = vector.shape_cast %123 : vector<8x64xf32> to vector<8x1x64xf32>
    tpu.vector_store %arg17[%c0_66, %c2_67, %c0_68], %126 {strides = array<i32>} : memref<8x8x64xf32, #tpu.memory_space<vmem>>, vector<8x1x64xf32>,
    %c3_69 = arith.constant 3 : index
    %c0_70 = arith.constant 0 : index
    %127 = vector.load %arg9[%c3_69, %c0_70] : memref<16x64xf32, #tpu.memory_space<vmem>>, vector<1x64xf32>
    %128 = vector.broadcast %127 : vector<1x64xf32> to vector<8x64xf32>
    %129 = arith.mulf %66, %128 : vector<8x64xf32>
    %130 = math.exp %129 : vector<8x64xf32>
    %c0_71 = arith.constant 0 : index
    %c3_72 = arith.constant 3 : index
    %c0_73 = arith.constant 0 : index
    %131 = vector.load %arg15[%c0_71, %c3_72, %c0_73] : memref<8x8x64xf32, #tpu.memory_space<vmem>>, vector<8x1x64xf32>
    %132 = vector.shape_cast %131 : vector<8x1x64xf32> to vector<8x64xf32>
    %133 = vector.shape_cast %130 : vector<8x64xf32> to vector<8x1x64xf32>
    tpu.vector_store %arg15[%c0_71, %c3_72, %c0_73], %133 {strides = array<i32>} : memref<8x8x64xf32, #tpu.memory_space<vmem>>, vector<8x1x64xf32>,
    %134 = vector.extract_strided_slice %45 {offsets = [0, 3], sizes = [8, 1], strides = [1, 1]} : vector<8x16xf32> to vector<8x1xf32>
    %135 = vector.broadcast %134 : vector<8x1xf32> to vector<8x64xf32>
    %136 = arith.mulf %135, %67 : vector<8x64xf32>
    %c0_74 = arith.constant 0 : index
    %c3_75 = arith.constant 3 : index
    %c0_76 = arith.constant 0 : index
    %137 = vector.load %arg16[%c0_74, %c3_75, %c0_76] : memref<8x8x64xf32, #tpu.memory_space<vmem>>, vector<8x1x64xf32>
    %138 = vector.shape_cast %137 : vector<8x1x64xf32> to vector<8x64xf32>
    %139 = vector.shape_cast %136 : vector<8x64xf32> to vector<8x1x64xf32>
    tpu.vector_store %arg16[%c0_74, %c3_75, %c0_76], %139 {strides = array<i32>} : memref<8x8x64xf32, #tpu.memory_space<vmem>>, vector<8x1x64xf32>,
    %140 = vector.extract_strided_slice %46 {offsets = [0, 3], sizes = [8, 1], strides = [1, 1]} : vector<8x16xf32> to vector<8x1xf32>
    %141 = vector.shape_cast %140 : vector<8x1xf32> to vector<8x1xf32>
    %142 = vector.broadcast %141 : vector<8x1xf32> to vector<8x64xf32>
    %c0_77 = arith.constant 0 : index
    %c3_78 = arith.constant 3 : index
    %c0_79 = arith.constant 0 : index
    %143 = vector.load %arg17[%c0_77, %c3_78, %c0_79] : memref<8x8x64xf32, #tpu.memory_space<vmem>>, vector<8x1x64xf32>
    %144 = vector.shape_cast %143 : vector<8x1x64xf32> to vector<8x64xf32>
    %145 = vector.shape_cast %142 : vector<8x64xf32> to vector<8x1x64xf32>
    tpu.vector_store %arg17[%c0_77, %c3_78, %c0_79], %145 {strides = array<i32>} : memref<8x8x64xf32, #tpu.memory_space<vmem>>, vector<8x1x64xf32>,
    %c4 = arith.constant 4 : index
    %c0_80 = arith.constant 0 : index
    %146 = vector.load %arg9[%c4, %c0_80] : memref<16x64xf32, #tpu.memory_space<vmem>>, vector<1x64xf32>
    %147 = vector.broadcast %146 : vector<1x64xf32> to vector<8x64xf32>
    %148 = arith.mulf %66, %147 : vector<8x64xf32>
    %149 = math.exp %148 : vector<8x64xf32>
    %c0_81 = arith.constant 0 : index
    %c4_82 = arith.constant 4 : index
    %c0_83 = arith.constant 0 : index
    %150 = vector.load %arg15[%c0_81, %c4_82, %c0_83] : memref<8x8x64xf32, #tpu.memory_space<vmem>>, vector<8x1x64xf32>
    %151 = vector.shape_cast %150 : vector<8x1x64xf32> to vector<8x64xf32>
    %152 = vector.shape_cast %149 : vector<8x64xf32> to vector<8x1x64xf32>
    tpu.vector_store %arg15[%c0_81, %c4_82, %c0_83], %152 {strides = array<i32>} : memref<8x8x64xf32, #tpu.memory_space<vmem>>, vector<8x1x64xf32>,
    %153 = vector.extract_strided_slice %45 {offsets = [0, 4], sizes = [8, 1], strides = [1, 1]} : vector<8x16xf32> to vector<8x1xf32>
    %154 = vector.broadcast %153 : vector<8x1xf32> to vector<8x64xf32>
    %155 = arith.mulf %154, %67 : vector<8x64xf32>
    %c0_84 = arith.constant 0 : index
    %c4_85 = arith.constant 4 : index
    %c0_86 = arith.constant 0 : index
    %156 = vector.load %arg16[%c0_84, %c4_85, %c0_86] : memref<8x8x64xf32, #tpu.memory_space<vmem>>, vector<8x1x64xf32>
    %157 = vector.shape_cast %156 : vector<8x1x64xf32> to vector<8x64xf32>
    %158 = vector.shape_cast %155 : vector<8x64xf32> to vector<8x1x64xf32>
    tpu.vector_store %arg16[%c0_84, %c4_85, %c0_86], %158 {strides = array<i32>} : memref<8x8x64xf32, #tpu.memory_space<vmem>>, vector<8x1x64xf32>,
    %159 = vector.extract_strided_slice %46 {offsets = [0, 4], sizes = [8, 1], strides = [1, 1]} : vector<8x16xf32> to vector<8x1xf32>
    %160 = vector.shape_cast %159 : vector<8x1xf32> to vector<8x1xf32>
    %161 = vector.broadcast %160 : vector<8x1xf32> to vector<8x64xf32>
    %c0_87 = arith.constant 0 : index
    %c4_88 = arith.constant 4 : index
    %c0_89 = arith.constant 0 : index
    %162 = vector.load %arg17[%c0_87, %c4_88, %c0_89] : memref<8x8x64xf32, #tpu.memory_space<vmem>>, vector<8x1x64xf32>
    %163 = vector.shape_cast %162 : vector<8x1x64xf32> to vector<8x64xf32>
    %164 = vector.shape_cast %161 : vector<8x64xf32> to vector<8x1x64xf32>
    tpu.vector_store %arg17[%c0_87, %c4_88, %c0_89], %164 {strides = array<i32>} : memref<8x8x64xf32, #tpu.memory_space<vmem>>, vector<8x1x64xf32>,
    %c5_90 = arith.constant 5 : index
    %c0_91 = arith.constant 0 : index
    %165 = vector.load %arg9[%c5_90, %c0_91] : memref<16x64xf32, #tpu.memory_space<vmem>>, vector<1x64xf32>
    %166 = vector.broadcast %165 : vector<1x64xf32> to vector<8x64xf32>
    %167 = arith.mulf %66, %166 : vector<8x64xf32>
    %168 = math.exp %167 : vector<8x64xf32>
    %c0_92 = arith.constant 0 : index
    %c5_93 = arith.constant 5 : index
    %c0_94 = arith.constant 0 : index
    %169 = vector.load %arg15[%c0_92, %c5_93, %c0_94] : memref<8x8x64xf32, #tpu.memory_space<vmem>>, vector<8x1x64xf32>
    %170 = vector.shape_cast %169 : vector<8x1x64xf32> to vector<8x64xf32>
    %171 = vector.shape_cast %168 : vector<8x64xf32> to vector<8x1x64xf32>
    tpu.vector_store %arg15[%c0_92, %c5_93, %c0_94], %171 {strides = array<i32>} : memref<8x8x64xf32, #tpu.memory_space<vmem>>, vector<8x1x64xf32>,
    %172 = vector.extract_strided_slice %45 {offsets = [0, 5], sizes = [8, 1], strides = [1, 1]} : vector<8x16xf32> to vector<8x1xf32>
    %173 = vector.broadcast %172 : vector<8x1xf32> to vector<8x64xf32>
    %174 = arith.mulf %173, %67 : vector<8x64xf32>
    %c0_95 = arith.constant 0 : index
    %c5_96 = arith.constant 5 : index
    %c0_97 = arith.constant 0 : index
    %175 = vector.load %arg16[%c0_95, %c5_96, %c0_97] : memref<8x8x64xf32, #tpu.memory_space<vmem>>, vector<8x1x64xf32>
    %176 = vector.shape_cast %175 : vector<8x1x64xf32> to vector<8x64xf32>
    %177 = vector.shape_cast %174 : vector<8x64xf32> to vector<8x1x64xf32>
    tpu.vector_store %arg16[%c0_95, %c5_96, %c0_97], %177 {strides = array<i32>} : memref<8x8x64xf32, #tpu.memory_space<vmem>>, vector<8x1x64xf32>,
    %178 = vector.extract_strided_slice %46 {offsets = [0, 5], sizes = [8, 1], strides = [1, 1]} : vector<8x16xf32> to vector<8x1xf32>
    %179 = vector.shape_cast %178 : vector<8x1xf32> to vector<8x1xf32>
    %180 = vector.broadcast %179 : vector<8x1xf32> to vector<8x64xf32>
    %c0_98 = arith.constant 0 : index
    %c5_99 = arith.constant 5 : index
    %c0_100 = arith.constant 0 : index
    %181 = vector.load %arg17[%c0_98, %c5_99, %c0_100] : memref<8x8x64xf32, #tpu.memory_space<vmem>>, vector<8x1x64xf32>
    %182 = vector.shape_cast %181 : vector<8x1x64xf32> to vector<8x64xf32>
    %183 = vector.shape_cast %180 : vector<8x64xf32> to vector<8x1x64xf32>
    tpu.vector_store %arg17[%c0_98, %c5_99, %c0_100], %183 {strides = array<i32>} : memref<8x8x64xf32, #tpu.memory_space<vmem>>, vector<8x1x64xf32>,
    %c6_101 = arith.constant 6 : index
    %c0_102 = arith.constant 0 : index
    %184 = vector.load %arg9[%c6_101, %c0_102] : memref<16x64xf32, #tpu.memory_space<vmem>>, vector<1x64xf32>
    %185 = vector.broadcast %184 : vector<1x64xf32> to vector<8x64xf32>
    %186 = arith.mulf %66, %185 : vector<8x64xf32>
    %187 = math.exp %186 : vector<8x64xf32>
    %c0_103 = arith.constant 0 : index
    %c6_104 = arith.constant 6 : index
    %c0_105 = arith.constant 0 : index
    %188 = vector.load %arg15[%c0_103, %c6_104, %c0_105] : memref<8x8x64xf32, #tpu.memory_space<vmem>>, vector<8x1x64xf32>
    %189 = vector.shape_cast %188 : vector<8x1x64xf32> to vector<8x64xf32>
    %190 = vector.shape_cast %187 : vector<8x64xf32> to vector<8x1x64xf32>
    tpu.vector_store %arg15[%c0_103, %c6_104, %c0_105], %190 {strides = array<i32>} : memref<8x8x64xf32, #tpu.memory_space<vmem>>, vector<8x1x64xf32>,
    %191 = vector.extract_strided_slice %45 {offsets = [0, 6], sizes = [8, 1], strides = [1, 1]} : vector<8x16xf32> to vector<8x1xf32>
    %192 = vector.broadcast %191 : vector<8x1xf32> to vector<8x64xf32>
    %193 = arith.mulf %192, %67 : vector<8x64xf32>
    %c0_106 = arith.constant 0 : index
    %c6_107 = arith.constant 6 : index
    %c0_108 = arith.constant 0 : index
    %194 = vector.load %arg16[%c0_106, %c6_107, %c0_108] : memref<8x8x64xf32, #tpu.memory_space<vmem>>, vector<8x1x64xf32>
    %195 = vector.shape_cast %194 : vector<8x1x64xf32> to vector<8x64xf32>
    %196 = vector.shape_cast %193 : vector<8x64xf32> to vector<8x1x64xf32>
    tpu.vector_store %arg16[%c0_106, %c6_107, %c0_108], %196 {strides = array<i32>} : memref<8x8x64xf32, #tpu.memory_space<vmem>>, vector<8x1x64xf32>,
    %197 = vector.extract_strided_slice %46 {offsets = [0, 6], sizes = [8, 1], strides = [1, 1]} : vector<8x16xf32> to vector<8x1xf32>
    %198 = vector.shape_cast %197 : vector<8x1xf32> to vector<8x1xf32>
    %199 = vector.broadcast %198 : vector<8x1xf32> to vector<8x64xf32>
    %c0_109 = arith.constant 0 : index
    %c6_110 = arith.constant 6 : index
    %c0_111 = arith.constant 0 : index
    %200 = vector.load %arg17[%c0_109, %c6_110, %c0_111] : memref<8x8x64xf32, #tpu.memory_space<vmem>>, vector<8x1x64xf32>
    %201 = vector.shape_cast %200 : vector<8x1x64xf32> to vector<8x64xf32>
    %202 = vector.shape_cast %199 : vector<8x64xf32> to vector<8x1x64xf32>
    tpu.vector_store %arg17[%c0_109, %c6_110, %c0_111], %202 {strides = array<i32>} : memref<8x8x64xf32, #tpu.memory_space<vmem>>, vector<8x1x64xf32>,
    %c7_112 = arith.constant 7 : index
    %c0_113 = arith.constant 0 : index
    %203 = vector.load %arg9[%c7_112, %c0_113] : memref<16x64xf32, #tpu.memory_space<vmem>>, vector<1x64xf32>
    %204 = vector.broadcast %203 : vector<1x64xf32> to vector<8x64xf32>
    %205 = arith.mulf %66, %204 : vector<8x64xf32>
    %206 = math.exp %205 : vector<8x64xf32>
    %c0_114 = arith.constant 0 : index
    %c7_115 = arith.constant 7 : index
    %c0_116 = arith.constant 0 : index
    %207 = vector.load %arg15[%c0_114, %c7_115, %c0_116] : memref<8x8x64xf32, #tpu.memory_space<vmem>>, vector<8x1x64xf32>
    %208 = vector.shape_cast %207 : vector<8x1x64xf32> to vector<8x64xf32>
    %209 = vector.shape_cast %206 : vector<8x64xf32> to vector<8x1x64xf32>
    tpu.vector_store %arg15[%c0_114, %c7_115, %c0_116], %209 {strides = array<i32>} : memref<8x8x64xf32, #tpu.memory_space<vmem>>, vector<8x1x64xf32>,
    %210 = vector.extract_strided_slice %45 {offsets = [0, 7], sizes = [8, 1], strides = [1, 1]} : vector<8x16xf32> to vector<8x1xf32>
    %211 = vector.broadcast %210 : vector<8x1xf32> to vector<8x64xf32>
    %212 = arith.mulf %211, %67 : vector<8x64xf32>
    %c0_117 = arith.constant 0 : index
    %c7_118 = arith.constant 7 : index
    %c0_119 = arith.constant 0 : index
    %213 = vector.load %arg16[%c0_117, %c7_118, %c0_119] : memref<8x8x64xf32, #tpu.memory_space<vmem>>, vector<8x1x64xf32>
    %214 = vector.shape_cast %213 : vector<8x1x64xf32> to vector<8x64xf32>
    %215 = vector.shape_cast %212 : vector<8x64xf32> to vector<8x1x64xf32>
    tpu.vector_store %arg16[%c0_117, %c7_118, %c0_119], %215 {strides = array<i32>} : memref<8x8x64xf32, #tpu.memory_space<vmem>>, vector<8x1x64xf32>,
    %216 = vector.extract_strided_slice %46 {offsets = [0, 7], sizes = [8, 1], strides = [1, 1]} : vector<8x16xf32> to vector<8x1xf32>
    %217 = vector.shape_cast %216 : vector<8x1xf32> to vector<8x1xf32>
    %218 = vector.broadcast %217 : vector<8x1xf32> to vector<8x64xf32>
    %c0_120 = arith.constant 0 : index
    %c7_121 = arith.constant 7 : index
    %c0_122 = arith.constant 0 : index
    %219 = vector.load %arg17[%c0_120, %c7_121, %c0_122] : memref<8x8x64xf32, #tpu.memory_space<vmem>>, vector<8x1x64xf32>
    %220 = vector.shape_cast %219 : vector<8x1x64xf32> to vector<8x64xf32>
    %221 = vector.shape_cast %218 : vector<8x64xf32> to vector<8x1x64xf32>
    tpu.vector_store %arg17[%c0_120, %c7_121, %c0_122], %221 {strides = array<i32>} : memref<8x8x64xf32, #tpu.memory_space<vmem>>, vector<8x1x64xf32>,
    %c0_123 = arith.constant 0 : index
    %c0_124 = arith.constant 0 : index
    %222 = vector.load %arg13[%c0_123, %c0_124] : memref<16x64xf32, #tpu.memory_space<vmem>>, vector<8x64xf32>
    %c0_i32_125 = arith.constant 0 : i32
    %223 = arith.index_cast %c0_i32_125 : i32 to index
    %c0_126 = arith.constant 0 : index
    %c0_127 = arith.constant 0 : index
    %224 = vector.load %arg15[%223, %c0_126, %c0_127] : memref<8x8x64xf32, #tpu.memory_space<vmem>>, vector<1x8x64xf32>
    %225 = vector.shape_cast %224 : vector<1x8x64xf32> to vector<8x64xf32>
    %226 = arith.mulf %225, %222 : vector<8x64xf32>
    %227 = arith.index_cast %c0_i32_125 : i32 to index
    %c0_128 = arith.constant 0 : index
    %c0_129 = arith.constant 0 : index
    %228 = vector.load %arg16[%227, %c0_128, %c0_129] : memref<8x8x64xf32, #tpu.memory_space<vmem>>, vector<1x8x64xf32>
    %229 = vector.shape_cast %228 : vector<1x8x64xf32> to vector<8x64xf32>
    %230 = arith.addf %226, %229 : vector<8x64xf32>
    %231 = arith.index_cast %c0_i32_125 : i32 to index
    %c0_130 = arith.constant 0 : index
    %c0_131 = arith.constant 0 : index
    %232 = vector.load %arg18[%231, %c0_130, %c0_131] : memref<8x1x64xf32, #tpu.memory_space<vmem>>, vector<1x1x64xf32>
    %233 = vector.shape_cast %232 : vector<1x1x64xf32> to vector<1x64xf32>
    %234 = arith.index_cast %c0_i32_125 : i32 to index
    %c0_132 = arith.constant 0 : index
    %c0_133 = arith.constant 0 : index
    %235 = vector.load %arg17[%234, %c0_132, %c0_133] : memref<8x8x64xf32, #tpu.memory_space<vmem>>, vector<1x8x64xf32>
    %236 = vector.shape_cast %235 : vector<1x8x64xf32> to vector<8x64xf32>
    %237 = arith.mulf %236, %230 : vector<8x64xf32>
    %cst_134 = arith.constant dense<0.000000e+00> : vector<64xf32>
    %238 = vector.multi_reduction <add>, %237, %cst_134 [0] : vector<8x64xf32> to vector<64xf32>
    %239 = vector.shape_cast %238 : vector<64xf32> to vector<1x64xf32>
    %240 = arith.addf %233, %239 : vector<1x64xf32>
    %241 = arith.index_cast %c0_i32_125 : i32 to index
    %c0_135 = arith.constant 0 : index
    %c0_136 = arith.constant 0 : index
    %242 = vector.load %arg18[%241, %c0_135, %c0_136] : memref<8x1x64xf32, #tpu.memory_space<vmem>>, vector<1x1x64xf32>
    %243 = vector.shape_cast %242 : vector<1x1x64xf32> to vector<1x64xf32>
    %244 = vector.shape_cast %240 : vector<1x64xf32> to vector<1x1x64xf32>
    tpu.vector_store %arg18[%241, %c0_135, %c0_136], %244 {strides = array<i32>} : memref<8x1x64xf32, #tpu.memory_space<vmem>>, vector<1x1x64xf32>,
    %c1_i32 = arith.constant 1 : i32
    %245 = arith.index_cast %c1_i32 : i32 to index
    %c0_137 = arith.constant 0 : index
    %c0_138 = arith.constant 0 : index
    %246 = vector.load %arg15[%245, %c0_137, %c0_138] : memref<8x8x64xf32, #tpu.memory_space<vmem>>, vector<1x8x64xf32>
    %247 = vector.shape_cast %246 : vector<1x8x64xf32> to vector<8x64xf32>
    %248 = arith.mulf %247, %230 : vector<8x64xf32>
    %249 = arith.index_cast %c1_i32 : i32 to index
    %c0_139 = arith.constant 0 : index
    %c0_140 = arith.constant 0 : index
    %250 = vector.load %arg16[%249, %c0_139, %c0_140] : memref<8x8x64xf32, #tpu.memory_space<vmem>>, vector<1x8x64xf32>
    %251 = vector.shape_cast %250 : vector<1x8x64xf32> to vector<8x64xf32>
    %252 = arith.addf %248, %251 : vector<8x64xf32>
    %253 = arith.index_cast %c1_i32 : i32 to index
    %c0_141 = arith.constant 0 : index
    %c0_142 = arith.constant 0 : index
    %254 = vector.load %arg18[%253, %c0_141, %c0_142] : memref<8x1x64xf32, #tpu.memory_space<vmem>>, vector<1x1x64xf32>
    %255 = vector.shape_cast %254 : vector<1x1x64xf32> to vector<1x64xf32>
    %256 = arith.index_cast %c1_i32 : i32 to index
    %c0_143 = arith.constant 0 : index
    %c0_144 = arith.constant 0 : index
    %257 = vector.load %arg17[%256, %c0_143, %c0_144] : memref<8x8x64xf32, #tpu.memory_space<vmem>>, vector<1x8x64xf32>
    %258 = vector.shape_cast %257 : vector<1x8x64xf32> to vector<8x64xf32>
    %259 = arith.mulf %258, %252 : vector<8x64xf32>
    %cst_145 = arith.constant dense<0.000000e+00> : vector<64xf32>
    %260 = vector.multi_reduction <add>, %259, %cst_145 [0] : vector<8x64xf32> to vector<64xf32>
    %261 = vector.shape_cast %260 : vector<64xf32> to vector<1x64xf32>
    %262 = arith.addf %255, %261 : vector<1x64xf32>
    %263 = arith.index_cast %c1_i32 : i32 to index
    %c0_146 = arith.constant 0 : index
    %c0_147 = arith.constant 0 : index
    %264 = vector.load %arg18[%263, %c0_146, %c0_147] : memref<8x1x64xf32, #tpu.memory_space<vmem>>, vector<1x1x64xf32>
    %265 = vector.shape_cast %264 : vector<1x1x64xf32> to vector<1x64xf32>
    %266 = vector.shape_cast %262 : vector<1x64xf32> to vector<1x1x64xf32>
    tpu.vector_store %arg18[%263, %c0_146, %c0_147], %266 {strides = array<i32>} : memref<8x1x64xf32, #tpu.memory_space<vmem>>, vector<1x1x64xf32>,
    %c2_i32 = arith.constant 2 : i32
    %267 = arith.index_cast %c2_i32 : i32 to index
    %c0_148 = arith.constant 0 : index
    %c0_149 = arith.constant 0 : index
    %268 = vector.load %arg15[%267, %c0_148, %c0_149] : memref<8x8x64xf32, #tpu.memory_space<vmem>>, vector<1x8x64xf32>
    %269 = vector.shape_cast %268 : vector<1x8x64xf32> to vector<8x64xf32>
    %270 = arith.mulf %269, %252 : vector<8x64xf32>
    %271 = arith.index_cast %c2_i32 : i32 to index
    %c0_150 = arith.constant 0 : index
    %c0_151 = arith.constant 0 : index
    %272 = vector.load %arg16[%271, %c0_150, %c0_151] : memref<8x8x64xf32, #tpu.memory_space<vmem>>, vector<1x8x64xf32>
    %273 = vector.shape_cast %272 : vector<1x8x64xf32> to vector<8x64xf32>
    %274 = arith.addf %270, %273 : vector<8x64xf32>
    %275 = arith.index_cast %c2_i32 : i32 to index
    %c0_152 = arith.constant 0 : index
    %c0_153 = arith.constant 0 : index
    %276 = vector.load %arg18[%275, %c0_152, %c0_153] : memref<8x1x64xf32, #tpu.memory_space<vmem>>, vector<1x1x64xf32>
    %277 = vector.shape_cast %276 : vector<1x1x64xf32> to vector<1x64xf32>
    %278 = arith.index_cast %c2_i32 : i32 to index
    %c0_154 = arith.constant 0 : index
    %c0_155 = arith.constant 0 : index
    %279 = vector.load %arg17[%278, %c0_154, %c0_155] : memref<8x8x64xf32, #tpu.memory_space<vmem>>, vector<1x8x64xf32>
    %280 = vector.shape_cast %279 : vector<1x8x64xf32> to vector<8x64xf32>
    %281 = arith.mulf %280, %274 : vector<8x64xf32>
    %cst_156 = arith.constant dense<0.000000e+00> : vector<64xf32>
    %282 = vector.multi_reduction <add>, %281, %cst_156 [0] : vector<8x64xf32> to vector<64xf32>
    %283 = vector.shape_cast %282 : vector<64xf32> to vector<1x64xf32>
    %284 = arith.addf %277, %283 : vector<1x64xf32>
    %285 = arith.index_cast %c2_i32 : i32 to index
    %c0_157 = arith.constant 0 : index
    %c0_158 = arith.constant 0 : index
    %286 = vector.load %arg18[%285, %c0_157, %c0_158] : memref<8x1x64xf32, #tpu.memory_space<vmem>>, vector<1x1x64xf32>
    %287 = vector.shape_cast %286 : vector<1x1x64xf32> to vector<1x64xf32>
    %288 = vector.shape_cast %284 : vector<1x64xf32> to vector<1x1x64xf32>
    tpu.vector_store %arg18[%285, %c0_157, %c0_158], %288 {strides = array<i32>} : memref<8x1x64xf32, #tpu.memory_space<vmem>>, vector<1x1x64xf32>,
    %c3_i32 = arith.constant 3 : i32
    %289 = arith.index_cast %c3_i32 : i32 to index
    %c0_159 = arith.constant 0 : index
    %c0_160 = arith.constant 0 : index
    %290 = vector.load %arg15[%289, %c0_159, %c0_160] : memref<8x8x64xf32, #tpu.memory_space<vmem>>, vector<1x8x64xf32>
    %291 = vector.shape_cast %290 : vector<1x8x64xf32> to vector<8x64xf32>
    %292 = arith.mulf %291, %274 : vector<8x64xf32>
    %293 = arith.index_cast %c3_i32 : i32 to index
    %c0_161 = arith.constant 0 : index
    %c0_162 = arith.constant 0 : index
    %294 = vector.load %arg16[%293, %c0_161, %c0_162] : memref<8x8x64xf32, #tpu.memory_space<vmem>>, vector<1x8x64xf32>
    %295 = vector.shape_cast %294 : vector<1x8x64xf32> to vector<8x64xf32>
    %296 = arith.addf %292, %295 : vector<8x64xf32>
    %297 = arith.index_cast %c3_i32 : i32 to index
    %c0_163 = arith.constant 0 : index
    %c0_164 = arith.constant 0 : index
    %298 = vector.load %arg18[%297, %c0_163, %c0_164] : memref<8x1x64xf32, #tpu.memory_space<vmem>>, vector<1x1x64xf32>
    %299 = vector.shape_cast %298 : vector<1x1x64xf32> to vector<1x64xf32>
    %300 = arith.index_cast %c3_i32 : i32 to index
    %c0_165 = arith.constant 0 : index
    %c0_166 = arith.constant 0 : index
    %301 = vector.load %arg17[%300, %c0_165, %c0_166] : memref<8x8x64xf32, #tpu.memory_space<vmem>>, vector<1x8x64xf32>
    %302 = vector.shape_cast %301 : vector<1x8x64xf32> to vector<8x64xf32>
    %303 = arith.mulf %302, %296 : vector<8x64xf32>
    %cst_167 = arith.constant dense<0.000000e+00> : vector<64xf32>
    %304 = vector.multi_reduction <add>, %303, %cst_167 [0] : vector<8x64xf32> to vector<64xf32>
    %305 = vector.shape_cast %304 : vector<64xf32> to vector<1x64xf32>
    %306 = arith.addf %299, %305 : vector<1x64xf32>
    %307 = arith.index_cast %c3_i32 : i32 to index
    %c0_168 = arith.constant 0 : index
    %c0_169 = arith.constant 0 : index
    %308 = vector.load %arg18[%307, %c0_168, %c0_169] : memref<8x1x64xf32, #tpu.memory_space<vmem>>, vector<1x1x64xf32>
    %309 = vector.shape_cast %308 : vector<1x1x64xf32> to vector<1x64xf32>
    %310 = vector.shape_cast %306 : vector<1x64xf32> to vector<1x1x64xf32>
    tpu.vector_store %arg18[%307, %c0_168, %c0_169], %310 {strides = array<i32>} : memref<8x1x64xf32, #tpu.memory_space<vmem>>, vector<1x1x64xf32>,
    %c4_i32 = arith.constant 4 : i32
    %311 = arith.index_cast %c4_i32 : i32 to index
    %c0_170 = arith.constant 0 : index
    %c0_171 = arith.constant 0 : index
    %312 = vector.load %arg15[%311, %c0_170, %c0_171] : memref<8x8x64xf32, #tpu.memory_space<vmem>>, vector<1x8x64xf32>
    %313 = vector.shape_cast %312 : vector<1x8x64xf32> to vector<8x64xf32>
    %314 = arith.mulf %313, %296 : vector<8x64xf32>
    %315 = arith.index_cast %c4_i32 : i32 to index
    %c0_172 = arith.constant 0 : index
    %c0_173 = arith.constant 0 : index
    %316 = vector.load %arg16[%315, %c0_172, %c0_173] : memref<8x8x64xf32, #tpu.memory_space<vmem>>, vector<1x8x64xf32>
    %317 = vector.shape_cast %316 : vector<1x8x64xf32> to vector<8x64xf32>
    %318 = arith.addf %314, %317 : vector<8x64xf32>
    %319 = arith.index_cast %c4_i32 : i32 to index
    %c0_174 = arith.constant 0 : index
    %c0_175 = arith.constant 0 : index
    %320 = vector.load %arg18[%319, %c0_174, %c0_175] : memref<8x1x64xf32, #tpu.memory_space<vmem>>, vector<1x1x64xf32>
    %321 = vector.shape_cast %320 : vector<1x1x64xf32> to vector<1x64xf32>
    %322 = arith.index_cast %c4_i32 : i32 to index
    %c0_176 = arith.constant 0 : index
    %c0_177 = arith.constant 0 : index
    %323 = vector.load %arg17[%322, %c0_176, %c0_177] : memref<8x8x64xf32, #tpu.memory_space<vmem>>, vector<1x8x64xf32>
    %324 = vector.shape_cast %323 : vector<1x8x64xf32> to vector<8x64xf32>
    %325 = arith.mulf %324, %318 : vector<8x64xf32>
    %cst_178 = arith.constant dense<0.000000e+00> : vector<64xf32>
    %326 = vector.multi_reduction <add>, %325, %cst_178 [0] : vector<8x64xf32> to vector<64xf32>
    %327 = vector.shape_cast %326 : vector<64xf32> to vector<1x64xf32>
    %328 = arith.addf %321, %327 : vector<1x64xf32>
    %329 = arith.index_cast %c4_i32 : i32 to index
    %c0_179 = arith.constant 0 : index
    %c0_180 = arith.constant 0 : index
    %330 = vector.load %arg18[%329, %c0_179, %c0_180] : memref<8x1x64xf32, #tpu.memory_space<vmem>>, vector<1x1x64xf32>
    %331 = vector.shape_cast %330 : vector<1x1x64xf32> to vector<1x64xf32>
    %332 = vector.shape_cast %328 : vector<1x64xf32> to vector<1x1x64xf32>
    tpu.vector_store %arg18[%329, %c0_179, %c0_180], %332 {strides = array<i32>} : memref<8x1x64xf32, #tpu.memory_space<vmem>>, vector<1x1x64xf32>,
    %c5_i32 = arith.constant 5 : i32
    %333 = arith.index_cast %c5_i32 : i32 to index
    %c0_181 = arith.constant 0 : index
    %c0_182 = arith.constant 0 : index
    %334 = vector.load %arg15[%333, %c0_181, %c0_182] : memref<8x8x64xf32, #tpu.memory_space<vmem>>, vector<1x8x64xf32>
    %335 = vector.shape_cast %334 : vector<1x8x64xf32> to vector<8x64xf32>
    %336 = arith.mulf %335, %318 : vector<8x64xf32>
    %337 = arith.index_cast %c5_i32 : i32 to index
    %c0_183 = arith.constant 0 : index
    %c0_184 = arith.constant 0 : index
    %338 = vector.load %arg16[%337, %c0_183, %c0_184] : memref<8x8x64xf32, #tpu.memory_space<vmem>>, vector<1x8x64xf32>
    %339 = vector.shape_cast %338 : vector<1x8x64xf32> to vector<8x64xf32>
    %340 = arith.addf %336, %339 : vector<8x64xf32>
    %341 = arith.index_cast %c5_i32 : i32 to index
    %c0_185 = arith.constant 0 : index
    %c0_186 = arith.constant 0 : index
    %342 = vector.load %arg18[%341, %c0_185, %c0_186] : memref<8x1x64xf32, #tpu.memory_space<vmem>>, vector<1x1x64xf32>
    %343 = vector.shape_cast %342 : vector<1x1x64xf32> to vector<1x64xf32>
    %344 = arith.index_cast %c5_i32 : i32 to index
    %c0_187 = arith.constant 0 : index
    %c0_188 = arith.constant 0 : index
    %345 = vector.load %arg17[%344, %c0_187, %c0_188] : memref<8x8x64xf32, #tpu.memory_space<vmem>>, vector<1x8x64xf32>
    %346 = vector.shape_cast %345 : vector<1x8x64xf32> to vector<8x64xf32>
    %347 = arith.mulf %346, %340 : vector<8x64xf32>
    %cst_189 = arith.constant dense<0.000000e+00> : vector<64xf32>
    %348 = vector.multi_reduction <add>, %347, %cst_189 [0] : vector<8x64xf32> to vector<64xf32>
    %349 = vector.shape_cast %348 : vector<64xf32> to vector<1x64xf32>
    %350 = arith.addf %343, %349 : vector<1x64xf32>
    %351 = arith.index_cast %c5_i32 : i32 to index
    %c0_190 = arith.constant 0 : index
    %c0_191 = arith.constant 0 : index
    %352 = vector.load %arg18[%351, %c0_190, %c0_191] : memref<8x1x64xf32, #tpu.memory_space<vmem>>, vector<1x1x64xf32>
    %353 = vector.shape_cast %352 : vector<1x1x64xf32> to vector<1x64xf32>
    %354 = vector.shape_cast %350 : vector<1x64xf32> to vector<1x1x64xf32>
    tpu.vector_store %arg18[%351, %c0_190, %c0_191], %354 {strides = array<i32>} : memref<8x1x64xf32, #tpu.memory_space<vmem>>, vector<1x1x64xf32>,
    %c6_i32 = arith.constant 6 : i32
    %355 = arith.index_cast %c6_i32 : i32 to index
    %c0_192 = arith.constant 0 : index
    %c0_193 = arith.constant 0 : index
    %356 = vector.load %arg15[%355, %c0_192, %c0_193] : memref<8x8x64xf32, #tpu.memory_space<vmem>>, vector<1x8x64xf32>
    %357 = vector.shape_cast %356 : vector<1x8x64xf32> to vector<8x64xf32>
    %358 = arith.mulf %357, %340 : vector<8x64xf32>
    %359 = arith.index_cast %c6_i32 : i32 to index
    %c0_194 = arith.constant 0 : index
    %c0_195 = arith.constant 0 : index
    %360 = vector.load %arg16[%359, %c0_194, %c0_195] : memref<8x8x64xf32, #tpu.memory_space<vmem>>, vector<1x8x64xf32>
    %361 = vector.shape_cast %360 : vector<1x8x64xf32> to vector<8x64xf32>
    %362 = arith.addf %358, %361 : vector<8x64xf32>
    %363 = arith.index_cast %c6_i32 : i32 to index
    %c0_196 = arith.constant 0 : index
    %c0_197 = arith.constant 0 : index
    %364 = vector.load %arg18[%363, %c0_196, %c0_197] : memref<8x1x64xf32, #tpu.memory_space<vmem>>, vector<1x1x64xf32>
    %365 = vector.shape_cast %364 : vector<1x1x64xf32> to vector<1x64xf32>
    %366 = arith.index_cast %c6_i32 : i32 to index
    %c0_198 = arith.constant 0 : index
    %c0_199 = arith.constant 0 : index
    %367 = vector.load %arg17[%366, %c0_198, %c0_199] : memref<8x8x64xf32, #tpu.memory_space<vmem>>, vector<1x8x64xf32>
    %368 = vector.shape_cast %367 : vector<1x8x64xf32> to vector<8x64xf32>
    %369 = arith.mulf %368, %362 : vector<8x64xf32>
    %cst_200 = arith.constant dense<0.000000e+00> : vector<64xf32>
    %370 = vector.multi_reduction <add>, %369, %cst_200 [0] : vector<8x64xf32> to vector<64xf32>
    %371 = vector.shape_cast %370 : vector<64xf32> to vector<1x64xf32>
    %372 = arith.addf %365, %371 : vector<1x64xf32>
    %373 = arith.index_cast %c6_i32 : i32 to index
    %c0_201 = arith.constant 0 : index
    %c0_202 = arith.constant 0 : index
    %374 = vector.load %arg18[%373, %c0_201, %c0_202] : memref<8x1x64xf32, #tpu.memory_space<vmem>>, vector<1x1x64xf32>
    %375 = vector.shape_cast %374 : vector<1x1x64xf32> to vector<1x64xf32>
    %376 = vector.shape_cast %372 : vector<1x64xf32> to vector<1x1x64xf32>
    tpu.vector_store %arg18[%373, %c0_201, %c0_202], %376 {strides = array<i32>} : memref<8x1x64xf32, #tpu.memory_space<vmem>>, vector<1x1x64xf32>,
    %c7_i32 = arith.constant 7 : i32
    %377 = arith.index_cast %c7_i32 : i32 to index
    %c0_203 = arith.constant 0 : index
    %c0_204 = arith.constant 0 : index
    %378 = vector.load %arg15[%377, %c0_203, %c0_204] : memref<8x8x64xf32, #tpu.memory_space<vmem>>, vector<1x8x64xf32>
    %379 = vector.shape_cast %378 : vector<1x8x64xf32> to vector<8x64xf32>
    %380 = arith.mulf %379, %362 : vector<8x64xf32>
    %381 = arith.index_cast %c7_i32 : i32 to index
    %c0_205 = arith.constant 0 : index
    %c0_206 = arith.constant 0 : index
    %382 = vector.load %arg16[%381, %c0_205, %c0_206] : memref<8x8x64xf32, #tpu.memory_space<vmem>>, vector<1x8x64xf32>
    %383 = vector.shape_cast %382 : vector<1x8x64xf32> to vector<8x64xf32>
    %384 = arith.addf %380, %383 : vector<8x64xf32>
    %385 = arith.index_cast %c7_i32 : i32 to index
    %c0_207 = arith.constant 0 : index
    %c0_208 = arith.constant 0 : index
    %386 = vector.load %arg18[%385, %c0_207, %c0_208] : memref<8x1x64xf32, #tpu.memory_space<vmem>>, vector<1x1x64xf32>
    %387 = vector.shape_cast %386 : vector<1x1x64xf32> to vector<1x64xf32>
    %388 = arith.index_cast %c7_i32 : i32 to index
    %c0_209 = arith.constant 0 : index
    %c0_210 = arith.constant 0 : index
    %389 = vector.load %arg17[%388, %c0_209, %c0_210] : memref<8x8x64xf32, #tpu.memory_space<vmem>>, vector<1x8x64xf32>
    %390 = vector.shape_cast %389 : vector<1x8x64xf32> to vector<8x64xf32>
    %391 = arith.mulf %390, %384 : vector<8x64xf32>
    %cst_211 = arith.constant dense<0.000000e+00> : vector<64xf32>
    %392 = vector.multi_reduction <add>, %391, %cst_211 [0] : vector<8x64xf32> to vector<64xf32>
    %393 = vector.shape_cast %392 : vector<64xf32> to vector<1x64xf32>
    %394 = arith.addf %387, %393 : vector<1x64xf32>
    %395 = arith.index_cast %c7_i32 : i32 to index
    %c0_212 = arith.constant 0 : index
    %c0_213 = arith.constant 0 : index
    %396 = vector.load %arg18[%395, %c0_212, %c0_213] : memref<8x1x64xf32, #tpu.memory_space<vmem>>, vector<1x1x64xf32>
    %397 = vector.shape_cast %396 : vector<1x1x64xf32> to vector<1x64xf32>
    %398 = vector.shape_cast %394 : vector<1x64xf32> to vector<1x1x64xf32>
    tpu.vector_store %arg18[%395, %c0_212, %c0_213], %398 {strides = array<i32>} : memref<8x1x64xf32, #tpu.memory_space<vmem>>, vector<1x1x64xf32>,
    %c8_i32 = arith.constant 8 : i32
    %c0_214 = arith.constant 0 : index
    %c0_215 = arith.constant 0 : index
    %399 = vector.load %arg13[%c0_214, %c0_215] : memref<16x64xf32, #tpu.memory_space<vmem>>, vector<8x64xf32>
    tpu.vector_store %arg13[%c0_214, %c0_215], %384 {strides = array<i32>} : memref<16x64xf32, #tpu.memory_space<vmem>>, vector<8x64xf32>,
    %c8_216 = arith.constant 8 : index
    %c0_217 = arith.constant 0 : index
    %400 = vector.load %arg9[%c8_216, %c0_217] : memref<16x64xf32, #tpu.memory_space<vmem>>, vector<1x64xf32>
    %401 = vector.broadcast %400 : vector<1x64xf32> to vector<8x64xf32>
    %402 = arith.mulf %66, %401 : vector<8x64xf32>
    %403 = math.exp %402 : vector<8x64xf32>
    %c0_218 = arith.constant 0 : index
    %c0_219 = arith.constant 0 : index
    %c0_220 = arith.constant 0 : index
    %404 = vector.load %arg15[%c0_218, %c0_219, %c0_220] : memref<8x8x64xf32, #tpu.memory_space<vmem>>, vector<8x1x64xf32>
    %405 = vector.shape_cast %404 : vector<8x1x64xf32> to vector<8x64xf32>
    %406 = vector.shape_cast %403 : vector<8x64xf32> to vector<8x1x64xf32>
    tpu.vector_store %arg15[%c0_218, %c0_219, %c0_220], %406 {strides = array<i32>} : memref<8x8x64xf32, #tpu.memory_space<vmem>>, vector<8x1x64xf32>,
    %407 = vector.extract_strided_slice %45 {offsets = [0, 8], sizes = [8, 1], strides = [1, 1]} : vector<8x16xf32> to vector<8x1xf32>
    %408 = vector.broadcast %407 : vector<8x1xf32> to vector<8x64xf32>
    %409 = arith.mulf %408, %67 : vector<8x64xf32>
    %c0_221 = arith.constant 0 : index
    %c0_222 = arith.constant 0 : index
    %c0_223 = arith.constant 0 : index
    %410 = vector.load %arg16[%c0_221, %c0_222, %c0_223] : memref<8x8x64xf32, #tpu.memory_space<vmem>>, vector<8x1x64xf32>
    %411 = vector.shape_cast %410 : vector<8x1x64xf32> to vector<8x64xf32>
    %412 = vector.shape_cast %409 : vector<8x64xf32> to vector<8x1x64xf32>
    tpu.vector_store %arg16[%c0_221, %c0_222, %c0_223], %412 {strides = array<i32>} : memref<8x8x64xf32, #tpu.memory_space<vmem>>, vector<8x1x64xf32>,
    %413 = vector.extract_strided_slice %46 {offsets = [0, 8], sizes = [8, 1], strides = [1, 1]} : vector<8x16xf32> to vector<8x1xf32>
    %414 = vector.shape_cast %413 : vector<8x1xf32> to vector<8x1xf32>
    %415 = vector.broadcast %414 : vector<8x1xf32> to vector<8x64xf32>
    %c0_224 = arith.constant 0 : index
    %c0_225 = arith.constant 0 : index
    %c0_226 = arith.constant 0 : index
    %416 = vector.load %arg17[%c0_224, %c0_225, %c0_226] : memref<8x8x64xf32, #tpu.memory_space<vmem>>, vector<8x1x64xf32>
    %417 = vector.shape_cast %416 : vector<8x1x64xf32> to vector<8x64xf32>
    %418 = vector.shape_cast %415 : vector<8x64xf32> to vector<8x1x64xf32>
    tpu.vector_store %arg17[%c0_224, %c0_225, %c0_226], %418 {strides = array<i32>} : memref<8x8x64xf32, #tpu.memory_space<vmem>>, vector<8x1x64xf32>,
    %c9 = arith.constant 9 : index
    %c0_227 = arith.constant 0 : index
    %419 = vector.load %arg9[%c9, %c0_227] : memref<16x64xf32, #tpu.memory_space<vmem>>, vector<1x64xf32>
    %420 = vector.broadcast %419 : vector<1x64xf32> to vector<8x64xf32>
    %421 = arith.mulf %66, %420 : vector<8x64xf32>
    %422 = math.exp %421 : vector<8x64xf32>
    %c0_228 = arith.constant 0 : index
    %c1_229 = arith.constant 1 : index
    %c0_230 = arith.constant 0 : index
    %423 = vector.load %arg15[%c0_228, %c1_229, %c0_230] : memref<8x8x64xf32, #tpu.memory_space<vmem>>, vector<8x1x64xf32>
    %424 = vector.shape_cast %423 : vector<8x1x64xf32> to vector<8x64xf32>
    %425 = vector.shape_cast %422 : vector<8x64xf32> to vector<8x1x64xf32>
    tpu.vector_store %arg15[%c0_228, %c1_229, %c0_230], %425 {strides = array<i32>} : memref<8x8x64xf32, #tpu.memory_space<vmem>>, vector<8x1x64xf32>,
    %426 = vector.extract_strided_slice %45 {offsets = [0, 9], sizes = [8, 1], strides = [1, 1]} : vector<8x16xf32> to vector<8x1xf32>
    %427 = vector.broadcast %426 : vector<8x1xf32> to vector<8x64xf32>
    %428 = arith.mulf %427, %67 : vector<8x64xf32>
    %c0_231 = arith.constant 0 : index
    %c1_232 = arith.constant 1 : index
    %c0_233 = arith.constant 0 : index
    %429 = vector.load %arg16[%c0_231, %c1_232, %c0_233] : memref<8x8x64xf32, #tpu.memory_space<vmem>>, vector<8x1x64xf32>
    %430 = vector.shape_cast %429 : vector<8x1x64xf32> to vector<8x64xf32>
    %431 = vector.shape_cast %428 : vector<8x64xf32> to vector<8x1x64xf32>
    tpu.vector_store %arg16[%c0_231, %c1_232, %c0_233], %431 {strides = array<i32>} : memref<8x8x64xf32, #tpu.memory_space<vmem>>, vector<8x1x64xf32>,
    %432 = vector.extract_strided_slice %46 {offsets = [0, 9], sizes = [8, 1], strides = [1, 1]} : vector<8x16xf32> to vector<8x1xf32>
    %433 = vector.shape_cast %432 : vector<8x1xf32> to vector<8x1xf32>
    %434 = vector.broadcast %433 : vector<8x1xf32> to vector<8x64xf32>
    %c0_234 = arith.constant 0 : index
    %c1_235 = arith.constant 1 : index
    %c0_236 = arith.constant 0 : index
    %435 = vector.load %arg17[%c0_234, %c1_235, %c0_236] : memref<8x8x64xf32, #tpu.memory_space<vmem>>, vector<8x1x64xf32>
    %436 = vector.shape_cast %435 : vector<8x1x64xf32> to vector<8x64xf32>
    %437 = vector.shape_cast %434 : vector<8x64xf32> to vector<8x1x64xf32>
    tpu.vector_store %arg17[%c0_234, %c1_235, %c0_236], %437 {strides = array<i32>} : memref<8x8x64xf32, #tpu.memory_space<vmem>>, vector<8x1x64xf32>,
    %c10 = arith.constant 10 : index
    %c0_237 = arith.constant 0 : index
    %438 = vector.load %arg9[%c10, %c0_237] : memref<16x64xf32, #tpu.memory_space<vmem>>, vector<1x64xf32>
    %439 = vector.broadcast %438 : vector<1x64xf32> to vector<8x64xf32>
    %440 = arith.mulf %66, %439 : vector<8x64xf32>
    %441 = math.exp %440 : vector<8x64xf32>
    %c0_238 = arith.constant 0 : index
    %c2_239 = arith.constant 2 : index
    %c0_240 = arith.constant 0 : index
    %442 = vector.load %arg15[%c0_238, %c2_239, %c0_240] : memref<8x8x64xf32, #tpu.memory_space<vmem>>, vector<8x1x64xf32>
    %443 = vector.shape_cast %442 : vector<8x1x64xf32> to vector<8x64xf32>
    %444 = vector.shape_cast %441 : vector<8x64xf32> to vector<8x1x64xf32>
    tpu.vector_store %arg15[%c0_238, %c2_239, %c0_240], %444 {strides = array<i32>} : memref<8x8x64xf32, #tpu.memory_space<vmem>>, vector<8x1x64xf32>,
    %445 = vector.extract_strided_slice %45 {offsets = [0, 10], sizes = [8, 1], strides = [1, 1]} : vector<8x16xf32> to vector<8x1xf32>
    %446 = vector.broadcast %445 : vector<8x1xf32> to vector<8x64xf32>
    %447 = arith.mulf %446, %67 : vector<8x64xf32>
    %c0_241 = arith.constant 0 : index
    %c2_242 = arith.constant 2 : index
    %c0_243 = arith.constant 0 : index
    %448 = vector.load %arg16[%c0_241, %c2_242, %c0_243] : memref<8x8x64xf32, #tpu.memory_space<vmem>>, vector<8x1x64xf32>
    %449 = vector.shape_cast %448 : vector<8x1x64xf32> to vector<8x64xf32>
    %450 = vector.shape_cast %447 : vector<8x64xf32> to vector<8x1x64xf32>
    tpu.vector_store %arg16[%c0_241, %c2_242, %c0_243], %450 {strides = array<i32>} : memref<8x8x64xf32, #tpu.memory_space<vmem>>, vector<8x1x64xf32>,
    %451 = vector.extract_strided_slice %46 {offsets = [0, 10], sizes = [8, 1], strides = [1, 1]} : vector<8x16xf32> to vector<8x1xf32>
    %452 = vector.shape_cast %451 : vector<8x1xf32> to vector<8x1xf32>
    %453 = vector.broadcast %452 : vector<8x1xf32> to vector<8x64xf32>
    %c0_244 = arith.constant 0 : index
    %c2_245 = arith.constant 2 : index
    %c0_246 = arith.constant 0 : index
    %454 = vector.load %arg17[%c0_244, %c2_245, %c0_246] : memref<8x8x64xf32, #tpu.memory_space<vmem>>, vector<8x1x64xf32>
    %455 = vector.shape_cast %454 : vector<8x1x64xf32> to vector<8x64xf32>
    %456 = vector.shape_cast %453 : vector<8x64xf32> to vector<8x1x64xf32>
    tpu.vector_store %arg17[%c0_244, %c2_245, %c0_246], %456 {strides = array<i32>} : memref<8x8x64xf32, #tpu.memory_space<vmem>>, vector<8x1x64xf32>,
    %c11 = arith.constant 11 : index
    %c0_247 = arith.constant 0 : index
    %457 = vector.load %arg9[%c11, %c0_247] : memref<16x64xf32, #tpu.memory_space<vmem>>, vector<1x64xf32>
    %458 = vector.broadcast %457 : vector<1x64xf32> to vector<8x64xf32>
    %459 = arith.mulf %66, %458 : vector<8x64xf32>
    %460 = math.exp %459 : vector<8x64xf32>
    %c0_248 = arith.constant 0 : index
    %c3_249 = arith.constant 3 : index
    %c0_250 = arith.constant 0 : index
    %461 = vector.load %arg15[%c0_248, %c3_249, %c0_250] : memref<8x8x64xf32, #tpu.memory_space<vmem>>, vector<8x1x64xf32>
    %462 = vector.shape_cast %461 : vector<8x1x64xf32> to vector<8x64xf32>
    %463 = vector.shape_cast %460 : vector<8x64xf32> to vector<8x1x64xf32>
    tpu.vector_store %arg15[%c0_248, %c3_249, %c0_250], %463 {strides = array<i32>} : memref<8x8x64xf32, #tpu.memory_space<vmem>>, vector<8x1x64xf32>,
    %464 = vector.extract_strided_slice %45 {offsets = [0, 11], sizes = [8, 1], strides = [1, 1]} : vector<8x16xf32> to vector<8x1xf32>
    %465 = vector.broadcast %464 : vector<8x1xf32> to vector<8x64xf32>
    %466 = arith.mulf %465, %67 : vector<8x64xf32>
    %c0_251 = arith.constant 0 : index
    %c3_252 = arith.constant 3 : index
    %c0_253 = arith.constant 0 : index
    %467 = vector.load %arg16[%c0_251, %c3_252, %c0_253] : memref<8x8x64xf32, #tpu.memory_space<vmem>>, vector<8x1x64xf32>
    %468 = vector.shape_cast %467 : vector<8x1x64xf32> to vector<8x64xf32>
    %469 = vector.shape_cast %466 : vector<8x64xf32> to vector<8x1x64xf32>
    tpu.vector_store %arg16[%c0_251, %c3_252, %c0_253], %469 {strides = array<i32>} : memref<8x8x64xf32, #tpu.memory_space<vmem>>, vector<8x1x64xf32>,
    %470 = vector.extract_strided_slice %46 {offsets = [0, 11], sizes = [8, 1], strides = [1, 1]} : vector<8x16xf32> to vector<8x1xf32>
    %471 = vector.shape_cast %470 : vector<8x1xf32> to vector<8x1xf32>
    %472 = vector.broadcast %471 : vector<8x1xf32> to vector<8x64xf32>
    %c0_254 = arith.constant 0 : index
    %c3_255 = arith.constant 3 : index
    %c0_256 = arith.constant 0 : index
    %473 = vector.load %arg17[%c0_254, %c3_255, %c0_256] : memref<8x8x64xf32, #tpu.memory_space<vmem>>, vector<8x1x64xf32>
    %474 = vector.shape_cast %473 : vector<8x1x64xf32> to vector<8x64xf32>
    %475 = vector.shape_cast %472 : vector<8x64xf32> to vector<8x1x64xf32>
    tpu.vector_store %arg17[%c0_254, %c3_255, %c0_256], %475 {strides = array<i32>} : memref<8x8x64xf32, #tpu.memory_space<vmem>>, vector<8x1x64xf32>,
    %c12 = arith.constant 12 : index
    %c0_257 = arith.constant 0 : index
    %476 = vector.load %arg9[%c12, %c0_257] : memref<16x64xf32, #tpu.memory_space<vmem>>, vector<1x64xf32>
    %477 = vector.broadcast %476 : vector<1x64xf32> to vector<8x64xf32>
    %478 = arith.mulf %66, %477 : vector<8x64xf32>
    %479 = math.exp %478 : vector<8x64xf32>
    %c0_258 = arith.constant 0 : index
    %c4_259 = arith.constant 4 : index
    %c0_260 = arith.constant 0 : index
    %480 = vector.load %arg15[%c0_258, %c4_259, %c0_260] : memref<8x8x64xf32, #tpu.memory_space<vmem>>, vector<8x1x64xf32>
    %481 = vector.shape_cast %480 : vector<8x1x64xf32> to vector<8x64xf32>
    %482 = vector.shape_cast %479 : vector<8x64xf32> to vector<8x1x64xf32>
    tpu.vector_store %arg15[%c0_258, %c4_259, %c0_260], %482 {strides = array<i32>} : memref<8x8x64xf32, #tpu.memory_space<vmem>>, vector<8x1x64xf32>,
    %483 = vector.extract_strided_slice %45 {offsets = [0, 12], sizes = [8, 1], strides = [1, 1]} : vector<8x16xf32> to vector<8x1xf32>
    %484 = vector.broadcast %483 : vector<8x1xf32> to vector<8x64xf32>
    %485 = arith.mulf %484, %67 : vector<8x64xf32>
    %c0_261 = arith.constant 0 : index
    %c4_262 = arith.constant 4 : index
    %c0_263 = arith.constant 0 : index
    %486 = vector.load %arg16[%c0_261, %c4_262, %c0_263] : memref<8x8x64xf32, #tpu.memory_space<vmem>>, vector<8x1x64xf32>
    %487 = vector.shape_cast %486 : vector<8x1x64xf32> to vector<8x64xf32>
    %488 = vector.shape_cast %485 : vector<8x64xf32> to vector<8x1x64xf32>
    tpu.vector_store %arg16[%c0_261, %c4_262, %c0_263], %488 {strides = array<i32>} : memref<8x8x64xf32, #tpu.memory_space<vmem>>, vector<8x1x64xf32>,
    %489 = vector.extract_strided_slice %46 {offsets = [0, 12], sizes = [8, 1], strides = [1, 1]} : vector<8x16xf32> to vector<8x1xf32>
    %490 = vector.shape_cast %489 : vector<8x1xf32> to vector<8x1xf32>
    %491 = vector.broadcast %490 : vector<8x1xf32> to vector<8x64xf32>
    %c0_264 = arith.constant 0 : index
    %c4_265 = arith.constant 4 : index
    %c0_266 = arith.constant 0 : index
    %492 = vector.load %arg17[%c0_264, %c4_265, %c0_266] : memref<8x8x64xf32, #tpu.memory_space<vmem>>, vector<8x1x64xf32>
    %493 = vector.shape_cast %492 : vector<8x1x64xf32> to vector<8x64xf32>
    %494 = vector.shape_cast %491 : vector<8x64xf32> to vector<8x1x64xf32>
    tpu.vector_store %arg17[%c0_264, %c4_265, %c0_266], %494 {strides = array<i32>} : memref<8x8x64xf32, #tpu.memory_space<vmem>>, vector<8x1x64xf32>,
    %c13_267 = arith.constant 13 : index
    %c0_268 = arith.constant 0 : index
    %495 = vector.load %arg9[%c13_267, %c0_268] : memref<16x64xf32, #tpu.memory_space<vmem>>, vector<1x64xf32>
    %496 = vector.broadcast %495 : vector<1x64xf32> to vector<8x64xf32>
    %497 = arith.mulf %66, %496 : vector<8x64xf32>
    %498 = math.exp %497 : vector<8x64xf32>
    %c0_269 = arith.constant 0 : index
    %c5_270 = arith.constant 5 : index
    %c0_271 = arith.constant 0 : index
    %499 = vector.load %arg15[%c0_269, %c5_270, %c0_271] : memref<8x8x64xf32, #tpu.memory_space<vmem>>, vector<8x1x64xf32>
    %500 = vector.shape_cast %499 : vector<8x1x64xf32> to vector<8x64xf32>
    %501 = vector.shape_cast %498 : vector<8x64xf32> to vector<8x1x64xf32>
    tpu.vector_store %arg15[%c0_269, %c5_270, %c0_271], %501 {strides = array<i32>} : memref<8x8x64xf32, #tpu.memory_space<vmem>>, vector<8x1x64xf32>,
    %502 = vector.extract_strided_slice %45 {offsets = [0, 13], sizes = [8, 1], strides = [1, 1]} : vector<8x16xf32> to vector<8x1xf32>
    %503 = vector.broadcast %502 : vector<8x1xf32> to vector<8x64xf32>
    %504 = arith.mulf %503, %67 : vector<8x64xf32>
    %c0_272 = arith.constant 0 : index
    %c5_273 = arith.constant 5 : index
    %c0_274 = arith.constant 0 : index
    %505 = vector.load %arg16[%c0_272, %c5_273, %c0_274] : memref<8x8x64xf32, #tpu.memory_space<vmem>>, vector<8x1x64xf32>
    %506 = vector.shape_cast %505 : vector<8x1x64xf32> to vector<8x64xf32>
    %507 = vector.shape_cast %504 : vector<8x64xf32> to vector<8x1x64xf32>
    tpu.vector_store %arg16[%c0_272, %c5_273, %c0_274], %507 {strides = array<i32>} : memref<8x8x64xf32, #tpu.memory_space<vmem>>, vector<8x1x64xf32>,
    %508 = vector.extract_strided_slice %46 {offsets = [0, 13], sizes = [8, 1], strides = [1, 1]} : vector<8x16xf32> to vector<8x1xf32>
    %509 = vector.shape_cast %508 : vector<8x1xf32> to vector<8x1xf32>
    %510 = vector.broadcast %509 : vector<8x1xf32> to vector<8x64xf32>
    %c0_275 = arith.constant 0 : index
    %c5_276 = arith.constant 5 : index
    %c0_277 = arith.constant 0 : index
    %511 = vector.load %arg17[%c0_275, %c5_276, %c0_277] : memref<8x8x64xf32, #tpu.memory_space<vmem>>, vector<8x1x64xf32>
    %512 = vector.shape_cast %511 : vector<8x1x64xf32> to vector<8x64xf32>
    %513 = vector.shape_cast %510 : vector<8x64xf32> to vector<8x1x64xf32>
    tpu.vector_store %arg17[%c0_275, %c5_276, %c0_277], %513 {strides = array<i32>} : memref<8x8x64xf32, #tpu.memory_space<vmem>>, vector<8x1x64xf32>,
    %c14 = arith.constant 14 : index
    %c0_278 = arith.constant 0 : index
    %514 = vector.load %arg9[%c14, %c0_278] : memref<16x64xf32, #tpu.memory_space<vmem>>, vector<1x64xf32>
    %515 = vector.broadcast %514 : vector<1x64xf32> to vector<8x64xf32>
    %516 = arith.mulf %66, %515 : vector<8x64xf32>
    %517 = math.exp %516 : vector<8x64xf32>
    %c0_279 = arith.constant 0 : index
    %c6_280 = arith.constant 6 : index
    %c0_281 = arith.constant 0 : index
    %518 = vector.load %arg15[%c0_279, %c6_280, %c0_281] : memref<8x8x64xf32, #tpu.memory_space<vmem>>, vector<8x1x64xf32>
    %519 = vector.shape_cast %518 : vector<8x1x64xf32> to vector<8x64xf32>
    %520 = vector.shape_cast %517 : vector<8x64xf32> to vector<8x1x64xf32>
    tpu.vector_store %arg15[%c0_279, %c6_280, %c0_281], %520 {strides = array<i32>} : memref<8x8x64xf32, #tpu.memory_space<vmem>>, vector<8x1x64xf32>,
    %521 = vector.extract_strided_slice %45 {offsets = [0, 14], sizes = [8, 1], strides = [1, 1]} : vector<8x16xf32> to vector<8x1xf32>
    %522 = vector.broadcast %521 : vector<8x1xf32> to vector<8x64xf32>
    %523 = arith.mulf %522, %67 : vector<8x64xf32>
    %c0_282 = arith.constant 0 : index
    %c6_283 = arith.constant 6 : index
    %c0_284 = arith.constant 0 : index
    %524 = vector.load %arg16[%c0_282, %c6_283, %c0_284] : memref<8x8x64xf32, #tpu.memory_space<vmem>>, vector<8x1x64xf32>
    %525 = vector.shape_cast %524 : vector<8x1x64xf32> to vector<8x64xf32>
    %526 = vector.shape_cast %523 : vector<8x64xf32> to vector<8x1x64xf32>
    tpu.vector_store %arg16[%c0_282, %c6_283, %c0_284], %526 {strides = array<i32>} : memref<8x8x64xf32, #tpu.memory_space<vmem>>, vector<8x1x64xf32>,
    %527 = vector.extract_strided_slice %46 {offsets = [0, 14], sizes = [8, 1], strides = [1, 1]} : vector<8x16xf32> to vector<8x1xf32>
    %528 = vector.shape_cast %527 : vector<8x1xf32> to vector<8x1xf32>
    %529 = vector.broadcast %528 : vector<8x1xf32> to vector<8x64xf32>
    %c0_285 = arith.constant 0 : index
    %c6_286 = arith.constant 6 : index
    %c0_287 = arith.constant 0 : index
    %530 = vector.load %arg17[%c0_285, %c6_286, %c0_287] : memref<8x8x64xf32, #tpu.memory_space<vmem>>, vector<8x1x64xf32>
    %531 = vector.shape_cast %530 : vector<8x1x64xf32> to vector<8x64xf32>
    %532 = vector.shape_cast %529 : vector<8x64xf32> to vector<8x1x64xf32>
    tpu.vector_store %arg17[%c0_285, %c6_286, %c0_287], %532 {strides = array<i32>} : memref<8x8x64xf32, #tpu.memory_space<vmem>>, vector<8x1x64xf32>,
    %c15 = arith.constant 15 : index
    %c0_288 = arith.constant 0 : index
    %533 = vector.load %arg9[%c15, %c0_288] : memref<16x64xf32, #tpu.memory_space<vmem>>, vector<1x64xf32>
    %534 = vector.broadcast %533 : vector<1x64xf32> to vector<8x64xf32>
    %535 = arith.mulf %66, %534 : vector<8x64xf32>
    %536 = math.exp %535 : vector<8x64xf32>
    %c0_289 = arith.constant 0 : index
    %c7_290 = arith.constant 7 : index
    %c0_291 = arith.constant 0 : index
    %537 = vector.load %arg15[%c0_289, %c7_290, %c0_291] : memref<8x8x64xf32, #tpu.memory_space<vmem>>, vector<8x1x64xf32>
    %538 = vector.shape_cast %537 : vector<8x1x64xf32> to vector<8x64xf32>
    %539 = vector.shape_cast %536 : vector<8x64xf32> to vector<8x1x64xf32>
    tpu.vector_store %arg15[%c0_289, %c7_290, %c0_291], %539 {strides = array<i32>} : memref<8x8x64xf32, #tpu.memory_space<vmem>>, vector<8x1x64xf32>,
    %540 = vector.extract_strided_slice %45 {offsets = [0, 15], sizes = [8, 1], strides = [1, 1]} : vector<8x16xf32> to vector<8x1xf32>
    %541 = vector.broadcast %540 : vector<8x1xf32> to vector<8x64xf32>
    %542 = arith.mulf %541, %67 : vector<8x64xf32>
    %c0_292 = arith.constant 0 : index
    %c7_293 = arith.constant 7 : index
    %c0_294 = arith.constant 0 : index
    %543 = vector.load %arg16[%c0_292, %c7_293, %c0_294] : memref<8x8x64xf32, #tpu.memory_space<vmem>>, vector<8x1x64xf32>
    %544 = vector.shape_cast %543 : vector<8x1x64xf32> to vector<8x64xf32>
    %545 = vector.shape_cast %542 : vector<8x64xf32> to vector<8x1x64xf32>
    tpu.vector_store %arg16[%c0_292, %c7_293, %c0_294], %545 {strides = array<i32>} : memref<8x8x64xf32, #tpu.memory_space<vmem>>, vector<8x1x64xf32>,
    %546 = vector.extract_strided_slice %46 {offsets = [0, 15], sizes = [8, 1], strides = [1, 1]} : vector<8x16xf32> to vector<8x1xf32>
    %547 = vector.shape_cast %546 : vector<8x1xf32> to vector<8x1xf32>
    %548 = vector.broadcast %547 : vector<8x1xf32> to vector<8x64xf32>
    %c0_295 = arith.constant 0 : index
    %c7_296 = arith.constant 7 : index
    %c0_297 = arith.constant 0 : index
    %549 = vector.load %arg17[%c0_295, %c7_296, %c0_297] : memref<8x8x64xf32, #tpu.memory_space<vmem>>, vector<8x1x64xf32>
    %550 = vector.shape_cast %549 : vector<8x1x64xf32> to vector<8x64xf32>
    %551 = vector.shape_cast %548 : vector<8x64xf32> to vector<8x1x64xf32>
    tpu.vector_store %arg17[%c0_295, %c7_296, %c0_297], %551 {strides = array<i32>} : memref<8x8x64xf32, #tpu.memory_space<vmem>>, vector<8x1x64xf32>,
    %c8_298 = arith.constant 8 : index
    %c0_299 = arith.constant 0 : index
    %552 = vector.load %arg13[%c8_298, %c0_299] : memref<16x64xf32, #tpu.memory_space<vmem>>, vector<8x64xf32>
    %c0_i32_300 = arith.constant 0 : i32
    %553 = arith.index_cast %c0_i32_300 : i32 to index
    %c0_301 = arith.constant 0 : index
    %c0_302 = arith.constant 0 : index
    %554 = vector.load %arg15[%553, %c0_301, %c0_302] : memref<8x8x64xf32, #tpu.memory_space<vmem>>, vector<1x8x64xf32>
    %555 = vector.shape_cast %554 : vector<1x8x64xf32> to vector<8x64xf32>
    %556 = arith.mulf %555, %552 : vector<8x64xf32>
    %557 = arith.index_cast %c0_i32_300 : i32 to index
    %c0_303 = arith.constant 0 : index
    %c0_304 = arith.constant 0 : index
    %558 = vector.load %arg16[%557, %c0_303, %c0_304] : memref<8x8x64xf32, #tpu.memory_space<vmem>>, vector<1x8x64xf32>
    %559 = vector.shape_cast %558 : vector<1x8x64xf32> to vector<8x64xf32>
    %560 = arith.addf %556, %559 : vector<8x64xf32>
    %561 = arith.index_cast %c0_i32_300 : i32 to index
    %c0_305 = arith.constant 0 : index
    %c0_306 = arith.constant 0 : index
    %562 = vector.load %arg18[%561, %c0_305, %c0_306] : memref<8x1x64xf32, #tpu.memory_space<vmem>>, vector<1x1x64xf32>
    %563 = vector.shape_cast %562 : vector<1x1x64xf32> to vector<1x64xf32>
    %564 = arith.index_cast %c0_i32_300 : i32 to index
    %c0_307 = arith.constant 0 : index
    %c0_308 = arith.constant 0 : index
    %565 = vector.load %arg17[%564, %c0_307, %c0_308] : memref<8x8x64xf32, #tpu.memory_space<vmem>>, vector<1x8x64xf32>
    %566 = vector.shape_cast %565 : vector<1x8x64xf32> to vector<8x64xf32>
    %567 = arith.mulf %566, %560 : vector<8x64xf32>
    %cst_309 = arith.constant dense<0.000000e+00> : vector<64xf32>
    %568 = vector.multi_reduction <add>, %567, %cst_309 [0] : vector<8x64xf32> to vector<64xf32>
    %569 = vector.shape_cast %568 : vector<64xf32> to vector<1x64xf32>
    %570 = arith.addf %563, %569 : vector<1x64xf32>
    %571 = arith.index_cast %c0_i32_300 : i32 to index
    %c0_310 = arith.constant 0 : index
    %c0_311 = arith.constant 0 : index
    %572 = vector.load %arg18[%571, %c0_310, %c0_311] : memref<8x1x64xf32, #tpu.memory_space<vmem>>, vector<1x1x64xf32>
    %573 = vector.shape_cast %572 : vector<1x1x64xf32> to vector<1x64xf32>
    %574 = vector.shape_cast %570 : vector<1x64xf32> to vector<1x1x64xf32>
    tpu.vector_store %arg18[%571, %c0_310, %c0_311], %574 {strides = array<i32>} : memref<8x1x64xf32, #tpu.memory_space<vmem>>, vector<1x1x64xf32>,
    %c1_i32_312 = arith.constant 1 : i32
    %575 = arith.index_cast %c1_i32_312 : i32 to index
    %c0_313 = arith.constant 0 : index
    %c0_314 = arith.constant 0 : index
    %576 = vector.load %arg15[%575, %c0_313, %c0_314] : memref<8x8x64xf32, #tpu.memory_space<vmem>>, vector<1x8x64xf32>
    %577 = vector.shape_cast %576 : vector<1x8x64xf32> to vector<8x64xf32>
    %578 = arith.mulf %577, %560 : vector<8x64xf32>
    %579 = arith.index_cast %c1_i32_312 : i32 to index
    %c0_315 = arith.constant 0 : index
    %c0_316 = arith.constant 0 : index
    %580 = vector.load %arg16[%579, %c0_315, %c0_316] : memref<8x8x64xf32, #tpu.memory_space<vmem>>, vector<1x8x64xf32>
    %581 = vector.shape_cast %580 : vector<1x8x64xf32> to vector<8x64xf32>
    %582 = arith.addf %578, %581 : vector<8x64xf32>
    %583 = arith.index_cast %c1_i32_312 : i32 to index
    %c0_317 = arith.constant 0 : index
    %c0_318 = arith.constant 0 : index
    %584 = vector.load %arg18[%583, %c0_317, %c0_318] : memref<8x1x64xf32, #tpu.memory_space<vmem>>, vector<1x1x64xf32>
    %585 = vector.shape_cast %584 : vector<1x1x64xf32> to vector<1x64xf32>
    %586 = arith.index_cast %c1_i32_312 : i32 to index
    %c0_319 = arith.constant 0 : index
    %c0_320 = arith.constant 0 : index
    %587 = vector.load %arg17[%586, %c0_319, %c0_320] : memref<8x8x64xf32, #tpu.memory_space<vmem>>, vector<1x8x64xf32>
    %588 = vector.shape_cast %587 : vector<1x8x64xf32> to vector<8x64xf32>
    %589 = arith.mulf %588, %582 : vector<8x64xf32>
    %cst_321 = arith.constant dense<0.000000e+00> : vector<64xf32>
    %590 = vector.multi_reduction <add>, %589, %cst_321 [0] : vector<8x64xf32> to vector<64xf32>
    %591 = vector.shape_cast %590 : vector<64xf32> to vector<1x64xf32>
    %592 = arith.addf %585, %591 : vector<1x64xf32>
    %593 = arith.index_cast %c1_i32_312 : i32 to index
    %c0_322 = arith.constant 0 : index
    %c0_323 = arith.constant 0 : index
    %594 = vector.load %arg18[%593, %c0_322, %c0_323] : memref<8x1x64xf32, #tpu.memory_space<vmem>>, vector<1x1x64xf32>
    %595 = vector.shape_cast %594 : vector<1x1x64xf32> to vector<1x64xf32>
    %596 = vector.shape_cast %592 : vector<1x64xf32> to vector<1x1x64xf32>
    tpu.vector_store %arg18[%593, %c0_322, %c0_323], %596 {strides = array<i32>} : memref<8x1x64xf32, #tpu.memory_space<vmem>>, vector<1x1x64xf32>,
    %c2_i32_324 = arith.constant 2 : i32
    %597 = arith.index_cast %c2_i32_324 : i32 to index
    %c0_325 = arith.constant 0 : index
    %c0_326 = arith.constant 0 : index
    %598 = vector.load %arg15[%597, %c0_325, %c0_326] : memref<8x8x64xf32, #tpu.memory_space<vmem>>, vector<1x8x64xf32>
    %599 = vector.shape_cast %598 : vector<1x8x64xf32> to vector<8x64xf32>
    %600 = arith.mulf %599, %582 : vector<8x64xf32>
    %601 = arith.index_cast %c2_i32_324 : i32 to index
    %c0_327 = arith.constant 0 : index
    %c0_328 = arith.constant 0 : index
    %602 = vector.load %arg16[%601, %c0_327, %c0_328] : memref<8x8x64xf32, #tpu.memory_space<vmem>>, vector<1x8x64xf32>
    %603 = vector.shape_cast %602 : vector<1x8x64xf32> to vector<8x64xf32>
    %604 = arith.addf %600, %603 : vector<8x64xf32>
    %605 = arith.index_cast %c2_i32_324 : i32 to index
    %c0_329 = arith.constant 0 : index
    %c0_330 = arith.constant 0 : index
    %606 = vector.load %arg18[%605, %c0_329, %c0_330] : memref<8x1x64xf32, #tpu.memory_space<vmem>>, vector<1x1x64xf32>
    %607 = vector.shape_cast %606 : vector<1x1x64xf32> to vector<1x64xf32>
    %608 = arith.index_cast %c2_i32_324 : i32 to index
    %c0_331 = arith.constant 0 : index
    %c0_332 = arith.constant 0 : index
    %609 = vector.load %arg17[%608, %c0_331, %c0_332] : memref<8x8x64xf32, #tpu.memory_space<vmem>>, vector<1x8x64xf32>
    %610 = vector.shape_cast %609 : vector<1x8x64xf32> to vector<8x64xf32>
    %611 = arith.mulf %610, %604 : vector<8x64xf32>
    %cst_333 = arith.constant dense<0.000000e+00> : vector<64xf32>
    %612 = vector.multi_reduction <add>, %611, %cst_333 [0] : vector<8x64xf32> to vector<64xf32>
    %613 = vector.shape_cast %612 : vector<64xf32> to vector<1x64xf32>
    %614 = arith.addf %607, %613 : vector<1x64xf32>
    %615 = arith.index_cast %c2_i32_324 : i32 to index
    %c0_334 = arith.constant 0 : index
    %c0_335 = arith.constant 0 : index
    %616 = vector.load %arg18[%615, %c0_334, %c0_335] : memref<8x1x64xf32, #tpu.memory_space<vmem>>, vector<1x1x64xf32>
    %617 = vector.shape_cast %616 : vector<1x1x64xf32> to vector<1x64xf32>
    %618 = vector.shape_cast %614 : vector<1x64xf32> to vector<1x1x64xf32>
    tpu.vector_store %arg18[%615, %c0_334, %c0_335], %618 {strides = array<i32>} : memref<8x1x64xf32, #tpu.memory_space<vmem>>, vector<1x1x64xf32>,
    %c3_i32_336 = arith.constant 3 : i32
    %619 = arith.index_cast %c3_i32_336 : i32 to index
    %c0_337 = arith.constant 0 : index
    %c0_338 = arith.constant 0 : index
    %620 = vector.load %arg15[%619, %c0_337, %c0_338] : memref<8x8x64xf32, #tpu.memory_space<vmem>>, vector<1x8x64xf32>
    %621 = vector.shape_cast %620 : vector<1x8x64xf32> to vector<8x64xf32>
    %622 = arith.mulf %621, %604 : vector<8x64xf32>
    %623 = arith.index_cast %c3_i32_336 : i32 to index
    %c0_339 = arith.constant 0 : index
    %c0_340 = arith.constant 0 : index
    %624 = vector.load %arg16[%623, %c0_339, %c0_340] : memref<8x8x64xf32, #tpu.memory_space<vmem>>, vector<1x8x64xf32>
    %625 = vector.shape_cast %624 : vector<1x8x64xf32> to vector<8x64xf32>
    %626 = arith.addf %622, %625 : vector<8x64xf32>
    %627 = arith.index_cast %c3_i32_336 : i32 to index
    %c0_341 = arith.constant 0 : index
    %c0_342 = arith.constant 0 : index
    %628 = vector.load %arg18[%627, %c0_341, %c0_342] : memref<8x1x64xf32, #tpu.memory_space<vmem>>, vector<1x1x64xf32>
    %629 = vector.shape_cast %628 : vector<1x1x64xf32> to vector<1x64xf32>
    %630 = arith.index_cast %c3_i32_336 : i32 to index
    %c0_343 = arith.constant 0 : index
    %c0_344 = arith.constant 0 : index
    %631 = vector.load %arg17[%630, %c0_343, %c0_344] : memref<8x8x64xf32, #tpu.memory_space<vmem>>, vector<1x8x64xf32>
    %632 = vector.shape_cast %631 : vector<1x8x64xf32> to vector<8x64xf32>
    %633 = arith.mulf %632, %626 : vector<8x64xf32>
    %cst_345 = arith.constant dense<0.000000e+00> : vector<64xf32>
    %634 = vector.multi_reduction <add>, %633, %cst_345 [0] : vector<8x64xf32> to vector<64xf32>
    %635 = vector.shape_cast %634 : vector<64xf32> to vector<1x64xf32>
    %636 = arith.addf %629, %635 : vector<1x64xf32>
    %637 = arith.index_cast %c3_i32_336 : i32 to index
    %c0_346 = arith.constant 0 : index
    %c0_347 = arith.constant 0 : index
    %638 = vector.load %arg18[%637, %c0_346, %c0_347] : memref<8x1x64xf32, #tpu.memory_space<vmem>>, vector<1x1x64xf32>
    %639 = vector.shape_cast %638 : vector<1x1x64xf32> to vector<1x64xf32>
    %640 = vector.shape_cast %636 : vector<1x64xf32> to vector<1x1x64xf32>
    tpu.vector_store %arg18[%637, %c0_346, %c0_347], %640 {strides = array<i32>} : memref<8x1x64xf32, #tpu.memory_space<vmem>>, vector<1x1x64xf32>,
    %c4_i32_348 = arith.constant 4 : i32
    %641 = arith.index_cast %c4_i32_348 : i32 to index
    %c0_349 = arith.constant 0 : index
    %c0_350 = arith.constant 0 : index
    %642 = vector.load %arg15[%641, %c0_349, %c0_350] : memref<8x8x64xf32, #tpu.memory_space<vmem>>, vector<1x8x64xf32>
    %643 = vector.shape_cast %642 : vector<1x8x64xf32> to vector<8x64xf32>
    %644 = arith.mulf %643, %626 : vector<8x64xf32>
    %645 = arith.index_cast %c4_i32_348 : i32 to index
    %c0_351 = arith.constant 0 : index
    %c0_352 = arith.constant 0 : index
    %646 = vector.load %arg16[%645, %c0_351, %c0_352] : memref<8x8x64xf32, #tpu.memory_space<vmem>>, vector<1x8x64xf32>
    %647 = vector.shape_cast %646 : vector<1x8x64xf32> to vector<8x64xf32>
    %648 = arith.addf %644, %647 : vector<8x64xf32>
    %649 = arith.index_cast %c4_i32_348 : i32 to index
    %c0_353 = arith.constant 0 : index
    %c0_354 = arith.constant 0 : index
    %650 = vector.load %arg18[%649, %c0_353, %c0_354] : memref<8x1x64xf32, #tpu.memory_space<vmem>>, vector<1x1x64xf32>
    %651 = vector.shape_cast %650 : vector<1x1x64xf32> to vector<1x64xf32>
    %652 = arith.index_cast %c4_i32_348 : i32 to index
    %c0_355 = arith.constant 0 : index
    %c0_356 = arith.constant 0 : index
    %653 = vector.load %arg17[%652, %c0_355, %c0_356] : memref<8x8x64xf32, #tpu.memory_space<vmem>>, vector<1x8x64xf32>
    %654 = vector.shape_cast %653 : vector<1x8x64xf32> to vector<8x64xf32>
    %655 = arith.mulf %654, %648 : vector<8x64xf32>
    %cst_357 = arith.constant dense<0.000000e+00> : vector<64xf32>
    %656 = vector.multi_reduction <add>, %655, %cst_357 [0] : vector<8x64xf32> to vector<64xf32>
    %657 = vector.shape_cast %656 : vector<64xf32> to vector<1x64xf32>
    %658 = arith.addf %651, %657 : vector<1x64xf32>
    %659 = arith.index_cast %c4_i32_348 : i32 to index
    %c0_358 = arith.constant 0 : index
    %c0_359 = arith.constant 0 : index
    %660 = vector.load %arg18[%659, %c0_358, %c0_359] : memref<8x1x64xf32, #tpu.memory_space<vmem>>, vector<1x1x64xf32>
    %661 = vector.shape_cast %660 : vector<1x1x64xf32> to vector<1x64xf32>
    %662 = vector.shape_cast %658 : vector<1x64xf32> to vector<1x1x64xf32>
    tpu.vector_store %arg18[%659, %c0_358, %c0_359], %662 {strides = array<i32>} : memref<8x1x64xf32, #tpu.memory_space<vmem>>, vector<1x1x64xf32>,
    %c5_i32_360 = arith.constant 5 : i32
    %663 = arith.index_cast %c5_i32_360 : i32 to index
    %c0_361 = arith.constant 0 : index
    %c0_362 = arith.constant 0 : index
    %664 = vector.load %arg15[%663, %c0_361, %c0_362] : memref<8x8x64xf32, #tpu.memory_space<vmem>>, vector<1x8x64xf32>
    %665 = vector.shape_cast %664 : vector<1x8x64xf32> to vector<8x64xf32>
    %666 = arith.mulf %665, %648 : vector<8x64xf32>
    %667 = arith.index_cast %c5_i32_360 : i32 to index
    %c0_363 = arith.constant 0 : index
    %c0_364 = arith.constant 0 : index
    %668 = vector.load %arg16[%667, %c0_363, %c0_364] : memref<8x8x64xf32, #tpu.memory_space<vmem>>, vector<1x8x64xf32>
    %669 = vector.shape_cast %668 : vector<1x8x64xf32> to vector<8x64xf32>
    %670 = arith.addf %666, %669 : vector<8x64xf32>
    %671 = arith.index_cast %c5_i32_360 : i32 to index
    %c0_365 = arith.constant 0 : index
    %c0_366 = arith.constant 0 : index
    %672 = vector.load %arg18[%671, %c0_365, %c0_366] : memref<8x1x64xf32, #tpu.memory_space<vmem>>, vector<1x1x64xf32>
    %673 = vector.shape_cast %672 : vector<1x1x64xf32> to vector<1x64xf32>
    %674 = arith.index_cast %c5_i32_360 : i32 to index
    %c0_367 = arith.constant 0 : index
    %c0_368 = arith.constant 0 : index
    %675 = vector.load %arg17[%674, %c0_367, %c0_368] : memref<8x8x64xf32, #tpu.memory_space<vmem>>, vector<1x8x64xf32>
    %676 = vector.shape_cast %675 : vector<1x8x64xf32> to vector<8x64xf32>
    %677 = arith.mulf %676, %670 : vector<8x64xf32>
    %cst_369 = arith.constant dense<0.000000e+00> : vector<64xf32>
    %678 = vector.multi_reduction <add>, %677, %cst_369 [0] : vector<8x64xf32> to vector<64xf32>
    %679 = vector.shape_cast %678 : vector<64xf32> to vector<1x64xf32>
    %680 = arith.addf %673, %679 : vector<1x64xf32>
    %681 = arith.index_cast %c5_i32_360 : i32 to index
    %c0_370 = arith.constant 0 : index
    %c0_371 = arith.constant 0 : index
    %682 = vector.load %arg18[%681, %c0_370, %c0_371] : memref<8x1x64xf32, #tpu.memory_space<vmem>>, vector<1x1x64xf32>
    %683 = vector.shape_cast %682 : vector<1x1x64xf32> to vector<1x64xf32>
    %684 = vector.shape_cast %680 : vector<1x64xf32> to vector<1x1x64xf32>
    tpu.vector_store %arg18[%681, %c0_370, %c0_371], %684 {strides = array<i32>} : memref<8x1x64xf32, #tpu.memory_space<vmem>>, vector<1x1x64xf32>,
    %c6_i32_372 = arith.constant 6 : i32
    %685 = arith.index_cast %c6_i32_372 : i32 to index
    %c0_373 = arith.constant 0 : index
    %c0_374 = arith.constant 0 : index
    %686 = vector.load %arg15[%685, %c0_373, %c0_374] : memref<8x8x64xf32, #tpu.memory_space<vmem>>, vector<1x8x64xf32>
    %687 = vector.shape_cast %686 : vector<1x8x64xf32> to vector<8x64xf32>
    %688 = arith.mulf %687, %670 : vector<8x64xf32>
    %689 = arith.index_cast %c6_i32_372 : i32 to index
    %c0_375 = arith.constant 0 : index
    %c0_376 = arith.constant 0 : index
    %690 = vector.load %arg16[%689, %c0_375, %c0_376] : memref<8x8x64xf32, #tpu.memory_space<vmem>>, vector<1x8x64xf32>
    %691 = vector.shape_cast %690 : vector<1x8x64xf32> to vector<8x64xf32>
    %692 = arith.addf %688, %691 : vector<8x64xf32>
    %693 = arith.index_cast %c6_i32_372 : i32 to index
    %c0_377 = arith.constant 0 : index
    %c0_378 = arith.constant 0 : index
    %694 = vector.load %arg18[%693, %c0_377, %c0_378] : memref<8x1x64xf32, #tpu.memory_space<vmem>>, vector<1x1x64xf32>
    %695 = vector.shape_cast %694 : vector<1x1x64xf32> to vector<1x64xf32>
    %696 = arith.index_cast %c6_i32_372 : i32 to index
    %c0_379 = arith.constant 0 : index
    %c0_380 = arith.constant 0 : index
    %697 = vector.load %arg17[%696, %c0_379, %c0_380] : memref<8x8x64xf32, #tpu.memory_space<vmem>>, vector<1x8x64xf32>
    %698 = vector.shape_cast %697 : vector<1x8x64xf32> to vector<8x64xf32>
    %699 = arith.mulf %698, %692 : vector<8x64xf32>
    %cst_381 = arith.constant dense<0.000000e+00> : vector<64xf32>
    %700 = vector.multi_reduction <add>, %699, %cst_381 [0] : vector<8x64xf32> to vector<64xf32>
    %701 = vector.shape_cast %700 : vector<64xf32> to vector<1x64xf32>
    %702 = arith.addf %695, %701 : vector<1x64xf32>
    %703 = arith.index_cast %c6_i32_372 : i32 to index
    %c0_382 = arith.constant 0 : index
    %c0_383 = arith.constant 0 : index
    %704 = vector.load %arg18[%703, %c0_382, %c0_383] : memref<8x1x64xf32, #tpu.memory_space<vmem>>, vector<1x1x64xf32>
    %705 = vector.shape_cast %704 : vector<1x1x64xf32> to vector<1x64xf32>
    %706 = vector.shape_cast %702 : vector<1x64xf32> to vector<1x1x64xf32>
    tpu.vector_store %arg18[%703, %c0_382, %c0_383], %706 {strides = array<i32>} : memref<8x1x64xf32, #tpu.memory_space<vmem>>, vector<1x1x64xf32>,
    %c7_i32_384 = arith.constant 7 : i32
    %707 = arith.index_cast %c7_i32_384 : i32 to index
    %c0_385 = arith.constant 0 : index
    %c0_386 = arith.constant 0 : index
    %708 = vector.load %arg15[%707, %c0_385, %c0_386] : memref<8x8x64xf32, #tpu.memory_space<vmem>>, vector<1x8x64xf32>
    %709 = vector.shape_cast %708 : vector<1x8x64xf32> to vector<8x64xf32>
    %710 = arith.mulf %709, %692 : vector<8x64xf32>
    %711 = arith.index_cast %c7_i32_384 : i32 to index
    %c0_387 = arith.constant 0 : index
    %c0_388 = arith.constant 0 : index
    %712 = vector.load %arg16[%711, %c0_387, %c0_388] : memref<8x8x64xf32, #tpu.memory_space<vmem>>, vector<1x8x64xf32>
    %713 = vector.shape_cast %712 : vector<1x8x64xf32> to vector<8x64xf32>
    %714 = arith.addf %710, %713 : vector<8x64xf32>
    %715 = arith.index_cast %c7_i32_384 : i32 to index
    %c0_389 = arith.constant 0 : index
    %c0_390 = arith.constant 0 : index
    %716 = vector.load %arg18[%715, %c0_389, %c0_390] : memref<8x1x64xf32, #tpu.memory_space<vmem>>, vector<1x1x64xf32>
    %717 = vector.shape_cast %716 : vector<1x1x64xf32> to vector<1x64xf32>
    %718 = arith.index_cast %c7_i32_384 : i32 to index
    %c0_391 = arith.constant 0 : index
    %c0_392 = arith.constant 0 : index
    %719 = vector.load %arg17[%718, %c0_391, %c0_392] : memref<8x8x64xf32, #tpu.memory_space<vmem>>, vector<1x8x64xf32>
    %720 = vector.shape_cast %719 : vector<1x8x64xf32> to vector<8x64xf32>
    %721 = arith.mulf %720, %714 : vector<8x64xf32>
    %cst_393 = arith.constant dense<0.000000e+00> : vector<64xf32>
    %722 = vector.multi_reduction <add>, %721, %cst_393 [0] : vector<8x64xf32> to vector<64xf32>
    %723 = vector.shape_cast %722 : vector<64xf32> to vector<1x64xf32>
    %724 = arith.addf %717, %723 : vector<1x64xf32>
    %725 = arith.index_cast %c7_i32_384 : i32 to index
    %c0_394 = arith.constant 0 : index
    %c0_395 = arith.constant 0 : index
    %726 = vector.load %arg18[%725, %c0_394, %c0_395] : memref<8x1x64xf32, #tpu.memory_space<vmem>>, vector<1x1x64xf32>
    %727 = vector.shape_cast %726 : vector<1x1x64xf32> to vector<1x64xf32>
    %728 = vector.shape_cast %724 : vector<1x64xf32> to vector<1x1x64xf32>
    tpu.vector_store %arg18[%725, %c0_394, %c0_395], %728 {strides = array<i32>} : memref<8x1x64xf32, #tpu.memory_space<vmem>>, vector<1x1x64xf32>,
    %c8_i32_396 = arith.constant 8 : i32
    %c8_397 = arith.constant 8 : index
    %c0_398 = arith.constant 0 : index
    %729 = vector.load %arg13[%c8_397, %c0_398] : memref<16x64xf32, #tpu.memory_space<vmem>>, vector<8x64xf32>
    tpu.vector_store %arg13[%c8_397, %c0_398], %714 {strides = array<i32>} : memref<16x64xf32, #tpu.memory_space<vmem>>, vector<8x64xf32>,
    %c0_399 = arith.constant 0 : index
    %c0_400 = arith.constant 0 : index
    %c0_401 = arith.constant 0 : index
    %730 = vector.load %arg18[%c0_399, %c0_400, %c0_401] : memref<8x1x64xf32, #tpu.memory_space<vmem>>, vector<8x1x64xf32>
    %731 = vector.shape_cast %730 : vector<8x1x64xf32> to vector<8x64xf32>
    %c0_402 = arith.constant 0 : index
    %c0_403 = arith.constant 0 : index
    %732 = vector.load %arg10[%c0_402, %c0_403] : memref<1x64xf32, #tpu.memory_space<vmem>>, vector<1x64xf32>
    %733 = vector.broadcast %732 : vector<1x64xf32> to vector<8x64xf32>
    %734 = arith.mulf %733, %38 : vector<8x64xf32>
    %735 = arith.addf %731, %734 : vector<8x64xf32>
    %736 = arith.negf %9 : vector<8x64xf32>
    %737 = math.exp %736 : vector<8x64xf32>
    %cst_404 = arith.constant 1.000000e+00 : f32
    %738 = vector.broadcast %cst_404 : f32 to vector<8x64xf32>
    %739 = arith.addf %738, %737 : vector<8x64xf32>
    %740 = arith.divf %738, %739 : vector<8x64xf32>
    %741 = arith.mulf %9, %740 : vector<8x64xf32>
    %742 = arith.mulf %735, %741 : vector<8x64xf32>
    %c0_405 = arith.constant 0 : index
    %c0_406 = arith.constant 0 : index
    %743 = vector.load %arg11[%c0_405, %c0_406] : memref<64x32xbf16, #tpu.memory_space<vmem>>, vector<64x32xbf16>
    %744 = arith.truncf %742 : vector<8x64xf32> to vector<8x64xbf16>
    %cst_407 = arith.constant dense<0.000000e+00> : vector<8x32xf32>
    %745 = tpu.matmul %744, %743, %cst_407 {dimension_numbers = #tpu.dot_dimension_numbers<[1], [0], [0], [1], [0, 0, 1, 1], [], []>} : vector<8x64xbf16>, vector<64x32xbf16>, vector<8x32xf32> -> vector<8x32xf32>
    %c0_408 = arith.constant 0 : index
    %c0_409 = arith.constant 0 : index
    %c0_410 = arith.constant 0 : index
    %746 = vector.load %arg12[%c0_408, %c0_409, %c0_410] : memref<1x8x32xf32, #tpu.memory_space<vmem>>, vector<1x8x32xf32>
    %747 = vector.shape_cast %746 : vector<1x8x32xf32> to vector<8x32xf32>
    %748 = vector.shape_cast %745 : vector<8x32xf32> to vector<1x8x32xf32>
    tpu.vector_store %arg12[%c0_408, %c0_409, %c0_410], %748 {strides = array<i32>} : memref<1x8x32xf32, #tpu.memory_space<vmem>>, vector<1x8x32xf32>,
    return
  }
  func.func @transform_0(%arg0: i32, %arg1: i32) -> (i32, i32, i32) {
    %c0_i32 = arith.constant 0 : i32
    %c0_i32_0 = arith.constant 0 : i32
    return %arg0, %arg1, %c0_i32 : i32, i32, i32
  }
  func.func @transform_1(%arg0: i32, %arg1: i32) -> (i32, i32) {
    %c0_i32 = arith.constant 0 : i32
    %c0_i32_0 = arith.constant 0 : i32
    %c0_i32_1 = arith.constant 0 : i32
    return %c0_i32, %c0_i32_0 : i32, i32
  }
  func.func @transform_2(%arg0: i32, %arg1: i32) -> (i32, i32) {
    %c0_i32 = arith.constant 0 : i32
    %c0_i32_0 = arith.constant 0 : i32
    %c0_i32_1 = arith.constant 0 : i32
    return %c0_i32, %c0_i32_0 : i32, i32
  }
  func.func @transform_3(%arg0: i32, %arg1: i32) -> (i32, i32) {
    %c0_i32 = arith.constant 0 : i32
    %c0_i32_0 = arith.constant 0 : i32
    %c0_i32_1 = arith.constant 0 : i32
    return %c0_i32, %c0_i32_0 : i32, i32
  }
  func.func @transform_4(%arg0: i32, %arg1: i32) -> (i32, i32) {
    %c0_i32 = arith.constant 0 : i32
    %c0_i32_0 = arith.constant 0 : i32
    %c0_i32_1 = arith.constant 0 : i32
    return %c0_i32, %c0_i32_0 : i32, i32
  }
  func.func @transform_5(%arg0: i32, %arg1: i32) -> (i32, i32) {
    %c0_i32 = arith.constant 0 : i32
    %c0_i32_0 = arith.constant 0 : i32
    %c0_i32_1 = arith.constant 0 : i32
    return %c0_i32, %c0_i32_0 : i32, i32
  }
  func.func @transform_6(%arg0: i32, %arg1: i32) -> (i32, i32) {
    %c0_i32 = arith.constant 0 : i32
    %c0_i32_0 = arith.constant 0 : i32
    %c0_i32_1 = arith.constant 0 : i32
    return %c0_i32, %c0_i32_0 : i32, i32
  }
  func.func @transform_7(%arg0: i32, %arg1: i32) -> (i32, i32) {
    %c0_i32 = arith.constant 0 : i32
    %c0_i32_0 = arith.constant 0 : i32
    %c0_i32_1 = arith.constant 0 : i32
    return %c0_i32, %c0_i32_0 : i32, i32
  }
  func.func @transform_8(%arg0: i32, %arg1: i32) -> (i32, i32) {
    %c0_i32 = arith.constant 0 : i32
    %c0_i32_0 = arith.constant 0 : i32
    %c0_i32_1 = arith.constant 0 : i32
    return %c0_i32, %c0_i32_0 : i32, i32
  }
  func.func @transform_9(%arg0: i32, %arg1: i32) -> (i32, i32) {
    %c0_i32 = arith.constant 0 : i32
    %c0_i32_0 = arith.constant 0 : i32
    %c0_i32_1 = arith.constant 0 : i32
    return %c0_i32, %c0_i32_0 : i32, i32
  }
  func.func @transform_10(%arg0: i32, %arg1: i32) -> (i32, i32, i32) {
    %c0_i32 = arith.constant 0 : i32
    %c0_i32_0 = arith.constant 0 : i32
    return %arg0, %arg1, %c0_i32 : i32, i32, i32
  }
}

</mosaic_0001>

<llo_original>
// kernel: tpu_custom_call.1
$region0: #{tpu_custom_call.1}
  #allocation0 [shape = 'u32[]', space=smem, size = 0x4, offset = 0x4, fixed_abs, tag = 'smem constant byte address 0x4 - core index']
  #allocation1 [shape = 'u32[144,128]{1,0:T(1,128)}', space=vmem, size = 0x12000, scoped, tag = 'internal scratch']
  #allocation2 [shape = 'f32[16,64]{1,0:T(8,128)}', space=vmem, size = 0x2000, scoped, tag = 'scratch operand']
  #allocation3 [shape = 'f32[16,64]{1,0:T(8,128)}', space=vmem, size = 0x2000, scoped, tag = 'scratch operand']
  #allocation4 [shape = 'f32[8,8,64]{2,1,0:T(8,128)}', space=vmem, size = 0x8000, scoped, tag = 'scratch operand']
  #allocation5 [shape = 'f32[8,8,64]{2,1,0:T(8,128)}', space=vmem, size = 0x8000, scoped, tag = 'scratch operand']
  #allocation6 [shape = 'f32[8,8,64]{2,1,0:T(8,128)}', space=vmem, size = 0x8000, scoped, tag = 'scratch operand']
  #allocation7 [shape = 'f32[8,1,64]{2,1,0:T(1,128)}', space=vmem, size = 0x1000, scoped, tag = 'scratch operand']
  %s0 = inlined_call_operand.hbm [shape: f32[2,16,32], index: 0, kind: input, shape index: {}]
  %s1 = inlined_call_operand.hbm [shape: bf16[32,128], index: 1, kind: input, shape index: {}]
  %s2 = inlined_call_operand.hbm [shape: f32[4,64], index: 2, kind: input, shape index: {}]
  %s3 = inlined_call_operand.hbm [shape: f32[1,64], index: 3, kind: input, shape index: {}]
  %s4 = inlined_call_operand.hbm [shape: bf16[64,34], index: 4, kind: input, shape index: {}]
  %s5 = inlined_call_operand.hbm [shape: bf16[2,64], index: 5, kind: input, shape index: {}]
  %s6 = inlined_call_operand.hbm [shape: f32[1,64], index: 6, kind: input, shape index: {}]
  %s7 = inlined_call_operand.hbm [shape: f32[16,64], index: 7, kind: input, shape index: {}]
  %s8 = inlined_call_operand.hbm [shape: f32[1,64], index: 8, kind: input, shape index: {}]
  %s9 = inlined_call_operand.hbm [shape: bf16[64,32], index: 9, kind: input, shape index: {}]
  %s10 = inlined_call_operand.hbm [shape: f32[2,16,32], index: 10, kind: output, shape index: {}]
  %s11 = sld [smem:[#allocation0]]
  $region117: #{tpu_custom_call.1} parent=0
    _
  %s13 = ssub.s32 1, %s11
  %s14 = scalar_select 0, %s13, %s11
  $region1: #{tpu_custom_call.1} parent=0
    #allocation8 [shape = 'u8[8192]{0}', space=vmem, size = 0x2000, scoped, tag = 'input window, operand 0']
    #allocation9 [shape = 's32[2]{0}', space=sflag, size = 0x8, scoped, tag = 'scoped memory for tpu_custom_call.1']
    #allocation10 [shape = 's32[2]{0}', space=sflag, size = 0x8, scoped, tag = 'scoped memory for tpu_custom_call.1']
    #allocation11 [shape = 'u8[8192]{0}', space=vmem, size = 0x2000, scoped, tag = 'input window, operand 1, single buffered']
    #allocation12 [shape = 's32[1]{0}', space=sflag, size = 0x4, scoped, tag = 'scoped memory for tpu_custom_call.1']
    #allocation13 [shape = 'u8[2048]{0}', space=vmem, size = 0x800, scoped, tag = 'input window, operand 2, single buffered']
    #allocation14 [shape = 'u8[512]{0}', space=vmem, size = 0x400, scoped, tag = 'input window, operand 3, single buffered']
    #allocation15 [shape = 's32[1]{0}', space=sflag, size = 0x4, scoped, tag = 'scoped memory for tpu_custom_call.1']
    #allocation16 [shape = 'u8[16384]{0}', space=vmem, size = 0x4000, scoped, tag = 'input window, operand 4, single buffered']
    #allocation17 [shape = 'u8[512]{0}', space=vmem, size = 0x400, scoped, tag = 'input window, operand 5, single buffered']
    #allocation18 [shape = 's32[1]{0}', space=sflag, size = 0x4, scoped, tag = 'scoped memory for tpu_custom_call.1']
    #allocation19 [shape = 'u8[512]{0}', space=vmem, size = 0x400, scoped, tag = 'input window, operand 6, single buffered']
    #allocation20 [shape = 'u8[8192]{0}', space=vmem, size = 0x2000, scoped, tag = 'input window, operand 7, single buffered']
    #allocation21 [shape = 's32[1]{0}', space=sflag, size = 0x4, scoped, tag = 'scoped memory for tpu_custom_call.1']
    #allocation22 [shape = 'u8[512]{0}', space=vmem, size = 0x400, scoped, tag = 'input window, operand 8, single buffered']
    #allocation23 [shape = 'u8[16384]{0}', space=vmem, size = 0x4000, scoped, tag = 'input window, operand 9, single buffered']
    #allocation24 [shape = 's32[1]{0}', space=sflag, size = 0x4, scoped, tag = 'scoped memory for tpu_custom_call.1']
    #allocation25 [shape = 'u8[8192]{0}', space=vmem, size = 0x2000, scoped, tag = 'output window, operand 0']
    %15 = vsyncpa [#allocation9], 0
    %s16 = scalar_lea.sflag [#allocation9], 1
    %17 = vsyncpa %s16, 0
    %18 = vsyncpa [#allocation12], 0
    %19 = vsyncpa [#allocation15], 0
    %20 = vsyncpa [#allocation18], 0
    %21 = vsyncpa [#allocation21], 0
    %22 = vsyncpa [#allocation24], 0
    %23 = vsyncpa [#allocation10], 0
    %s24 = scalar_lea.sflag [#allocation10], 1
    %25 = vsyncpa %s24, 0
    loop: start=0, step=1, limit=6
    $region2: #{tpu_custom_call.1} parent=1 // loop_pre_header
      _
    $region3: #{tpu_custom_call.1} parent=1 // loop_header
      %s27 = sphi 0, %s31
      %p28 = scmp.ge.s32.totalorder %s27, 6
      %s34 = sphi 0, %s46
      %s35 = sphi 0, %s42
      %s36 = sphi 0, %s34
      %s37 = sphi 0, %s35
      %s38 = sphi 0, %s36
      %s39 = sphi 0, %s37
      %s51 = sphi 0, %s53
      %s54 = sphi 0, %s51
      %s55 = sphi 0, %s54
      %s71 = sphi 0, %s55
      %s75 = sphi 0, %s75
      %s77 = sphi 0, %s75
      %s78 = sphi 0, %s77
      %s92 = sphi 0, %s78
      %s96 = sphi 0, %s96
      %s98 = sphi 0, %s96
      %s99 = sphi 0, %s98
      %s113 = sphi 0, %s99
      %s117 = sphi 0, %s117
      %s119 = sphi 0, %s117
      %s120 = sphi 0, %s119
      %s134 = sphi 0, %s120
      %s138 = sphi 0, %s138
      %s140 = sphi 0, %s138
      %s141 = sphi 0, %s140
      %s155 = sphi 0, %s141
      %s159 = sphi 0, %s159
      %s161 = sphi 0, %s159
      %s162 = sphi 0, %s161
      %s176 = sphi 0, %s162
      %s180 = sphi 0, %s180
      %s182 = sphi 0, %s180
      %s183 = sphi 0, %s182
      %s197 = sphi 0, %s183
      %s201 = sphi 0, %s201
      %s203 = sphi 0, %s201
      %s204 = sphi 0, %s203
      %s218 = sphi 0, %s204
      %s222 = sphi 0, %s222
      %s224 = sphi 0, %s222
      %s225 = sphi 0, %s224
      %s239 = sphi 0, %s225
      %s243 = sphi 0, %s243
      %s245 = sphi 0, %s243
      %s246 = sphi 0, %s245
      %s260 = sphi 0, %s246
      %s268 = sphi 0, %s270
      %s271 = sphi 0, %s268
      %s272 = sphi 0, %s271
      %s288 = sphi 0, %s272
    $region4: #{tpu_custom_call.1} parent=1 // loop_header_branch
      %30 = sbr.rel (%p28) target = $region8
    $region5: #{tpu_custom_call.1} parent=1 // loop_body
      %s32 = ssub.s32 %s27, 1
      %s33 = ssub.s32 %s27, 2
      %s40 = sadd.s32 1, %s35
      %p41 = scmp.ge.s32.totalorder %s40, 2
      %s42 = scalar_select %p41, 0, %s40
      %s43 = sadd.s32 1, %s34
      %s44 = scalar_select %p41, %s43, %s34
      %p45 = scmp.ge.s32.totalorder %s44, 2
      %s46 = scalar_select %p45, 0, %s44
      %s47 = ssub.s32 %s34, %s46
      %s48 = ssub.s32 %s35, %s42
      %s49 = sor.u32 %s47, %s48
      %p50 = scmp.eq.s32.totalorder %s49, 0
      %s52 = sadd.s32 %s51, 1
      %s53 = scalar_select %p50, %s51, %s52
      %p56 = pneg %p50
      %p57 = scmp.eq.s32.totalorder %s27, 3
      %p58 = por %p56, %p57
      %p59 = scmp.ne.s32.totalorder %s51, %s54
      %p60 = scmp.eq.s32.totalorder %s27, 0
      %p61 = por %p59, %p60
      %p62 = scmp.ne.s32.totalorder %s51, %s54
      %p63 = scmp.eq.s32.totalorder %s32, 3
      %p64 = por %p62, %p63
      %p65 = scmp.ne.s32.totalorder %s54, %s55
      %p66 = scmp.eq.s32.totalorder %s32, 0
      %p67 = por %p65, %p66
      %p68 = scmp.ne.s32.totalorder %s54, %s55
      %p69 = scmp.eq.s32.totalorder %s33, 3
      %p70 = por %p68, %p69
      %p72 = scmp.ne.s32.totalorder %s55, %s71
      %p73 = scmp.eq.s32.totalorder %s33, 0
      %p74 = por %p72, %p73
      %s76 = sadd.s32 %s75, 1
      %p79 = scmp.eq.s32.totalorder %s27, 3
      %p80 = scmp.ne.s32.totalorder %s75, %s77
      %p81 = scmp.eq.s32.totalorder %s27, 0
      %p82 = por %p80, %p81
      %p83 = scmp.ne.s32.totalorder %s75, %s77
      %p84 = scmp.eq.s32.totalorder %s32, 3
      %p85 = por %p83, %p84
      %p86 = scmp.ne.s32.totalorder %s77, %s78
      %p87 = scmp.eq.s32.totalorder %s32, 0
      %p88 = por %p86, %p87
      %p89 = scmp.ne.s32.totalorder %s77, %s78
      %p90 = scmp.eq.s32.totalorder %s33, 3
      %p91 = por %p89, %p90
      %p93 = scmp.ne.s32.totalorder %s78, %s92
      %p94 = scmp.eq.s32.totalorder %s33, 0
      %p95 = por %p93, %p94
      %s97 = sadd.s32 %s96, 1
      %p100 = scmp.eq.s32.totalorder %s27, 3
      %p101 = scmp.ne.s32.totalorder %s96, %s98
      %p102 = scmp.eq.s32.totalorder %s27, 0
      %p103 = por %p101, %p102
      %p104 = scmp.ne.s32.totalorder %s96, %s98
      %p105 = scmp.eq.s32.totalorder %s32, 3
      %p106 = por %p104, %p105
      %p107 = scmp.ne.s32.totalorder %s98, %s99
      %p108 = scmp.eq.s32.totalorder %s32, 0
      %p109 = por %p107, %p108
      %p110 = scmp.ne.s32.totalorder %s98, %s99
      %p111 = scmp.eq.s32.totalorder %s33, 3
      %p112 = por %p110, %p111
      %p114 = scmp.ne.s32.totalorder %s99, %s113
      %p115 = scmp.eq.s32.totalorder %s33, 0
      %p116 = por %p114, %p115
      %s118 = sadd.s32 %s117, 1
      %p121 = scmp.eq.s32.totalorder %s27, 3
      %p122 = scmp.ne.s32.totalorder %s117, %s119
      %p123 = scmp.eq.s32.totalorder %s27, 0
      %p124 = por %p122, %p123
      %p125 = scmp.ne.s32.totalorder %s117, %s119
      %p126 = scmp.eq.s32.totalorder %s32, 3
      %p127 = por %p125, %p126
      %p128 = scmp.ne.s32.totalorder %s119, %s120
      %p129 = scmp.eq.s32.totalorder %s32, 0
      %p130 = por %p128, %p129
      %p131 = scmp.ne.s32.totalorder %s119, %s120
      %p132 = scmp.eq.s32.totalorder %s33, 3
      %p133 = por %p131, %p132
      %p135 = scmp.ne.s32.totalorder %s120, %s134
      %p136 = scmp.eq.s32.totalorder %s33, 0
      %p137 = por %p135, %p136
      %s139 = sadd.s32 %s138, 1
      %p142 = scmp.eq.s32.totalorder %s27, 3
      %p143 = scmp.ne.s32.totalorder %s138, %s140
      %p144 = scmp.eq.s32.totalorder %s27, 0
      %p145 = por %p143, %p144
      %p146 = scmp.ne.s32.totalorder %s138, %s140
      %p147 = scmp.eq.s32.totalorder %s32, 3
      %p148 = por %p146, %p147
      %p149 = scmp.ne.s32.totalorder %s140, %s141
      %p150 = scmp.eq.s32.totalorder %s32, 0
      %p151 = por %p149, %p150
      %p152 = scmp.ne.s32.totalorder %s140, %s141
      %p153 = scmp.eq.s32.totalorder %s33, 3
      %p154 = por %p152, %p153
      %p156 = scmp.ne.s32.totalorder %s141, %s155
      %p157 = scmp.eq.s32.totalorder %s33, 0
      %p158 = por %p156, %p157
      %s160 = sadd.s32 %s159, 1
      %p163 = scmp.eq.s32.totalorder %s27, 3
      %p164 = scmp.ne.s32.totalorder %s159, %s161
      %p165 = scmp.eq.s32.totalorder %s27, 0
      %p166 = por %p164, %p165
      %p167 = scmp.ne.s32.totalorder %s159, %s161
      %p168 = scmp.eq.s32.totalorder %s32, 3
      %p169 = por %p167, %p168
      %p170 = scmp.ne.s32.totalorder %s161, %s162
      %p171 = scmp.eq.s32.totalorder %s32, 0
      %p172 = por %p170, %p171
      %p173 = scmp.ne.s32.totalorder %s161, %s162
      %p174 = scmp.eq.s32.totalorder %s33, 3
      %p175 = por %p173, %p174
      %p177 = scmp.ne.s32.totalorder %s162, %s176
      %p178 = scmp.eq.s32.totalorder %s33, 0
      %p179 = por %p177, %p178
      %s181 = sadd.s32 %s180, 1
      %p184 = scmp.eq.s32.totalorder %s27, 3
      %p185 = scmp.ne.s32.totalorder %s180, %s182
      %p186 = scmp.eq.s32.totalorder %s27, 0
      %p187 = por %p185, %p186
      %p188 = scmp.ne.s32.totalorder %s180, %s182
      %p189 = scmp.eq.s32.totalorder %s32, 3
      %p190 = por %p188, %p189
      %p191 = scmp.ne.s32.totalorder %s182, %s183
      %p192 = scmp.eq.s32.totalorder %s32, 0
      %p193 = por %p191, %p192
      %p194 = scmp.ne.s32.totalorder %s182, %s183
      %p195 = scmp.eq.s32.totalorder %s33, 3
      %p196 = por %p194, %p195
      %p198 = scmp.ne.s32.totalorder %s183, %s197
      %p199 = scmp.eq.s32.totalorder %s33, 0
      %p200 = por %p198, %p199
      %s202 = sadd.s32 %s201, 1
      %p205 = scmp.eq.s32.totalorder %s27, 3
      %p206 = scmp.ne.s32.totalorder %s201, %s203
      %p207 = scmp.eq.s32.totalorder %s27, 0
      %p208 = por %p206, %p207
      %p209 = scmp.ne.s32.totalorder %s201, %s203
      %p210 = scmp.eq.s32.totalorder %s32, 3
      %p211 = por %p209, %p210
      %p212 = scmp.ne.s32.totalorder %s203, %s204
      %p213 = scmp.eq.s32.totalorder %s32, 0
      %p214 = por %p212, %p213
      %p215 = scmp.ne.s32.totalorder %s203, %s204
      %p216 = scmp.eq.s32.totalorder %s33, 3
      %p217 = por %p215, %p216
      %p219 = scmp.ne.s32.totalorder %s204, %s218
      %p220 = scmp.eq.s32.totalorder %s33, 0
      %p221 = por %p219, %p220
      %s223 = sadd.s32 %s222, 1
      %p226 = scmp.eq.s32.totalorder %s27, 3
      %p227 = scmp.ne.s32.totalorder %s222, %s224
      %p228 = scmp.eq.s32.totalorder %s27, 0
      %p229 = por %p227, %p228
      %p230 = scmp.ne.s32.totalorder %s222, %s224
      %p231 = scmp.eq.s32.totalorder %s32, 3
      %p232 = por %p230, %p231
      %p233 = scmp.ne.s32.totalorder %s224, %s225
      %p234 = scmp.eq.s32.totalorder %s32, 0
      %p235 = por %p233, %p234
      %p236 = scmp.ne.s32.totalorder %s224, %s225
      %p237 = scmp.eq.s32.totalorder %s33, 3
      %p238 = por %p236, %p237
      %p240 = scmp.ne.s32.totalorder %s225, %s239
      %p241 = scmp.eq.s32.totalorder %s33, 0
      %p242 = por %p240, %p241
      %s244 = sadd.s32 %s243, 1
      %p247 = scmp.eq.s32.totalorder %s27, 3
      %p248 = scmp.ne.s32.totalorder %s243, %s245
      %p249 = scmp.eq.s32.totalorder %s27, 0
      %p250 = por %p248, %p249
      %p251 = scmp.ne.s32.totalorder %s243, %s245
      %p252 = scmp.eq.s32.totalorder %s32, 3
      %p253 = por %p251, %p252
      %p254 = scmp.ne.s32.totalorder %s245, %s246
      %p255 = scmp.eq.s32.totalorder %s32, 0
      %p256 = por %p254, %p255
      %p257 = scmp.ne.s32.totalorder %s245, %s246
      %p258 = scmp.eq.s32.totalorder %s33, 3
      %p259 = por %p257, %p258
      %p261 = scmp.ne.s32.totalorder %s246, %s260
      %p262 = scmp.eq.s32.totalorder %s33, 0
      %p263 = por %p261, %p262
      %s264 = ssub.s32 %s34, %s46
      %s265 = ssub.s32 %s35, %s42
      %s266 = sor.u32 %s264, %s265
      %p267 = scmp.eq.s32.totalorder %s266, 0
      %s269 = sadd.s32 %s268, 1
      %s270 = scalar_select %p267, %s268, %s269
      %p273 = pneg %p267
      %p274 = scmp.eq.s32.totalorder %s27, 3
      %p275 = por %p273, %p274
      %p276 = scmp.ne.s32.totalorder %s268, %s271
      %p277 = scmp.eq.s32.totalorder %s27, 0
      %p278 = por %p276, %p277
      %p279 = scmp.ne.s32.totalorder %s268, %s271
      %p280 = scmp.eq.s32.totalorder %s32, 3
      %p281 = por %p279, %p280
      %p282 = scmp.ne.s32.totalorder %s271, %s272
      %p283 = scmp.eq.s32.totalorder %s32, 0
      %p284 = por %p282, %p283
      %p285 = scmp.ne.s32.totalorder %s271, %s272
      %p286 = scmp.eq.s32.totalorder %s33, 3
      %p287 = por %p285, %p286
      %p289 = scmp.ne.s32.totalorder %s272, %s288
      %p290 = scmp.eq.s32.totalorder %s33, 0
      %p291 = por %p289, %p290
      %p292 = scmp.le.s32.totalorder 1, %s27
      %p293 = scmp.lt.s32.totalorder %s27, 5
      %p294 = pnand %p292, %p293
      %p295 = pneg %p294
      // Predicated region
      $region9: #{tpu_custom_call.1} parent=5 // pred_check
        _
      $region10: #{tpu_custom_call.1} parent=5 // pred_check_branch
        %297 = sbr.rel (%p294) target = $region12
      $region11: #{tpu_custom_call.1} parent=5 // pred_region
        %s298 = ssub.s32 %s27, 1
        // Predicated region
        $region13: #{tpu_custom_call.1} parent=11 // pred_check
          %p299 = pneg %p88
        $region14: #{tpu_custom_call.1} parent=11 // pred_check_branch
          %301 = sbr.rel (%p299) target = $region16
        $region15: #{tpu_custom_call.1} parent=11 // pred_region
          %s303 = ssub.s32 256, 256
          %304 = vsyncadd [#allocation12], %s303
          %s305 = sshll.u32 [#allocation11], 4
          %s306 = int_to_ptr.vmem [resolvable:$true] %s305
          %311 = dma.hbm_to_vmem [thread:$0]  %s1, 256, %s306, [#allocation12], 64, 64, 4
        $region16: #{tpu_custom_call.1} parent=11 // pred_fallthru
          _
        // Predicated region
        $region17: #{tpu_custom_call.1} parent=11 // pred_check
          %p312 = pneg %p109
        $region18: #{tpu_custom_call.1} parent=11 // pred_check_branch
          %314 = sbr.rel (%p312) target = $region20
        $region19: #{tpu_custom_call.1} parent=11 // pred_region
          %s316 = ssub.s32 64, 64
          %317 = vsyncadd [#allocation12], %s316
          %s319 = sshll.u32 [#allocation13], 4
          %s320 = int_to_ptr.vmem [resolvable:$true] %s319
          %322 = dma.hbm_to_vmem [thread:$0]  %s2, 64, %s320, [#allocation12]
        $region20: #{tpu_custom_call.1} parent=11 // pred_fallthru
          _
        // Predicated region
        $region21: #{tpu_custom_call.1} parent=11 // pred_check
          %p323 = pneg %p130
        $region22: #{tpu_custom_call.1} parent=11 // pred_check_branch
          %325 = sbr.rel (%p323) target = $region24
        $region23: #{tpu_custom_call.1} parent=11 // pred_region
          %s327 = ssub.s32 16, 16
          %328 = vsyncadd [#allocation15], %s327
          %s330 = sshll.u32 [#allocation14], 4
          %s331 = int_to_ptr.vmem [resolvable:$true] %s330
          %333 = dma.hbm_to_vmem [thread:$0]  %s3, 16, %s331, [#allocation15]
        $region24: #{tpu_custom_call.1} parent=11 // pred_fallthru
          _
        // Predicated region
        $region25: #{tpu_custom_call.1} parent=11 // pred_check
          %p334 = pneg %p151
        $region26: #{tpu_custom_call.1} parent=11 // pred_check_branch
          %336 = sbr.rel (%p334) target = $region28
        $region27: #{tpu_custom_call.1} parent=11 // pred_region
          %s338 = ssub.s32 512, 512
          %339 = vsyncadd [#allocation15], %s338
          %s340 = sshll.u32 [#allocation16], 4
          %s341 = int_to_ptr.vmem [resolvable:$true] %s340
          %346 = dma.hbm_to_vmem [thread:$0]  %s4, 512, %s341, [#allocation15], 64, 64, 4
        $region28: #{tpu_custom_call.1} parent=11 // pred_fallthru
          _
        // Predicated region
        $region29: #{tpu_custom_call.1} parent=11 // pred_check
          %p347 = pneg %p172
        $region30: #{tpu_custom_call.1} parent=11 // pred_check_branch
          %349 = sbr.rel (%p347) target = $region32
        $region31: #{tpu_custom_call.1} parent=11 // pred_region
          %s351 = ssub.s32 16, 16
          %352 = vsyncadd [#allocation18], %s351
          %s354 = sshll.u32 [#allocation17], 4
          %s355 = int_to_ptr.vmem [resolvable:$true] %s354
          %357 = dma.hbm_to_vmem [thread:$0]  %s5, 16, %s355, [#allocation18]
        $region32: #{tpu_custom_call.1} parent=11 // pred_fallthru
          _
        // Predicated region
        $region33: #{tpu_custom_call.1} parent=11 // pred_check
          %p358 = pneg %p193
        $region34: #{tpu_custom_call.1} parent=11 // pred_check_branch
          %360 = sbr.rel (%p358) target = $region36
        $region35: #{tpu_custom_call.1} parent=11 // pred_region
          %s362 = ssub.s32 16, 16
          %363 = vsyncadd [#allocation18], %s362
          %s365 = sshll.u32 [#allocation19], 4
          %s366 = int_to_ptr.vmem [resolvable:$true] %s365
          %368 = dma.hbm_to_vmem [thread:$0]  %s6, 16, %s366, [#allocation18]
        $region36: #{tpu_custom_call.1} parent=11 // pred_fallthru
          _
        // Predicated region
        $region37: #{tpu_custom_call.1} parent=11 // pred_check
          %p369 = pneg %p214
        $region38: #{tpu_custom_call.1} parent=11 // pred_check_branch
          %371 = sbr.rel (%p369) target = $region40
        $region39: #{tpu_custom_call.1} parent=11 // pred_region
          %s373 = ssub.s32 256, 256
          %374 = vsyncadd [#allocation21], %s373
          %s375 = sshll.u32 [#allocation20], 4
          %s376 = int_to_ptr.vmem [resolvable:$true] %s375
          %381 = dma.hbm_to_vmem [thread:$0]  %s7, 256, %s376, [#allocation21], 128, 128, 8
        $region40: #{tpu_custom_call.1} parent=11 // pred_fallthru
          _
        // Predicated region
        $region41: #{tpu_custom_call.1} parent=11 // pred_check
          %p382 = pneg %p235
        $region42: #{tpu_custom_call.1} parent=11 // pred_check_branch
          %384 = sbr.rel (%p382) target = $region44
        $region43: #{tpu_custom_call.1} parent=11 // pred_region
          %s386 = ssub.s32 16, 16
          %387 = vsyncadd [#allocation21], %s386
          %s389 = sshll.u32 [#allocation22], 4
          %s390 = int_to_ptr.vmem [resolvable:$true] %s389
          %392 = dma.hbm_to_vmem [thread:$0]  %s8, 16, %s390, [#allocation21]
        $region44: #{tpu_custom_call.1} parent=11 // pred_fallthru
          _
        // Predicated region
        $region45: #{tpu_custom_call.1} parent=11 // pred_check
          %p393 = pneg %p256
        $region46: #{tpu_custom_call.1} parent=11 // pred_check_branch
          %395 = sbr.rel (%p393) target = $region48
        $region47: #{tpu_custom_call.1} parent=11 // pred_region
          %s397 = ssub.s32 512, 512
          %398 = vsyncadd [#allocation24], %s397
          %s399 = sshll.u32 [#allocation23], 4
          %s400 = int_to_ptr.vmem [resolvable:$true] %s399
          %405 = dma.hbm_to_vmem [thread:$0]  %s9, 512, %s400, [#allocation24], 64, 64, 4
        $region48: #{tpu_custom_call.1} parent=11 // pred_fallthru
          _
      $region12: #{tpu_custom_call.1} parent=5 // pred_fallthru
        _
      %p406 = scmp.lt.s32.totalorder %s27, 4
      // Predicated region
      $region49: #{tpu_custom_call.1} parent=5 // pred_check
        %p407 = pneg %p406
      $region50: #{tpu_custom_call.1} parent=5 // pred_check_branch
        %409 = sbr.rel (%p407) target = $region52
      $region51: #{tpu_custom_call.1} parent=5 // pred_region
        // Predicated region
        $region53: #{tpu_custom_call.1} parent=51 // pred_check
          %p410 = pneg %p61
        $region54: #{tpu_custom_call.1} parent=51 // pred_check_branch
          %412 = sbr.rel (%p410) target = $region56
        $region55: #{tpu_custom_call.1} parent=51 // pred_region
          %s413 = sand.u32 %s51, 1
          %s414 = scalar_lea.sflag [#allocation9], %s413
          %s415 = sand.u32 %s51, 1
          %s416 = smul.addr %s415, 8
          %s417 = scalar_lea.vmem [#allocation8], %s416
          %s419 = ssub.s32 128, 128
          %420 = vsyncadd %s414, %s419
          %s421 = smul.addr %s34, 2
          %s422 = sadd.s32 %s35, %s421
          %s423 = smul.addr %s422, 128
          %s424 = scalar_lea.hbm %s0, %s423
          %s426 = sshll.u32 %s417, 4
          %s427 = int_to_ptr.vmem [resolvable:$true] %s426
          %429 = dma.hbm_to_vmem [thread:$0]  %s424, 128, %s427, %s414
        $region56: #{tpu_custom_call.1} parent=51 // pred_fallthru
          _
      $region52: #{tpu_custom_call.1} parent=5 // pred_fallthru
        _
      %p430 = scmp.le.s32.totalorder 1, %s27
      %p431 = scmp.lt.s32.totalorder %s27, 5
      %p432 = pnand %p430, %p431
      %p433 = pneg %p432
      // Predicated region
      $region57: #{tpu_custom_call.1} parent=5 // pred_check
        _
      $region58: #{tpu_custom_call.1} parent=5 // pred_check_branch
        %435 = sbr.rel (%p432) target = $region60
      $region59: #{tpu_custom_call.1} parent=5 // pred_region
        %s436 = ssub.s32 %s27, 1
        %s437 = sand.u32 %s54, 1
        %s438 = scalar_lea.sflag [#allocation9], %s437
        %s439 = sand.u32 %s54, 1
        %s440 = smul.addr %s439, 8
        %s441 = scalar_lea.vmem [#allocation8], %s440
        // Predicated region
        $region61: #{tpu_custom_call.1} parent=59 // pred_check
          %p442 = pneg %p67
        $region62: #{tpu_custom_call.1} parent=59 // pred_check_branch
          %444 = sbr.rel (%p442) target = $region64
        $region63: #{tpu_custom_call.1} parent=59 // pred_region
          %445 = dma.done %s438, 128
        $region64: #{tpu_custom_call.1} parent=59 // pred_fallthru
          _
        // Predicated region
        $region65: #{tpu_custom_call.1} parent=59 // pred_check
          %p446 = pneg %p88
        $region66: #{tpu_custom_call.1} parent=59 // pred_check_branch
          %448 = sbr.rel (%p446) target = $region68
        $region67: #{tpu_custom_call.1} parent=59 // pred_region
          %449 = dma.done [#allocation12], 256
        $region68: #{tpu_custom_call.1} parent=59 // pred_fallthru
          _
        // Predicated region
        $region69: #{tpu_custom_call.1} parent=59 // pred_check
          %p450 = pneg %p109
        $region70: #{tpu_custom_call.1} parent=59 // pred_check_branch
          %452 = sbr.rel (%p450) target = $region72
        $region71: #{tpu_custom_call.1} parent=59 // pred_region
          %453 = dma.done [#allocation12], 64
        $region72: #{tpu_custom_call.1} parent=59 // pred_fallthru
          _
        // Predicated region
        $region73: #{tpu_custom_call.1} parent=59 // pred_check
          %p454 = pneg %p130
        $region74: #{tpu_custom_call.1} parent=59 // pred_check_branch
          %456 = sbr.rel (%p454) target = $region76
        $region75: #{tpu_custom_call.1} parent=59 // pred_region
          %457 = dma.done [#allocation15], 16
        $region76: #{tpu_custom_call.1} parent=59 // pred_fallthru
          _
        // Predicated region
        $region77: #{tpu_custom_call.1} parent=59 // pred_check
          %p458 = pneg %p151
        $region78: #{tpu_custom_call.1} parent=59 // pred_check_branch
          %460 = sbr.rel (%p458) target = $region80
        $region79: #{tpu_custom_call.1} parent=59 // pred_region
          %461 = dma.done [#allocation15], 512
        $region80: #{tpu_custom_call.1} parent=59 // pred_fallthru
          _
        // Predicated region
        $region81: #{tpu_custom_call.1} parent=59 // pred_check
          %p462 = pneg %p172
        $region82: #{tpu_custom_call.1} parent=59 // pred_check_branch
          %464 = sbr.rel (%p462) target = $region84
        $region83: #{tpu_custom_call.1} parent=59 // pred_region
          %465 = dma.done [#allocation18], 16
        $region84: #{tpu_custom_call.1} parent=59 // pred_fallthru
          _
        // Predicated region
        $region85: #{tpu_custom_call.1} parent=59 // pred_check
          %p466 = pneg %p193
        $region86: #{tpu_custom_call.1} parent=59 // pred_check_branch
          %468 = sbr.rel (%p466) target = $region88
        $region87: #{tpu_custom_call.1} parent=59 // pred_region
          %469 = dma.done [#allocation18], 16
        $region88: #{tpu_custom_call.1} parent=59 // pred_fallthru
          _
        // Predicated region
        $region89: #{tpu_custom_call.1} parent=59 // pred_check
          %p470 = pneg %p214
        $region90: #{tpu_custom_call.1} parent=59 // pred_check_branch
          %472 = sbr.rel (%p470) target = $region92
        $region91: #{tpu_custom_call.1} parent=59 // pred_region
          %473 = dma.done [#allocation21], 256
        $region92: #{tpu_custom_call.1} parent=59 // pred_fallthru
          _
        // Predicated region
        $region93: #{tpu_custom_call.1} parent=59 // pred_check
          %p474 = pneg %p235
        $region94: #{tpu_custom_call.1} parent=59 // pred_check_branch
          %476 = sbr.rel (%p474) target = $region96
        $region95: #{tpu_custom_call.1} parent=59 // pred_region
          %477 = dma.done [#allocation21], 16
        $region96: #{tpu_custom_call.1} parent=59 // pred_fallthru
          _
        // Predicated region
        $region97: #{tpu_custom_call.1} parent=59 // pred_check
          %p478 = pneg %p256
        $region98: #{tpu_custom_call.1} parent=59 // pred_check_branch
          %480 = sbr.rel (%p478) target = $region100
        $region99: #{tpu_custom_call.1} parent=59 // pred_region
          %481 = dma.done [#allocation24], 512
        $region100: #{tpu_custom_call.1} parent=59 // pred_fallthru
          _
        %s482 = sand.u32 %s54, 1
        %s483 = scalar_lea.sflag [#allocation9], %s482
        %s484 = sand.u32 %s54, 1
        %s485 = smul.addr %s484, 8
        %s486 = scalar_lea.vmem [#allocation8], %s485
        %p487 = pneg %p67
        %p488 = pneg %p64
        %p489 = pneg %p88
        %p490 = pneg %p85
        %p491 = pneg %p109
        %p492 = pneg %p106
        %p493 = pneg %p130
        %p494 = pneg %p127
        %p495 = pneg %p151
        %p496 = pneg %p148
        %p497 = pneg %p172
        %p498 = pneg %p169
        %p499 = pneg %p193
        %p500 = pneg %p190
        %p501 = pneg %p214
        %p502 = pneg %p211
        %p503 = pneg %p235
        %p504 = pneg %p232
        %p505 = pneg %p256
        %p506 = pneg %p253
        %p507 = pneg %p284
        %p508 = pneg %p281
        %s509 = sand.u32 %s271, 1
        %s510 = scalar_lea.sflag [#allocation10], %s509
        %s511 = sand.u32 %s271, 1
        %s512 = smul.addr %s511, 8
        %s513 = scalar_lea.vmem [#allocation25], %s512
        %p515 = scmp.eq.s32.totalorder %s37, 0
        // Predicated region
        $region101: #{tpu_custom_call.1} parent=59 // pred_check
          %p516 = pneg %p515
        $region102: #{tpu_custom_call.1} parent=59 // pred_check_branch
          %518 = sbr.rel (%p516) target = $region104
        $region103: #{tpu_custom_call.1} parent=59 // pred_region
          %vm519 = vcmask 523264
          %520 = vst.msk [vmem:[#allocation2] sm:$0xff] %vm519, 0.0
          %521 = vst.msk [vmem:[#allocation2 + $0x8] sm:$0xff] %vm519, 0.0
          %522 = vst.msk [vmem:[#allocation3] sm:$0xff] %vm519, 0.0
        $region104: #{tpu_custom_call.1} parent=59 // pred_fallthru
          _
        %v523 = vld [vmem:[%s441] sm:$0xff]
        %v524 = vld [vmem:[#allocation11] sm:$0xf]
        %v525 = vld [vmem:[#allocation11 + $0x4] sm:$0xf]
        %v526 = vld [vmem:[#allocation11 + $0x8] sm:$0xf]
        %v527 = vld [vmem:[#allocation11 + $0xc] sm:$0xf]
        %v528 = vpack.c.bf16 %v523, %v523
        %v533 = vunpack.c.l.b16 %v524
        %v534 = vunpack.c.l.b16 %v525
        %v535 = vunpack.c.l.b16 %v526
        %v536 = vunpack.c.l.b16 %v527
        %v537 = vpack.c.b16 %v534, %v533
        %v538 = vpack.c.b16 %v536, %v535
        %vm541 = vcmask 261120
        %v543 = vsel %vm541, %v528, 0
        %545 = vmatprep.subr.bf16.mxu0 0
        %546 = vmatpush1.bf16.msra.mxu0 %v537
        %547 = vmatprep.subr.bf16.mxu0 0
        %548 = vmatpush1.bf16.msra.mxu0 %v538
        %549 = vmatprep.subr.bf16.mxu0 0
        %550 = vmatpush1.bf16.msra.mxu0 0
        %551 = vmatprep.subr.bf16.mxu0 0
        %552 = vmatpush1.bf16.msra.mxu0 0
        %553 = vmatprep.subr.bf16.mxu0 0
        %554 = vmatpush1.bf16.msra.mxu0 0
        %555 = vmatprep.subr.bf16.mxu0 0
        %556 = vmatpush1.bf16.msra.mxu0 0
        %557 = vmatprep.subr.bf16.mxu0 0
        %558 = vmatpush1.bf16.msra.mxu0 0
        %559 = vmatprep.subr.bf16.mxu0 0
        %560 = vmatpush1.bf16.msra.mxu0 0
        %561 = vmatprep.subr.bf16.mxu0 0
        %562 = vmatpush1.bf16.msra.mxu0 0
        %563 = vmatprep.subr.bf16.mxu0 0
        %564 = vmatpush1.bf16.msra.mxu0 0
        %565 = vmatprep.subr.bf16.mxu0 0
        %566 = vmatpush1.bf16.msra.mxu0 0
        %567 = vmatprep.subr.bf16.mxu0 0
        %568 = vmatpush1.bf16.msra.mxu0 0
        %569 = vmatprep.subr.bf16.mxu0 0
        %570 = vmatpush1.bf16.msra.mxu0 0
        %571 = vmatprep.subr.bf16.mxu0 0
        %572 = vmatpush1.bf16.msra.mxu0 0
        %573 = vmatprep.subr.bf16.mxu0 0
        %574 = vmatpush1.bf16.msra.mxu0 0
        %575 = vmatprep.subr.bf16.mxu0 0
        %576 = vmatpush1.bf16.msra.mxu0 0
        %577 = vmatprep.mubr.bf16.mxu0 0
        %578 = vmatmul.mubr.bf16.gmra.mrb[0].mxu0 %v543
        %v579 = vpop.f32.mrb[0].mxu0
        %v580 = vadd.f32 0.0, %v579
        %v581 = vpop.f32.mrb[0].mxu0
        %v582 = vpop.f32.mrb[0].mxu0
        %v583 = vpop.f32.mrb[0].mxu0
        %584 = vdwg.mxu0
        %vm585 = vcmask 523264
        %586 = vst.msk [vmem:[#allocation3 + $0x8] sm:$0xff] %vm585, %v580
        %v587 = vld [vmem:[#allocation13] sm:$0x1]
        %v588 = vld [vmem:[#allocation3 + $0x5] sm:$0xff]
        %v589 = vlaneseq
        %v590 = vshrl.u32 %v589, 7
        %v591 = vsub.s32 0, %v590
        %v592 = vrot.slane %v587, %v591
        %v593 = vmul.f32 %v592, %v588
        %v594 = vld [vmem:[#allocation13 + $0x1] sm:$0x1]
        %v595 = vld [vmem:[#allocation3 + $0x6] sm:$0xff]
        %v596 = vlaneseq
        %v597 = vshrl.u32 %v596, 7
        %v598 = vsub.s32 0, %v597
        %v599 = vrot.slane %v594, %v598
        %v600 = vmul.f32 %v599, %v595
        %v601 = vadd.f32 %v593, %v600
        %v602 = vld [vmem:[#allocation13 + $0x2] sm:$0x1]
        %v603 = vld [vmem:[#allocation3 + $0x7] sm:$0xff]
        %v604 = vlaneseq
        %v605 = vshrl.u32 %v604, 7
        %v606 = vsub.s32 0, %v605
        %v607 = vrot.slane %v602, %v606
        %v608 = vmul.f32 %v607, %v603
        %v609 = vadd.f32 %v601, %v608
        %v610 = vld [vmem:[#allocation13 + $0x3] sm:$0x1]
        %v611 = vld [vmem:[#allocation3 + $0x8] sm:$0xff]
        %v612 = vlaneseq
        %v613 = vshrl.u32 %v612, 7
        %v614 = vsub.s32 0, %v613
        %v615 = vrot.slane %v610, %v614
        %v616 = vmul.f32 %v615, %v611
        %v617 = vadd.f32 %v609, %v616
        %v618 = vld [vmem:[#allocation14] sm:$0x1]
        %v620 = vlaneseq
        %v621 = vshrl.u32 %v620, 7
        %v622 = vsub.s32 0, %v621
        %v623 = vrot.slane %v618, %v622
        %v625 = vadd.f32 %v617, %v623
        %v626 = vxor.u32 %v625, 2147483648
        %v627 = vmul.f32 %v626, 1.442695
        %v628 = vpow.pop %v627
        %v629 = vadd.f32 %v628, 1.0
        %v630 = vrcp.pop %v629
        %v631 = vmul.f32 1.0, %v630
        %v632 = vmul.f32 %v625, %v631
        %v633 = vld [vmem:[#allocation3 + $0xd] sm:$0x7]
        %vm634 = vcmask 518144
        %635 = vst.msk [vmem:[#allocation3 + $0x5] sm:$0x7] %vm634, %v633
        %v636 = vld [vmem:[#allocation16] sm:$0xf]
        %v637 = vld [vmem:[#allocation16 + $0x4] sm:$0xf]
        %v638 = vld [vmem:[#allocation16 + $0x8] sm:$0xf]
        %v639 = vld [vmem:[#allocation16 + $0xc] sm:$0xf]
        %v640 = vld [vmem:[#allocation16 + $0x10] sm:$0xf]
        %v641 = vld [vmem:[#allocation16 + $0x14] sm:$0xf]
        %v642 = vld [vmem:[#allocation16 + $0x18] sm:$0xf]
        %v643 = vld [vmem:[#allocation16 + $0x1c] sm:$0xf]
        %v644 = vpack.c.bf16 %v632, %v632
        %v653 = vunpack.c.l.b16 %v636
        %v654 = vunpack.c.l.b16 %v637
        %v655 = vunpack.c.l.b16 %v638
        %v656 = vunpack.c.l.b16 %v639
        %v657 = vunpack.c.l.b16 %v640
        %v658 = vunpack.c.l.b16 %v641
        %v659 = vunpack.c.l.b16 %v642
        %v660 = vunpack.c.l.b16 %v643
        %v661 = vpack.c.b16 %v654, %v653
        %v662 = vpack.c.b16 %v656, %v655
        %v663 = vpack.c.b16 %v658, %v657
        %v664 = vpack.c.b16 %v660, %v659
        %v670 = vsel %vm585, %v644, 0
        %672 = vmatprep.subr.bf16.mxu0 0
        %673 = vmatpush1.bf16.msra.mxu0 %v661
        %674 = vmatprep.subr.bf16.mxu0 0
        %675 = vmatpush1.bf16.msra.mxu0 %v662
        %676 = vmatprep.subr.bf16.mxu0 0
        %677 = vmatpush1.bf16.msra.mxu0 %v663
        %678 = vmatprep.subr.bf16.mxu0 0
        %679 = vmatpush1.bf16.msra.mxu0 %v664
        %680 = vmatprep.subr.bf16.mxu0 0
        %681 = vmatpush1.bf16.msra.mxu0 0
        %682 = vmatprep.subr.bf16.mxu0 0
        %683 = vmatpush1.bf16.msra.mxu0 0
        %684 = vmatprep.subr.bf16.mxu0 0
        %685 = vmatpush1.bf16.msra.mxu0 0
        %686 = vmatprep.subr.bf16.mxu0 0
        %687 = vmatpush1.bf16.msra.mxu0 0
        %688 = vmatprep.subr.bf16.mxu0 0
        %689 = vmatpush1.bf16.msra.mxu0 0
        %690 = vmatprep.subr.bf16.mxu0 0
        %691 = vmatpush1.bf16.msra.mxu0 0
        %692 = vmatprep.subr.bf16.mxu0 0
        %693 = vmatpush1.bf16.msra.mxu0 0
        %694 = vmatprep.subr.bf16.mxu0 0
        %695 = vmatpush1.bf16.msra.mxu0 0
        %696 = vmatprep.subr.bf16.mxu0 0
        %697 = vmatpush1.bf16.msra.mxu0 0
        %698 = vmatprep.subr.bf16.mxu0 0
        %699 = vmatpush1.bf16.msra.mxu0 0
        %700 = vmatprep.subr.bf16.mxu0 0
        %701 = vmatpush1.bf16.msra.mxu0 0
        %702 = vmatprep.subr.bf16.mxu0 0
        %703 = vmatpush1.bf16.msra.mxu0 0
        %704 = vmatprep.mubr.bf16.mxu0 0
        %705 = vmatmul.mubr.bf16.gmra.mrb[0].mxu0 %v670
        %v706 = vpop.f32.mrb[0].mxu0
        %v707 = vadd.f32 0.0, %v706
        %v708 = vpop.f32.mrb[0].mxu0
        %v709 = vpop.f32.mrb[0].mxu0
        %v710 = vpop.f32.mrb[0].mxu0
        %711 = vdwg.mxu0
        %v712 = vld [vmem:[#allocation17] sm:$0x1]
        %v713 = vpack.c.bf16 %v707, %v707
        %v714 = vld [vmem:[#allocation19] sm:$0x1]
        %v716 = vlaneseq
        %v717 = vshrl.u32 %v716, 7
        %v718 = vsub.s32 0, %v717
        %v719 = vrot.slane %v714, %v718
        %vm721 = vcmask 15360
        %v723 = vsel %vm721, %v713, 0
        %vm725 = vcmask 1040384
        %v727 = vsel %vm725, %v712, 0
        %729 = vmatprep.subr.bf16.mxu0 0
        %730 = vmatpush1.bf16.msra.mxu0 %v727
        %731 = vmatprep.subr.bf16.mxu0 0
        %732 = vmatpush1.bf16.msra.mxu0 0
        %733 = vmatprep.subr.bf16.mxu0 0
        %734 = vmatpush1.bf16.msra.mxu0 0
        %735 = vmatprep.subr.bf16.mxu0 0
        %736 = vmatpush1.bf16.msra.mxu0 0
        %737 = vmatprep.subr.bf16.mxu0 0
        %738 = vmatpush1.bf16.msra.mxu0 0
        %739 = vmatprep.subr.bf16.mxu0 0
        %740 = vmatpush1.bf16.msra.mxu0 0
        %741 = vmatprep.subr.bf16.mxu0 0
        %742 = vmatpush1.bf16.msra.mxu0 0
        %743 = vmatprep.subr.bf16.mxu0 0
        %744 = vmatpush1.bf16.msra.mxu0 0
        %745 = vmatprep.subr.bf16.mxu0 0
        %746 = vmatpush1.bf16.msra.mxu0 0
        %747 = vmatprep.subr.bf16.mxu0 0
        %748 = vmatpush1.bf16.msra.mxu0 0
        %749 = vmatprep.subr.bf16.mxu0 0
        %750 = vmatpush1.bf16.msra.mxu0 0
        %751 = vmatprep.subr.bf16.mxu0 0
        %752 = vmatpush1.bf16.msra.mxu0 0
        %753 = vmatprep.subr.bf16.mxu0 0
        %754 = vmatpush1.bf16.msra.mxu0 0
        %755 = vmatprep.subr.bf16.mxu0 0
        %756 = vmatpush1.bf16.msra.mxu0 0
        %757 = vmatprep.subr.bf16.mxu0 0
        %758 = vmatpush1.bf16.msra.mxu0 0
        %759 = vmatprep.subr.bf16.mxu0 0
        %760 = vmatpush1.bf16.msra.mxu0 0
        %761 = vmatprep.mubr.bf16.mxu0 0
        %762 = vmatmul.mubr.bf16.gmra.mrb[0].mxu0 %v723
        %v763 = vpop.f32.mrb[0].mxu0
        %v764 = vadd.f32 %v719, %v763
        %v765 = vpop.f32.mrb[0].mxu0
        %v766 = vpop.f32.mrb[0].mxu0
        %v767 = vpop.f32.mrb[0].mxu0
        %768 = vdwg.mxu0
        %v769 = vmax.f32 %v764, 0.0
        %vm770 = vcmp.ne.f32.partialorder %v764, %v764
        %v771 = vadd.f32 %v764, 0.0
        %v772 = vand.u32 2147483647, %v764
        %v773 = vsub.f32 0.0, %v772
        %v774 = vmul.f32 %v773, 1.442695
        %v775 = vpow.pop %v774
        %v776 = vadd.f32 %v775, 1.0
        %v777 = vlog2.pop %v776
        %v778 = vmul.f32 %v777, 0.6931472
        %v779 = vmul.f32 -0.5, %v775
        %v780 = vadd.f32 %v779, 1.0
        %v781 = vmul.f32 %v780, %v775
        %v782 = vand.u32 2147483647, %v775
        %vm783 = vcmp.lt.f32.partialorder %v782, 0.0004427343
        %v784 = vsel %vm783, %v781, %v778
        %v785 = vadd.f32 %v769, %v784
        %v786 = vsel %vm770, %v771, %v785
        %v787 = vmul.f32 %v786, %v632
        %vm788 = vcmask 516096
        %789 = vst.msk [vmem:[#allocation7] sm:$0x1] %vm788, 0.0
        %790 = vst.msk [vmem:[#allocation7 + $0x1] sm:$0x1] %vm788, 0.0
        %791 = vst.msk [vmem:[#allocation7 + $0x2] sm:$0x1] %vm788, 0.0
        %792 = vst.msk [vmem:[#allocation7 + $0x3] sm:$0x1] %vm788, 0.0
        %793 = vst.msk [vmem:[#allocation7 + $0x4] sm:$0x1] %vm788, 0.0
        %794 = vst.msk [vmem:[#allocation7 + $0x5] sm:$0x1] %vm788, 0.0
        %795 = vst.msk [vmem:[#allocation7 + $0x6] sm:$0x1] %vm788, 0.0
        %796 = vst.msk [vmem:[#allocation7 + $0x7] sm:$0x1] %vm788, 0.0
        %v797 = vld [vmem:[#allocation20] sm:$0x1]
        %v798 = vlaneseq
        %v799 = vshrl.u32 %v798, 7
        %v800 = vsub.s32 0, %v799
        %v801 = vrot.slane %v797, %v800
        %v802 = vmul.f32 %v786, %v801
        %v803 = vmul.f32 %v802, 1.442695
        %v804 = vpow.pop %v803
        %v806 = vcombine.high %v804, %v804
        %v808 = vunpack.c.l.s4 1966171168
        %v809 = vunpack.c.0.s8 %v808
        %v810 = vlaneseq
        %v811 = vshrl.u32 %v810, 7
        %v812 = vsub.s32 %v809, %v811
        %v813 = vrot.slane %v804, %v812
        %v815 = vunpack.c.l.s4 1966171168
        %v816 = vunpack.c.0.s8 %v815
        %v817 = vlaneseq
        %v818 = vshrl.u32 %v817, 7
        %v819 = vsub.s32 %v816, %v818
        %v820 = vrot.slane %v806, %v819
        %v821 = vcombine.high %v813, %v813
        %v822 = vcombine.high %v820, %v820
        %v824 = vunpack.c.l.s4 1966171168
        %v825 = vunpack.c.0.s8 %v824
        %v826 = vlaneseq
        %v827 = vshrl.u32 %v826, 7
        %v828 = vsub.s32 %v825, %v827
        %v829 = vrot.slane %v813, %v828
        %v831 = vunpack.c.l.s4 1966171168
        %v832 = vunpack.c.0.s8 %v831
        %v833 = vlaneseq
        %v834 = vshrl.u32 %v833, 7
        %v835 = vsub.s32 %v832, %v834
        %v836 = vrot.slane %v820, %v835
        %v838 = vunpack.c.l.s4 1966171168
        %v839 = vunpack.c.0.s8 %v838
        %v840 = vlaneseq
        %v841 = vshrl.u32 %v840, 7
        %v842 = vsub.s32 %v839, %v841
        %v843 = vrot.slane %v821, %v842
        %v845 = vunpack.c.l.s4 1966171168
        %v846 = vunpack.c.0.s8 %v845
        %v847 = vlaneseq
        %v848 = vshrl.u32 %v847, 7
        %v849 = vsub.s32 %v846, %v848
        %v850 = vrot.slane %v822, %v849
        %v851 = vcombine.high %v829, %v829
        %v852 = vcombine.high %v836, %v836
        %v853 = vcombine.high %v843, %v843
        %v854 = vcombine.high %v850, %v850
        %863 = vst.msk [vmem:[#allocation4] sm:$0x1] %vm788, %v829
        %864 = vst.msk [vmem:[#allocation4 + $0x8] sm:$0x1] %vm788, %v843
        %865 = vst.msk [vmem:[#allocation4 + $0x10] sm:$0x1] %vm788, %v851
        %866 = vst.msk [vmem:[#allocation4 + $0x18] sm:$0x1] %vm788, %v853
        %867 = vst.msk [vmem:[#allocation4 + $0x20] sm:$0x1] %vm788, %v836
        %868 = vst.msk [vmem:[#allocation4 + $0x28] sm:$0x1] %vm788, %v850
        %869 = vst.msk [vmem:[#allocation4 + $0x30] sm:$0x1] %vm788, %v852
        %870 = vst.msk [vmem:[#allocation4 + $0x38] sm:$0x1] %vm788, %v854
        %872 = vset.pattern.permute.xlu0 2
        %873 = vperm.xlu0 %872, %v707
        %v874 = vpop.permute.xlu0 %873
        %v876 = vmul.f32 %v874, %v787
        %v878 = vcombine.high %v876, %v876
        %v880 = vunpack.c.l.s4 1966171168
        %v881 = vunpack.c.0.s8 %v880
        %v882 = vlaneseq
        %v883 = vshrl.u32 %v882, 7
        %v884 = vsub.s32 %v881, %v883
        %v885 = vrot.slane %v876, %v884
        %v887 = vunpack.c.l.s4 1966171168
        %v888 = vunpack.c.0.s8 %v887
        %v889 = vlaneseq
        %v890 = vshrl.u32 %v889, 7
        %v891 = vsub.s32 %v888, %v890
        %v892 = vrot.slane %v878, %v891
        %v893 = vcombine.high %v885, %v885
        %v894 = vcombine.high %v892, %v892
        %v896 = vunpack.c.l.s4 1966171168
        %v897 = vunpack.c.0.s8 %v896
        %v898 = vlaneseq
        %v899 = vshrl.u32 %v898, 7
        %v900 = vsub.s32 %v897, %v899
        %v901 = vrot.slane %v885, %v900
        %v903 = vunpack.c.l.s4 1966171168
        %v904 = vunpack.c.0.s8 %v903
        %v905 = vlaneseq
        %v906 = vshrl.u32 %v905, 7
        %v907 = vsub.s32 %v904, %v906
        %v908 = vrot.slane %v892, %v907
        %v910 = vunpack.c.l.s4 1966171168
        %v911 = vunpack.c.0.s8 %v910
        %v912 = vlaneseq
        %v913 = vshrl.u32 %v912, 7
        %v914 = vsub.s32 %v911, %v913
        %v915 = vrot.slane %v893, %v914
        %v917 = vunpack.c.l.s4 1966171168
        %v918 = vunpack.c.0.s8 %v917
        %v919 = vlaneseq
        %v920 = vshrl.u32 %v919, 7
        %v921 = vsub.s32 %v918, %v920
        %v922 = vrot.slane %v894, %v921
        %v923 = vcombine.high %v901, %v901
        %v924 = vcombine.high %v908, %v908
        %v925 = vcombine.high %v915, %v915
        %v926 = vcombine.high %v922, %v922
        %935 = vst.msk [vmem:[#allocation5] sm:$0x1] %vm788, %v901
        %936 = vst.msk [vmem:[#allocation5 + $0x8] sm:$0x1] %vm788, %v915
        %937 = vst.msk [vmem:[#allocation5 + $0x10] sm:$0x1] %vm788, %v923
        %938 = vst.msk [vmem:[#allocation5 + $0x18] sm:$0x1] %vm788, %v925
        %939 = vst.msk [vmem:[#allocation5 + $0x20] sm:$0x1] %vm788, %v908
        %940 = vst.msk [vmem:[#allocation5 + $0x28] sm:$0x1] %vm788, %v922
        %941 = vst.msk [vmem:[#allocation5 + $0x30] sm:$0x1] %vm788, %v924
        %942 = vst.msk [vmem:[#allocation5 + $0x38] sm:$0x1] %vm788, %v926
        %943 = vset.pattern.permute.xlu0 18
        %944 = vperm.xlu0 %943, %v707
        %v945 = vpop.permute.xlu0 %944
        %v946 = vlaneseq
        %v947 = vshrl.u32 %v946, 7
        %v948 = vsub.s32 0, %v947
        %v949 = vrot.slane %v945, %v948
        %v950 = vlaneseq
        %v951 = vshrl.u32 %v950, 7
        %v952 = vsub.s32 1, %v951
        %v953 = vrot.slane %v945, %v952
        %v954 = vlaneseq
        %v955 = vshrl.u32 %v954, 7
        %v956 = vsub.s32 2, %v955
        %v957 = vrot.slane %v945, %v956
        %v958 = vlaneseq
        %v959 = vshrl.u32 %v958, 7
        %v960 = vsub.s32 3, %v959
        %v961 = vrot.slane %v945, %v960
        %v962 = vlaneseq
        %v963 = vshrl.u32 %v962, 7
        %v964 = vsub.s32 4, %v963
        %v965 = vrot.slane %v945, %v964
        %v966 = vlaneseq
        %v967 = vshrl.u32 %v966, 7
        %v968 = vsub.s32 5, %v967
        %v969 = vrot.slane %v945, %v968
        %v970 = vlaneseq
        %v971 = vshrl.u32 %v970, 7
        %v972 = vsub.s32 6, %v971
        %v973 = vrot.slane %v945, %v972
        %v974 = vlaneseq
        %v975 = vshrl.u32 %v974, 7
        %v976 = vsub.s32 7, %v975
        %v977 = vrot.slane %v945, %v976
        %986 = vst.msk [vmem:[#allocation6] sm:$0x1] %vm788, %v949
        %987 = vst.msk [vmem:[#allocation6 + $0x8] sm:$0x1] %vm788, %v953
        %988 = vst.msk [vmem:[#allocation6 + $0x10] sm:$0x1] %vm788, %v957
        %989 = vst.msk [vmem:[#allocation6 + $0x18] sm:$0x1] %vm788, %v961
        %990 = vst.msk [vmem:[#allocation6 + $0x20] sm:$0x1] %vm788, %v965
        %991 = vst.msk [vmem:[#allocation6 + $0x28] sm:$0x1] %vm788, %v969
        %992 = vst.msk [vmem:[#allocation6 + $0x30] sm:$0x1] %vm788, %v973
        %993 = vst.msk [vmem:[#allocation6 + $0x38] sm:$0x1] %vm788, %v977
        %v994 = vld [vmem:[#allocation20 + $0x1] sm:$0x1]
        %v995 = vlaneseq
        %v996 = vshrl.u32 %v995, 7
        %v997 = vsub.s32 0, %v996
        %v998 = vrot.slane %v994, %v997
        %v999 = vmul.f32 %v786, %v998
        %v1000 = vmul.f32 %v999, 1.442695
        %v1001 = vpow.pop %v1000
        %v1003 = vcombine.high %v1001, %v1001
        %v1005 = vunpack.c.l.s4 1966171168
        %v1006 = vunpack.c.0.s8 %v1005
        %v1007 = vlaneseq
        %v1008 = vshrl.u32 %v1007, 7
        %v1009 = vsub.s32 %v1006, %v1008
        %v1010 = vrot.slane %v1001, %v1009
        %v1012 = vunpack.c.l.s4 1966171168
        %v1013 = vunpack.c.0.s8 %v1012
        %v1014 = vlaneseq
        %v1015 = vshrl.u32 %v1014, 7
        %v1016 = vsub.s32 %v1013, %v1015
        %v1017 = vrot.slane %v1003, %v1016
        %v1018 = vcombine.high %v1010, %v1010
        %v1019 = vcombine.high %v1017, %v1017
        %v1021 = vunpack.c.l.s4 1966171168
        %v1022 = vunpack.c.0.s8 %v1021
        %v1023 = vlaneseq
        %v1024 = vshrl.u32 %v1023, 7
        %v1025 = vsub.s32 %v1022, %v1024
        %v1026 = vrot.slane %v1010, %v1025
        %v1028 = vunpack.c.l.s4 1966171168
        %v1029 = vunpack.c.0.s8 %v1028
        %v1030 = vlaneseq
        %v1031 = vshrl.u32 %v1030, 7
        %v1032 = vsub.s32 %v1029, %v1031
        %v1033 = vrot.slane %v1017, %v1032
        %v1035 = vunpack.c.l.s4 1966171168
        %v1036 = vunpack.c.0.s8 %v1035
        %v1037 = vlaneseq
        %v1038 = vshrl.u32 %v1037, 7
        %v1039 = vsub.s32 %v1036, %v1038
        %v1040 = vrot.slane %v1018, %v1039
        %v1042 = vunpack.c.l.s4 1966171168
        %v1043 = vunpack.c.0.s8 %v1042
        %v1044 = vlaneseq
        %v1045 = vshrl.u32 %v1044, 7
        %v1046 = vsub.s32 %v1043, %v1045
        %v1047 = vrot.slane %v1019, %v1046
        %v1048 = vcombine.high %v1026, %v1026
        %v1049 = vcombine.high %v1033, %v1033
        %v1050 = vcombine.high %v1040, %v1040
        %v1051 = vcombine.high %v1047, %v1047
        %1060 = vst.msk [vmem:[#allocation4 + $0x1] sm:$0x1] %vm788, %v1026
        %1061 = vst.msk [vmem:[#allocation4 + $0x9] sm:$0x1] %vm788, %v1040
        %1062 = vst.msk [vmem:[#allocation4 + $0x11] sm:$0x1] %vm788, %v1048
        %1063 = vst.msk [vmem:[#allocation4 + $0x19] sm:$0x1] %vm788, %v1050
        %1064 = vst.msk [vmem:[#allocation4 + $0x21] sm:$0x1] %vm788, %v1033
        %1065 = vst.msk [vmem:[#allocation4 + $0x29] sm:$0x1] %vm788, %v1047
        %1066 = vst.msk [vmem:[#allocation4 + $0x31] sm:$0x1] %vm788, %v1049
        %1067 = vst.msk [vmem:[#allocation4 + $0x39] sm:$0x1] %vm788, %v1051
        %1068 = vset.pattern.permute.xlu0 3
        %1069 = vperm.xlu0 %1068, %v707
        %v1070 = vpop.permute.xlu0 %1069
        %v1072 = vmul.f32 %v1070, %v787
        %v1074 = vcombine.high %v1072, %v1072
        %v1076 = vunpack.c.l.s4 1966171168
        %v1077 = vunpack.c.0.s8 %v1076
        %v1078 = vlaneseq
        %v1079 = vshrl.u32 %v1078, 7
        %v1080 = vsub.s32 %v1077, %v1079
        %v1081 = vrot.slane %v1072, %v1080
        %v1083 = vunpack.c.l.s4 1966171168
        %v1084 = vunpack.c.0.s8 %v1083
        %v1085 = vlaneseq
        %v1086 = vshrl.u32 %v1085, 7
        %v1087 = vsub.s32 %v1084, %v1086
        %v1088 = vrot.slane %v1074, %v1087
        %v1089 = vcombine.high %v1081, %v1081
        %v1090 = vcombine.high %v1088, %v1088
        %v1092 = vunpack.c.l.s4 1966171168
        %v1093 = vunpack.c.0.s8 %v1092
        %v1094 = vlaneseq
        %v1095 = vshrl.u32 %v1094, 7
        %v1096 = vsub.s32 %v1093, %v1095
        %v1097 = vrot.slane %v1081, %v1096
        %v1099 = vunpack.c.l.s4 1966171168
        %v1100 = vunpack.c.0.s8 %v1099
        %v1101 = vlaneseq
        %v1102 = vshrl.u32 %v1101, 7
        %v1103 = vsub.s32 %v1100, %v1102
        %v1104 = vrot.slane %v1088, %v1103
        %v1106 = vunpack.c.l.s4 1966171168
        %v1107 = vunpack.c.0.s8 %v1106
        %v1108 = vlaneseq
        %v1109 = vshrl.u32 %v1108, 7
        %v1110 = vsub.s32 %v1107, %v1109
        %v1111 = vrot.slane %v1089, %v1110
        %v1113 = vunpack.c.l.s4 1966171168
        %v1114 = vunpack.c.0.s8 %v1113
        %v1115 = vlaneseq
        %v1116 = vshrl.u32 %v1115, 7
        %v1117 = vsub.s32 %v1114, %v1116
        %v1118 = vrot.slane %v1090, %v1117
        %v1119 = vcombine.high %v1097, %v1097
        %v1120 = vcombine.high %v1104, %v1104
        %v1121 = vcombine.high %v1111, %v1111
        %v1122 = vcombine.high %v1118, %v1118
        %1131 = vst.msk [vmem:[#allocation5 + $0x1] sm:$0x1] %vm788, %v1097
        %1132 = vst.msk [vmem:[#allocation5 + $0x9] sm:$0x1] %vm788, %v1111
        %1133 = vst.msk [vmem:[#allocation5 + $0x11] sm:$0x1] %vm788, %v1119
        %1134 = vst.msk [vmem:[#allocation5 + $0x19] sm:$0x1] %vm788, %v1121
        %1135 = vst.msk [vmem:[#allocation5 + $0x21] sm:$0x1] %vm788, %v1104
        %1136 = vst.msk [vmem:[#allocation5 + $0x29] sm:$0x1] %vm788, %v1118
        %1137 = vst.msk [vmem:[#allocation5 + $0x31] sm:$0x1] %vm788, %v1120
        %1138 = vst.msk [vmem:[#allocation5 + $0x39] sm:$0x1] %vm788, %v1122
        %1139 = vset.pattern.permute.xlu0 19
        %1140 = vperm.xlu0 %1139, %v707
        %v1141 = vpop.permute.xlu0 %1140
        %v1142 = vlaneseq
        %v1143 = vshrl.u32 %v1142, 7
        %v1144 = vsub.s32 0, %v1143
        %v1145 = vrot.slane %v1141, %v1144
        %v1146 = vlaneseq
        %v1147 = vshrl.u32 %v1146, 7
        %v1148 = vsub.s32 1, %v1147
        %v1149 = vrot.slane %v1141, %v1148
        %v1150 = vlaneseq
        %v1151 = vshrl.u32 %v1150, 7
        %v1152 = vsub.s32 2, %v1151
        %v1153 = vrot.slane %v1141, %v1152
        %v1154 = vlaneseq
        %v1155 = vshrl.u32 %v1154, 7
        %v1156 = vsub.s32 3, %v1155
        %v1157 = vrot.slane %v1141, %v1156
        %v1158 = vlaneseq
        %v1159 = vshrl.u32 %v1158, 7
        %v1160 = vsub.s32 4, %v1159
        %v1161 = vrot.slane %v1141, %v1160
        %v1162 = vlaneseq
        %v1163 = vshrl.u32 %v1162, 7
        %v1164 = vsub.s32 5, %v1163
        %v1165 = vrot.slane %v1141, %v1164
        %v1166 = vlaneseq
        %v1167 = vshrl.u32 %v1166, 7
        %v1168 = vsub.s32 6, %v1167
        %v1169 = vrot.slane %v1141, %v1168
        %v1170 = vlaneseq
        %v1171 = vshrl.u32 %v1170, 7
        %v1172 = vsub.s32 7, %v1171
        %v1173 = vrot.slane %v1141, %v1172
        %1182 = vst.msk [vmem:[#allocation6 + $0x1] sm:$0x1] %vm788, %v1145
        %1183 = vst.msk [vmem:[#allocation6 + $0x9] sm:$0x1] %vm788, %v1149
        %1184 = vst.msk [vmem:[#allocation6 + $0x11] sm:$0x1] %vm788, %v1153
        %1185 = vst.msk [vmem:[#allocation6 + $0x19] sm:$0x1] %vm788, %v1157
        %1186 = vst.msk [vmem:[#allocation6 + $0x21] sm:$0x1] %vm788, %v1161
        %1187 = vst.msk [vmem:[#allocation6 + $0x29] sm:$0x1] %vm788, %v1165
        %1188 = vst.msk [vmem:[#allocation6 + $0x31] sm:$0x1] %vm788, %v1169
        %1189 = vst.msk [vmem:[#allocation6 + $0x39] sm:$0x1] %vm788, %v1173
        %v1190 = vld [vmem:[#allocation20 + $0x2] sm:$0x1]
        %v1191 = vlaneseq
        %v1192 = vshrl.u32 %v1191, 7
        %v1193 = vsub.s32 0, %v1192
        %v1194 = vrot.slane %v1190, %v1193
        %v1195 = vmul.f32 %v786, %v1194
        %v1196 = vmul.f32 %v1195, 1.442695
        %v1197 = vpow.pop %v1196
        %v1199 = vcombine.high %v1197, %v1197
        %v1201 = vunpack.c.l.s4 1966171168
        %v1202 = vunpack.c.0.s8 %v1201
        %v1203 = vlaneseq
        %v1204 = vshrl.u32 %v1203, 7
        %v1205 = vsub.s32 %v1202, %v1204
        %v1206 = vrot.slane %v1197, %v1205
        %v1208 = vunpack.c.l.s4 1966171168
        %v1209 = vunpack.c.0.s8 %v1208
        %v1210 = vlaneseq
        %v1211 = vshrl.u32 %v1210, 7
        %v1212 = vsub.s32 %v1209, %v1211
        %v1213 = vrot.slane %v1199, %v1212
        %v1214 = vcombine.high %v1206, %v1206
        %v1215 = vcombine.high %v1213, %v1213
        %v1217 = vunpack.c.l.s4 1966171168
        %v1218 = vunpack.c.0.s8 %v1217
        %v1219 = vlaneseq
        %v1220 = vshrl.u32 %v1219, 7
        %v1221 = vsub.s32 %v1218, %v1220
        %v1222 = vrot.slane %v1206, %v1221
        %v1224 = vunpack.c.l.s4 1966171168
        %v1225 = vunpack.c.0.s8 %v1224
        %v1226 = vlaneseq
        %v1227 = vshrl.u32 %v1226, 7
        %v1228 = vsub.s32 %v1225, %v1227
        %v1229 = vrot.slane %v1213, %v1228
        %v1231 = vunpack.c.l.s4 1966171168
        %v1232 = vunpack.c.0.s8 %v1231
        %v1233 = vlaneseq
        %v1234 = vshrl.u32 %v1233, 7
        %v1235 = vsub.s32 %v1232, %v1234
        %v1236 = vrot.slane %v1214, %v1235
        %v1238 = vunpack.c.l.s4 1966171168
        %v1239 = vunpack.c.0.s8 %v1238
        %v1240 = vlaneseq
        %v1241 = vshrl.u32 %v1240, 7
        %v1242 = vsub.s32 %v1239, %v1241
        %v1243 = vrot.slane %v1215, %v1242
        %v1244 = vcombine.high %v1222, %v1222
        %v1245 = vcombine.high %v1229, %v1229
        %v1246 = vcombine.high %v1236, %v1236
        %v1247 = vcombine.high %v1243, %v1243
        %1256 = vst.msk [vmem:[#allocation4 + $0x2] sm:$0x1] %vm788, %v1222
        %1257 = vst.msk [vmem:[#allocation4 + $0xa] sm:$0x1] %vm788, %v1236
        %1258 = vst.msk [vmem:[#allocation4 + $0x12] sm:$0x1] %vm788, %v1244
        %1259 = vst.msk [vmem:[#allocation4 + $0x1a] sm:$0x1] %vm788, %v1246
        %1260 = vst.msk [vmem:[#allocation4 + $0x22] sm:$0x1] %vm788, %v1229
        %1261 = vst.msk [vmem:[#allocation4 + $0x2a] sm:$0x1] %vm788, %v1243
        %1262 = vst.msk [vmem:[#allocation4 + $0x32] sm:$0x1] %vm788, %v1245
        %1263 = vst.msk [vmem:[#allocation4 + $0x3a] sm:$0x1] %vm788, %v1247
        %1264 = vset.pattern.permute.xlu0 4
        %1265 = vperm.xlu0 %1264, %v707
        %v1266 = vpop.permute.xlu0 %1265
        %v1268 = vmul.f32 %v1266, %v787
        %v1270 = vcombine.high %v1268, %v1268
        %v1272 = vunpack.c.l.s4 1966171168
        %v1273 = vunpack.c.0.s8 %v1272
        %v1274 = vlaneseq
        %v1275 = vshrl.u32 %v1274, 7
        %v1276 = vsub.s32 %v1273, %v1275
        %v1277 = vrot.slane %v1268, %v1276
        %v1279 = vunpack.c.l.s4 1966171168
        %v1280 = vunpack.c.0.s8 %v1279
        %v1281 = vlaneseq
        %v1282 = vshrl.u32 %v1281, 7
        %v1283 = vsub.s32 %v1280, %v1282
        %v1284 = vrot.slane %v1270, %v1283
        %v1285 = vcombine.high %v1277, %v1277
        %v1286 = vcombine.high %v1284, %v1284
        %v1288 = vunpack.c.l.s4 1966171168
        %v1289 = vunpack.c.0.s8 %v1288
        %v1290 = vlaneseq
        %v1291 = vshrl.u32 %v1290, 7
        %v1292 = vsub.s32 %v1289, %v1291
        %v1293 = vrot.slane %v1277, %v1292
        %v1295 = vunpack.c.l.s4 1966171168
        %v1296 = vunpack.c.0.s8 %v1295
        %v1297 = vlaneseq
        %v1298 = vshrl.u32 %v1297, 7
        %v1299 = vsub.s32 %v1296, %v1298
        %v1300 = vrot.slane %v1284, %v1299
        %v1302 = vunpack.c.l.s4 1966171168
        %v1303 = vunpack.c.0.s8 %v1302
        %v1304 = vlaneseq
        %v1305 = vshrl.u32 %v1304, 7
        %v1306 = vsub.s32 %v1303, %v1305
        %v1307 = vrot.slane %v1285, %v1306
        %v1309 = vunpack.c.l.s4 1966171168
        %v1310 = vunpack.c.0.s8 %v1309
        %v1311 = vlaneseq
        %v1312 = vshrl.u32 %v1311, 7
        %v1313 = vsub.s32 %v1310, %v1312
        %v1314 = vrot.slane %v1286, %v1313
        %v1315 = vcombine.high %v1293, %v1293
        %v1316 = vcombine.high %v1300, %v1300
        %v1317 = vcombine.high %v1307, %v1307
        %v1318 = vcombine.high %v1314, %v1314
        %1327 = vst.msk [vmem:[#allocation5 + $0x2] sm:$0x1] %vm788, %v1293
        %1328 = vst.msk [vmem:[#allocation5 + $0xa] sm:$0x1] %vm788, %v1307
        %1329 = vst.msk [vmem:[#allocation5 + $0x12] sm:$0x1] %vm788, %v1315
        %1330 = vst.msk [vmem:[#allocation5 + $0x1a] sm:$0x1] %vm788, %v1317
        %1331 = vst.msk [vmem:[#allocation5 + $0x22] sm:$0x1] %vm788, %v1300
        %1332 = vst.msk [vmem:[#allocation5 + $0x2a] sm:$0x1] %vm788, %v1314
        %1333 = vst.msk [vmem:[#allocation5 + $0x32] sm:$0x1] %vm788, %v1316
        %1334 = vst.msk [vmem:[#allocation5 + $0x3a] sm:$0x1] %vm788, %v1318
        %1335 = vset.pattern.permute.xlu0 20
        %1336 = vperm.xlu0 %1335, %v707
        %v1337 = vpop.permute.xlu0 %1336
        %v1338 = vlaneseq
        %v1339 = vshrl.u32 %v1338, 7
        %v1340 = vsub.s32 0, %v1339
        %v1341 = vrot.slane %v1337, %v1340
        %v1342 = vlaneseq
        %v1343 = vshrl.u32 %v1342, 7
        %v1344 = vsub.s32 1, %v1343
        %v1345 = vrot.slane %v1337, %v1344
        %v1346 = vlaneseq
        %v1347 = vshrl.u32 %v1346, 7
        %v1348 = vsub.s32 2, %v1347
        %v1349 = vrot.slane %v1337, %v1348
        %v1350 = vlaneseq
        %v1351 = vshrl.u32 %v1350, 7
        %v1352 = vsub.s32 3, %v1351
        %v1353 = vrot.slane %v1337, %v1352
        %v1354 = vlaneseq
        %v1355 = vshrl.u32 %v1354, 7
        %v1356 = vsub.s32 4, %v1355
        %v1357 = vrot.slane %v1337, %v1356
        %v1358 = vlaneseq
        %v1359 = vshrl.u32 %v1358, 7
        %v1360 = vsub.s32 5, %v1359
        %v1361 = vrot.slane %v1337, %v1360
        %v1362 = vlaneseq
        %v1363 = vshrl.u32 %v1362, 7
        %v1364 = vsub.s32 6, %v1363
        %v1365 = vrot.slane %v1337, %v1364
        %v1366 = vlaneseq
        %v1367 = vshrl.u32 %v1366, 7
        %v1368 = vsub.s32 7, %v1367
        %v1369 = vrot.slane %v1337, %v1368
        %1378 = vst.msk [vmem:[#allocation6 + $0x2] sm:$0x1] %vm788, %v1341
        %1379 = vst.msk [vmem:[#allocation6 + $0xa] sm:$0x1] %vm788, %v1345
        %1380 = vst.msk [vmem:[#allocation6 + $0x12] sm:$0x1] %vm788, %v1349
        %1381 = vst.msk [vmem:[#allocation6 + $0x1a] sm:$0x1] %vm788, %v1353
        %1382 = vst.msk [vmem:[#allocation6 + $0x22] sm:$0x1] %vm788, %v1357
        %1383 = vst.msk [vmem:[#allocation6 + $0x2a] sm:$0x1] %vm788, %v1361
        %1384 = vst.msk [vmem:[#allocation6 + $0x32] sm:$0x1] %vm788, %v1365
        %1385 = vst.msk [vmem:[#allocation6 + $0x3a] sm:$0x1] %vm788, %v1369
        %v1386 = vld [vmem:[#allocation20 + $0x3] sm:$0x1]
        %v1387 = vlaneseq
        %v1388 = vshrl.u32 %v1387, 7
        %v1389 = vsub.s32 0, %v1388
        %v1390 = vrot.slane %v1386, %v1389
        %v1391 = vmul.f32 %v786, %v1390
        %v1392 = vmul.f32 %v1391, 1.442695
        %v1393 = vpow.pop %v1392
        %v1395 = vcombine.high %v1393, %v1393
        %v1397 = vunpack.c.l.s4 1966171168
        %v1398 = vunpack.c.0.s8 %v1397
        %v1399 = vlaneseq
        %v1400 = vshrl.u32 %v1399, 7
        %v1401 = vsub.s32 %v1398, %v1400
        %v1402 = vrot.slane %v1393, %v1401
        %v1404 = vunpack.c.l.s4 1966171168
        %v1405 = vunpack.c.0.s8 %v1404
        %v1406 = vlaneseq
        %v1407 = vshrl.u32 %v1406, 7
        %v1408 = vsub.s32 %v1405, %v1407
        %v1409 = vrot.slane %v1395, %v1408
        %v1410 = vcombine.high %v1402, %v1402
        %v1411 = vcombine.high %v1409, %v1409
        %v1413 = vunpack.c.l.s4 1966171168
        %v1414 = vunpack.c.0.s8 %v1413
        %v1415 = vlaneseq
        %v1416 = vshrl.u32 %v1415, 7
        %v1417 = vsub.s32 %v1414, %v1416
        %v1418 = vrot.slane %v1402, %v1417
        %v1420 = vunpack.c.l.s4 1966171168
        %v1421 = vunpack.c.0.s8 %v1420
        %v1422 = vlaneseq
        %v1423 = vshrl.u32 %v1422, 7
        %v1424 = vsub.s32 %v1421, %v1423
        %v1425 = vrot.slane %v1409, %v1424
        %v1427 = vunpack.c.l.s4 1966171168
        %v1428 = vunpack.c.0.s8 %v1427
        %v1429 = vlaneseq
        %v1430 = vshrl.u32 %v1429, 7
        %v1431 = vsub.s32 %v1428, %v1430
        %v1432 = vrot.slane %v1410, %v1431
        %v1434 = vunpack.c.l.s4 1966171168
        %v1435 = vunpack.c.0.s8 %v1434
        %v1436 = vlaneseq
        %v1437 = vshrl.u32 %v1436, 7
        %v1438 = vsub.s32 %v1435, %v1437
        %v1439 = vrot.slane %v1411, %v1438
        %v1440 = vcombine.high %v1418, %v1418
        %v1441 = vcombine.high %v1425, %v1425
        %v1442 = vcombine.high %v1432, %v1432
        %v1443 = vcombine.high %v1439, %v1439
        %1452 = vst.msk [vmem:[#allocation4 + $0x3] sm:$0x1] %vm788, %v1418
        %1453 = vst.msk [vmem:[#allocation4 + $0xb] sm:$0x1] %vm788, %v1432
        %1454 = vst.msk [vmem:[#allocation4 + $0x13] sm:$0x1] %vm788, %v1440
        %1455 = vst.msk [vmem:[#allocation4 + $0x1b] sm:$0x1] %vm788, %v1442
        %1456 = vst.msk [vmem:[#allocation4 + $0x23] sm:$0x1] %vm788, %v1425
        %1457 = vst.msk [vmem:[#allocation4 + $0x2b] sm:$0x1] %vm788, %v1439
        %1458 = vst.msk [vmem:[#allocation4 + $0x33] sm:$0x1] %vm788, %v1441
        %1459 = vst.msk [vmem:[#allocation4 + $0x3b] sm:$0x1] %vm788, %v1443
        %1460 = vset.pattern.permute.xlu0 5
        %1461 = vperm.xlu0 %1460, %v707
        %v1462 = vpop.permute.xlu0 %1461
        %v1464 = vmul.f32 %v1462, %v787
        %v1466 = vcombine.high %v1464, %v1464
        %v1468 = vunpack.c.l.s4 1966171168
        %v1469 = vunpack.c.0.s8 %v1468
        %v1470 = vlaneseq
        %v1471 = vshrl.u32 %v1470, 7
        %v1472 = vsub.s32 %v1469, %v1471
        %v1473 = vrot.slane %v1464, %v1472
        %v1475 = vunpack.c.l.s4 1966171168
        %v1476 = vunpack.c.0.s8 %v1475
        %v1477 = vlaneseq
        %v1478 = vshrl.u32 %v1477, 7
        %v1479 = vsub.s32 %v1476, %v1478
        %v1480 = vrot.slane %v1466, %v1479
        %v1481 = vcombine.high %v1473, %v1473
        %v1482 = vcombine.high %v1480, %v1480
        %v1484 = vunpack.c.l.s4 1966171168
        %v1485 = vunpack.c.0.s8 %v1484
        %v1486 = vlaneseq
        %v1487 = vshrl.u32 %v1486, 7
        %v1488 = vsub.s32 %v1485, %v1487
        %v1489 = vrot.slane %v1473, %v1488
        %v1491 = vunpack.c.l.s4 1966171168
        %v1492 = vunpack.c.0.s8 %v1491
        %v1493 = vlaneseq
        %v1494 = vshrl.u32 %v1493, 7
        %v1495 = vsub.s32 %v1492, %v1494
        %v1496 = vrot.slane %v1480, %v1495
        %v1498 = vunpack.c.l.s4 1966171168
        %v1499 = vunpack.c.0.s8 %v1498
        %v1500 = vlaneseq
        %v1501 = vshrl.u32 %v1500, 7
        %v1502 = vsub.s32 %v1499, %v1501
        %v1503 = vrot.slane %v1481, %v1502
        %v1505 = vunpack.c.l.s4 1966171168
        %v1506 = vunpack.c.0.s8 %v1505
        %v1507 = vlaneseq
        %v1508 = vshrl.u32 %v1507, 7
        %v1509 = vsub.s32 %v1506, %v1508
        %v1510 = vrot.slane %v1482, %v1509
        %v1511 = vcombine.high %v1489, %v1489
        %v1512 = vcombine.high %v1496, %v1496
        %v1513 = vcombine.high %v1503, %v1503
        %v1514 = vcombine.high %v1510, %v1510
        %1523 = vst.msk [vmem:[#allocation5 + $0x3] sm:$0x1] %vm788, %v1489
        %1524 = vst.msk [vmem:[#allocation5 + $0xb] sm:$0x1] %vm788, %v1503
        %1525 = vst.msk [vmem:[#allocation5 + $0x13] sm:$0x1] %vm788, %v1511
        %1526 = vst.msk [vmem:[#allocation5 + $0x1b] sm:$0x1] %vm788, %v1513
        %1527 = vst.msk [vmem:[#allocation5 + $0x23] sm:$0x1] %vm788, %v1496
        %1528 = vst.msk [vmem:[#allocation5 + $0x2b] sm:$0x1] %vm788, %v1510
        %1529 = vst.msk [vmem:[#allocation5 + $0x33] sm:$0x1] %vm788, %v1512
        %1530 = vst.msk [vmem:[#allocation5 + $0x3b] sm:$0x1] %vm788, %v1514
        %1531 = vset.pattern.permute.xlu0 21
        %1532 = vperm.xlu0 %1531, %v707
        %v1533 = vpop.permute.xlu0 %1532
        %v1534 = vlaneseq
        %v1535 = vshrl.u32 %v1534, 7
        %v1536 = vsub.s32 0, %v1535
        %v1537 = vrot.slane %v1533, %v1536
        %v1538 = vlaneseq
        %v1539 = vshrl.u32 %v1538, 7
        %v1540 = vsub.s32 1, %v1539
        %v1541 = vrot.slane %v1533, %v1540
        %v1542 = vlaneseq
        %v1543 = vshrl.u32 %v1542, 7
        %v1544 = vsub.s32 2, %v1543
        %v1545 = vrot.slane %v1533, %v1544
        %v1546 = vlaneseq
        %v1547 = vshrl.u32 %v1546, 7
        %v1548 = vsub.s32 3, %v1547
        %v1549 = vrot.slane %v1533, %v1548
        %v1550 = vlaneseq
        %v1551 = vshrl.u32 %v1550, 7
        %v1552 = vsub.s32 4, %v1551
        %v1553 = vrot.slane %v1533, %v1552
        %v1554 = vlaneseq
        %v1555 = vshrl.u32 %v1554, 7
        %v1556 = vsub.s32 5, %v1555
        %v1557 = vrot.slane %v1533, %v1556
        %v1558 = vlaneseq
        %v1559 = vshrl.u32 %v1558, 7
        %v1560 = vsub.s32 6, %v1559
        %v1561 = vrot.slane %v1533, %v1560
        %v1562 = vlaneseq
        %v1563 = vshrl.u32 %v1562, 7
        %v1564 = vsub.s32 7, %v1563
        %v1565 = vrot.slane %v1533, %v1564
        %1574 = vst.msk [vmem:[#allocation6 + $0x3] sm:$0x1] %vm788, %v1537
        %1575 = vst.msk [vmem:[#allocation6 + $0xb] sm:$0x1] %vm788, %v1541
        %1576 = vst.msk [vmem:[#allocation6 + $0x13] sm:$0x1] %vm788, %v1545
        %1577 = vst.msk [vmem:[#allocation6 + $0x1b] sm:$0x1] %vm788, %v1549
        %1578 = vst.msk [vmem:[#allocation6 + $0x23] sm:$0x1] %vm788, %v1553
        %1579 = vst.msk [vmem:[#allocation6 + $0x2b] sm:$0x1] %vm788, %v1557
        %1580 = vst.msk [vmem:[#allocation6 + $0x33] sm:$0x1] %vm788, %v1561
        %1581 = vst.msk [vmem:[#allocation6 + $0x3b] sm:$0x1] %vm788, %v1565
        %v1582 = vld [vmem:[#allocation20 + $0x4] sm:$0x1]
        %v1583 = vlaneseq
        %v1584 = vshrl.u32 %v1583, 7
        %v1585 = vsub.s32 0, %v1584
        %v1586 = vrot.slane %v1582, %v1585
        %v1587 = vmul.f32 %v786, %v1586
        %v1588 = vmul.f32 %v1587, 1.442695
        %v1589 = vpow.pop %v1588
        %v1591 = vcombine.high %v1589, %v1589
        %v1593 = vunpack.c.l.s4 1966171168
        %v1594 = vunpack.c.0.s8 %v1593
        %v1595 = vlaneseq
        %v1596 = vshrl.u32 %v1595, 7
        %v1597 = vsub.s32 %v1594, %v1596
        %v1598 = vrot.slane %v1589, %v1597
        %v1600 = vunpack.c.l.s4 1966171168
        %v1601 = vunpack.c.0.s8 %v1600
        %v1602 = vlaneseq
        %v1603 = vshrl.u32 %v1602, 7
        %v1604 = vsub.s32 %v1601, %v1603
        %v1605 = vrot.slane %v1591, %v1604
        %v1606 = vcombine.high %v1598, %v1598
        %v1607 = vcombine.high %v1605, %v1605
        %v1609 = vunpack.c.l.s4 1966171168
        %v1610 = vunpack.c.0.s8 %v1609
        %v1611 = vlaneseq
        %v1612 = vshrl.u32 %v1611, 7
        %v1613 = vsub.s32 %v1610, %v1612
        %v1614 = vrot.slane %v1598, %v1613
        %v1616 = vunpack.c.l.s4 1966171168
        %v1617 = vunpack.c.0.s8 %v1616
        %v1618 = vlaneseq
        %v1619 = vshrl.u32 %v1618, 7
        %v1620 = vsub.s32 %v1617, %v1619
        %v1621 = vrot.slane %v1605, %v1620
        %v1623 = vunpack.c.l.s4 1966171168
        %v1624 = vunpack.c.0.s8 %v1623
        %v1625 = vlaneseq
        %v1626 = vshrl.u32 %v1625, 7
        %v1627 = vsub.s32 %v1624, %v1626
        %v1628 = vrot.slane %v1606, %v1627
        %v1630 = vunpack.c.l.s4 1966171168
        %v1631 = vunpack.c.0.s8 %v1630
        %v1632 = vlaneseq
        %v1633 = vshrl.u32 %v1632, 7
        %v1634 = vsub.s32 %v1631, %v1633
        %v1635 = vrot.slane %v1607, %v1634
        %v1636 = vcombine.high %v1614, %v1614
        %v1637 = vcombine.high %v1621, %v1621
        %v1638 = vcombine.high %v1628, %v1628
        %v1639 = vcombine.high %v1635, %v1635
        %1648 = vst.msk [vmem:[#allocation4 + $0x4] sm:$0x1] %vm788, %v1614
        %1649 = vst.msk [vmem:[#allocation4 + $0xc] sm:$0x1] %vm788, %v1628
        %1650 = vst.msk [vmem:[#allocation4 + $0x14] sm:$0x1] %vm788, %v1636
        %1651 = vst.msk [vmem:[#allocation4 + $0x1c] sm:$0x1] %vm788, %v1638
        %1652 = vst.msk [vmem:[#allocation4 + $0x24] sm:$0x1] %vm788, %v1621
        %1653 = vst.msk [vmem:[#allocation4 + $0x2c] sm:$0x1] %vm788, %v1635
        %1654 = vst.msk [vmem:[#allocation4 + $0x34] sm:$0x1] %vm788, %v1637
        %1655 = vst.msk [vmem:[#allocation4 + $0x3c] sm:$0x1] %vm788, %v1639
        %1656 = vset.pattern.permute.xlu0 6
        %1657 = vperm.xlu0 %1656, %v707
        %v1658 = vpop.permute.xlu0 %1657
        %v1660 = vmul.f32 %v1658, %v787
        %v1662 = vcombine.high %v1660, %v1660
        %v1664 = vunpack.c.l.s4 1966171168
        %v1665 = vunpack.c.0.s8 %v1664
        %v1666 = vlaneseq
        %v1667 = vshrl.u32 %v1666, 7
        %v1668 = vsub.s32 %v1665, %v1667
        %v1669 = vrot.slane %v1660, %v1668
        %v1671 = vunpack.c.l.s4 1966171168
        %v1672 = vunpack.c.0.s8 %v1671
        %v1673 = vlaneseq
        %v1674 = vshrl.u32 %v1673, 7
        %v1675 = vsub.s32 %v1672, %v1674
        %v1676 = vrot.slane %v1662, %v1675
        %v1677 = vcombine.high %v1669, %v1669
        %v1678 = vcombine.high %v1676, %v1676
        %v1680 = vunpack.c.l.s4 1966171168
        %v1681 = vunpack.c.0.s8 %v1680
        %v1682 = vlaneseq
        %v1683 = vshrl.u32 %v1682, 7
        %v1684 = vsub.s32 %v1681, %v1683
        %v1685 = vrot.slane %v1669, %v1684
        %v1687 = vunpack.c.l.s4 1966171168
        %v1688 = vunpack.c.0.s8 %v1687
        %v1689 = vlaneseq
        %v1690 = vshrl.u32 %v1689, 7
        %v1691 = vsub.s32 %v1688, %v1690
        %v1692 = vrot.slane %v1676, %v1691
        %v1694 = vunpack.c.l.s4 1966171168
        %v1695 = vunpack.c.0.s8 %v1694
        %v1696 = vlaneseq
        %v1697 = vshrl.u32 %v1696, 7
        %v1698 = vsub.s32 %v1695, %v1697
        %v1699 = vrot.slane %v1677, %v1698
        %v1701 = vunpack.c.l.s4 1966171168
        %v1702 = vunpack.c.0.s8 %v1701
        %v1703 = vlaneseq
        %v1704 = vshrl.u32 %v1703, 7
        %v1705 = vsub.s32 %v1702, %v1704
        %v1706 = vrot.slane %v1678, %v1705
        %v1707 = vcombine.high %v1685, %v1685
        %v1708 = vcombine.high %v1692, %v1692
        %v1709 = vcombine.high %v1699, %v1699
        %v1710 = vcombine.high %v1706, %v1706
        %1719 = vst.msk [vmem:[#allocation5 + $0x4] sm:$0x1] %vm788, %v1685
        %1720 = vst.msk [vmem:[#allocation5 + $0xc] sm:$0x1] %vm788, %v1699
        %1721 = vst.msk [vmem:[#allocation5 + $0x14] sm:$0x1] %vm788, %v1707
        %1722 = vst.msk [vmem:[#allocation5 + $0x1c] sm:$0x1] %vm788, %v1709
        %1723 = vst.msk [vmem:[#allocation5 + $0x24] sm:$0x1] %vm788, %v1692
        %1724 = vst.msk [vmem:[#allocation5 + $0x2c] sm:$0x1] %vm788, %v1706
        %1725 = vst.msk [vmem:[#allocation5 + $0x34] sm:$0x1] %vm788, %v1708
        %1726 = vst.msk [vmem:[#allocation5 + $0x3c] sm:$0x1] %vm788, %v1710
        %1727 = vset.pattern.permute.xlu0 22
        %1728 = vperm.xlu0 %1727, %v707
        %v1729 = vpop.permute.xlu0 %1728
        %v1730 = vlaneseq
        %v1731 = vshrl.u32 %v1730, 7
        %v1732 = vsub.s32 0, %v1731
        %v1733 = vrot.slane %v1729, %v1732
        %v1734 = vlaneseq
        %v1735 = vshrl.u32 %v1734, 7
        %v1736 = vsub.s32 1, %v1735
        %v1737 = vrot.slane %v1729, %v1736
        %v1738 = vlaneseq
        %v1739 = vshrl.u32 %v1738, 7
        %v1740 = vsub.s32 2, %v1739
        %v1741 = vrot.slane %v1729, %v1740
        %v1742 = vlaneseq
        %v1743 = vshrl.u32 %v1742, 7
        %v1744 = vsub.s32 3, %v1743
        %v1745 = vrot.slane %v1729, %v1744
        %v1746 = vlaneseq
        %v1747 = vshrl.u32 %v1746, 7
        %v1748 = vsub.s32 4, %v1747
        %v1749 = vrot.slane %v1729, %v1748
        %v1750 = vlaneseq
        %v1751 = vshrl.u32 %v1750, 7
        %v1752 = vsub.s32 5, %v1751
        %v1753 = vrot.slane %v1729, %v1752
        %v1754 = vlaneseq
        %v1755 = vshrl.u32 %v1754, 7
        %v1756 = vsub.s32 6, %v1755
        %v1757 = vrot.slane %v1729, %v1756
        %v1758 = vlaneseq
        %v1759 = vshrl.u32 %v1758, 7
        %v1760 = vsub.s32 7, %v1759
        %v1761 = vrot.slane %v1729, %v1760
        %1770 = vst.msk [vmem:[#allocation6 + $0x4] sm:$0x1] %vm788, %v1733
        %1771 = vst.msk [vmem:[#allocation6 + $0xc] sm:$0x1] %vm788, %v1737
        %1772 = vst.msk [vmem:[#allocation6 + $0x14] sm:$0x1] %vm788, %v1741
        %1773 = vst.msk [vmem:[#allocation6 + $0x1c] sm:$0x1] %vm788, %v1745
        %1774 = vst.msk [vmem:[#allocation6 + $0x24] sm:$0x1] %vm788, %v1749
        %1775 = vst.msk [vmem:[#allocation6 + $0x2c] sm:$0x1] %vm788, %v1753
        %1776 = vst.msk [vmem:[#allocation6 + $0x34] sm:$0x1] %vm788, %v1757
        %1777 = vst.msk [vmem:[#allocation6 + $0x3c] sm:$0x1] %vm788, %v1761
        %v1778 = vld [vmem:[#allocation20 + $0x5] sm:$0x1]
        %v1779 = vlaneseq
        %v1780 = vshrl.u32 %v1779, 7
        %v1781 = vsub.s32 0, %v1780
        %v1782 = vrot.slane %v1778, %v1781
        %v1783 = vmul.f32 %v786, %v1782
        %v1784 = vmul.f32 %v1783, 1.442695
        %v1785 = vpow.pop %v1784
        %v1787 = vcombine.high %v1785, %v1785
        %v1789 = vunpack.c.l.s4 1966171168
        %v1790 = vunpack.c.0.s8 %v1789
        %v1791 = vlaneseq
        %v1792 = vshrl.u32 %v1791, 7
        %v1793 = vsub.s32 %v1790, %v1792
        %v1794 = vrot.slane %v1785, %v1793
        %v1796 = vunpack.c.l.s4 1966171168
        %v1797 = vunpack.c.0.s8 %v1796
        %v1798 = vlaneseq
        %v1799 = vshrl.u32 %v1798, 7
        %v1800 = vsub.s32 %v1797, %v1799
        %v1801 = vrot.slane %v1787, %v1800
        %v1802 = vcombine.high %v1794, %v1794
        %v1803 = vcombine.high %v1801, %v1801
        %v1805 = vunpack.c.l.s4 1966171168
        %v1806 = vunpack.c.0.s8 %v1805
        %v1807 = vlaneseq
        %v1808 = vshrl.u32 %v1807, 7
        %v1809 = vsub.s32 %v1806, %v1808
        %v1810 = vrot.slane %v1794, %v1809
        %v1812 = vunpack.c.l.s4 1966171168
        %v1813 = vunpack.c.0.s8 %v1812
        %v1814 = vlaneseq
        %v1815 = vshrl.u32 %v1814, 7
        %v1816 = vsub.s32 %v1813, %v1815
        %v1817 = vrot.slane %v1801, %v1816
        %v1819 = vunpack.c.l.s4 1966171168
        %v1820 = vunpack.c.0.s8 %v1819
        %v1821 = vlaneseq
        %v1822 = vshrl.u32 %v1821, 7
        %v1823 = vsub.s32 %v1820, %v1822
        %v1824 = vrot.slane %v1802, %v1823
        %v1826 = vunpack.c.l.s4 1966171168
        %v1827 = vunpack.c.0.s8 %v1826
        %v1828 = vlaneseq
        %v1829 = vshrl.u32 %v1828, 7
        %v1830 = vsub.s32 %v1827, %v1829
        %v1831 = vrot.slane %v1803, %v1830
        %v1832 = vcombine.high %v1810, %v1810
        %v1833 = vcombine.high %v1817, %v1817
        %v1834 = vcombine.high %v1824, %v1824
        %v1835 = vcombine.high %v1831, %v1831
        %1844 = vst.msk [vmem:[#allocation4 + $0x5] sm:$0x1] %vm788, %v1810
        %1845 = vst.msk [vmem:[#allocation4 + $0xd] sm:$0x1] %vm788, %v1824
        %1846 = vst.msk [vmem:[#allocation4 + $0x15] sm:$0x1] %vm788, %v1832
        %1847 = vst.msk [vmem:[#allocation4 + $0x1d] sm:$0x1] %vm788, %v1834
        %1848 = vst.msk [vmem:[#allocation4 + $0x25] sm:$0x1] %vm788, %v1817
        %1849 = vst.msk [vmem:[#allocation4 + $0x2d] sm:$0x1] %vm788, %v1831
        %1850 = vst.msk [vmem:[#allocation4 + $0x35] sm:$0x1] %vm788, %v1833
        %1851 = vst.msk [vmem:[#allocation4 + $0x3d] sm:$0x1] %vm788, %v1835
        %1852 = vset.pattern.permute.xlu0 7
        %1853 = vperm.xlu0 %1852, %v707
        %v1854 = vpop.permute.xlu0 %1853
        %v1856 = vmul.f32 %v1854, %v787
        %v1858 = vcombine.high %v1856, %v1856
        %v1860 = vunpack.c.l.s4 1966171168
        %v1861 = vunpack.c.0.s8 %v1860
        %v1862 = vlaneseq
        %v1863 = vshrl.u32 %v1862, 7
        %v1864 = vsub.s32 %v1861, %v1863
        %v1865 = vrot.slane %v1856, %v1864
        %v1867 = vunpack.c.l.s4 1966171168
        %v1868 = vunpack.c.0.s8 %v1867
        %v1869 = vlaneseq
        %v1870 = vshrl.u32 %v1869, 7
        %v1871 = vsub.s32 %v1868, %v1870
        %v1872 = vrot.slane %v1858, %v1871
        %v1873 = vcombine.high %v1865, %v1865
        %v1874 = vcombine.high %v1872, %v1872
        %v1876 = vunpack.c.l.s4 1966171168
        %v1877 = vunpack.c.0.s8 %v1876
        %v1878 = vlaneseq
        %v1879 = vshrl.u32 %v1878, 7
        %v1880 = vsub.s32 %v1877, %v1879
        %v1881 = vrot.slane %v1865, %v1880
        %v1883 = vunpack.c.l.s4 1966171168
        %v1884 = vunpack.c.0.s8 %v1883
        %v1885 = vlaneseq
        %v1886 = vshrl.u32 %v1885, 7
        %v1887 = vsub.s32 %v1884, %v1886
        %v1888 = vrot.slane %v1872, %v1887
        %v1890 = vunpack.c.l.s4 1966171168
        %v1891 = vunpack.c.0.s8 %v1890
        %v1892 = vlaneseq
        %v1893 = vshrl.u32 %v1892, 7
        %v1894 = vsub.s32 %v1891, %v1893
        %v1895 = vrot.slane %v1873, %v1894
        %v1897 = vunpack.c.l.s4 1966171168
        %v1898 = vunpack.c.0.s8 %v1897
        %v1899 = vlaneseq
        %v1900 = vshrl.u32 %v1899, 7
        %v1901 = vsub.s32 %v1898, %v1900
        %v1902 = vrot.slane %v1874, %v1901
        %v1903 = vcombine.high %v1881, %v1881
        %v1904 = vcombine.high %v1888, %v1888
        %v1905 = vcombine.high %v1895, %v1895
        %v1906 = vcombine.high %v1902, %v1902
        %1915 = vst.msk [vmem:[#allocation5 + $0x5] sm:$0x1] %vm788, %v1881
        %1916 = vst.msk [vmem:[#allocation5 + $0xd] sm:$0x1] %vm788, %v1895
        %1917 = vst.msk [vmem:[#allocation5 + $0x15] sm:$0x1] %vm788, %v1903
        %1918 = vst.msk [vmem:[#allocation5 + $0x1d] sm:$0x1] %vm788, %v1905
        %1919 = vst.msk [vmem:[#allocation5 + $0x25] sm:$0x1] %vm788, %v1888
        %1920 = vst.msk [vmem:[#allocation5 + $0x2d] sm:$0x1] %vm788, %v1902
        %1921 = vst.msk [vmem:[#allocation5 + $0x35] sm:$0x1] %vm788, %v1904
        %1922 = vst.msk [vmem:[#allocation5 + $0x3d] sm:$0x1] %vm788, %v1906
        %1923 = vset.pattern.permute.xlu0 23
        %1924 = vperm.xlu0 %1923, %v707
        %v1925 = vpop.permute.xlu0 %1924
        %v1926 = vlaneseq
        %v1927 = vshrl.u32 %v1926, 7
        %v1928 = vsub.s32 0, %v1927
        %v1929 = vrot.slane %v1925, %v1928
        %v1930 = vlaneseq
        %v1931 = vshrl.u32 %v1930, 7
        %v1932 = vsub.s32 1, %v1931
        %v1933 = vrot.slane %v1925, %v1932
        %v1934 = vlaneseq
        %v1935 = vshrl.u32 %v1934, 7
        %v1936 = vsub.s32 2, %v1935
        %v1937 = vrot.slane %v1925, %v1936
        %v1938 = vlaneseq
        %v1939 = vshrl.u32 %v1938, 7
        %v1940 = vsub.s32 3, %v1939
        %v1941 = vrot.slane %v1925, %v1940
        %v1942 = vlaneseq
        %v1943 = vshrl.u32 %v1942, 7
        %v1944 = vsub.s32 4, %v1943
        %v1945 = vrot.slane %v1925, %v1944
        %v1946 = vlaneseq
        %v1947 = vshrl.u32 %v1946, 7
        %v1948 = vsub.s32 5, %v1947
        %v1949 = vrot.slane %v1925, %v1948
        %v1950 = vlaneseq
        %v1951 = vshrl.u32 %v1950, 7
        %v1952 = vsub.s32 6, %v1951
        %v1953 = vrot.slane %v1925, %v1952
        %v1954 = vlaneseq
        %v1955 = vshrl.u32 %v1954, 7
        %v1956 = vsub.s32 7, %v1955
        %v1957 = vrot.slane %v1925, %v1956
        %1966 = vst.msk [vmem:[#allocation6 + $0x5] sm:$0x1] %vm788, %v1929
        %1967 = vst.msk [vmem:[#allocation6 + $0xd] sm:$0x1] %vm788, %v1933
        %1968 = vst.msk [vmem:[#allocation6 + $0x15] sm:$0x1] %vm788, %v1937
        %1969 = vst.msk [vmem:[#allocation6 + $0x1d] sm:$0x1] %vm788, %v1941
        %1970 = vst.msk [vmem:[#allocation6 + $0x25] sm:$0x1] %vm788, %v1945
        %1971 = vst.msk [vmem:[#allocation6 + $0x2d] sm:$0x1] %vm788, %v1949
        %1972 = vst.msk [vmem:[#allocation6 + $0x35] sm:$0x1] %vm788, %v1953
        %1973 = vst.msk [vmem:[#allocation6 + $0x3d] sm:$0x1] %vm788, %v1957
        %v1974 = vld [vmem:[#allocation20 + $0x6] sm:$0x1]
        %v1975 = vlaneseq
        %v1976 = vshrl.u32 %v1975, 7
        %v1977 = vsub.s32 0, %v1976
        %v1978 = vrot.slane %v1974, %v1977
        %v1979 = vmul.f32 %v786, %v1978
        %v1980 = vmul.f32 %v1979, 1.442695
        %v1981 = vpow.pop %v1980
        %v1983 = vcombine.high %v1981, %v1981
        %v1985 = vunpack.c.l.s4 1966171168
        %v1986 = vunpack.c.0.s8 %v1985
        %v1987 = vlaneseq
        %v1988 = vshrl.u32 %v1987, 7
        %v1989 = vsub.s32 %v1986, %v1988
        %v1990 = vrot.slane %v1981, %v1989
        %v1992 = vunpack.c.l.s4 1966171168
        %v1993 = vunpack.c.0.s8 %v1992
        %v1994 = vlaneseq
        %v1995 = vshrl.u32 %v1994, 7
        %v1996 = vsub.s32 %v1993, %v1995
        %v1997 = vrot.slane %v1983, %v1996
        %v1998 = vcombine.high %v1990, %v1990
        %v1999 = vcombine.high %v1997, %v1997
        %v2001 = vunpack.c.l.s4 1966171168
        %v2002 = vunpack.c.0.s8 %v2001
        %v2003 = vlaneseq
        %v2004 = vshrl.u32 %v2003, 7
        %v2005 = vsub.s32 %v2002, %v2004
        %v2006 = vrot.slane %v1990, %v2005
        %v2008 = vunpack.c.l.s4 1966171168
        %v2009 = vunpack.c.0.s8 %v2008
        %v2010 = vlaneseq
        %v2011 = vshrl.u32 %v2010, 7
        %v2012 = vsub.s32 %v2009, %v2011
        %v2013 = vrot.slane %v1997, %v2012
        %v2015 = vunpack.c.l.s4 1966171168
        %v2016 = vunpack.c.0.s8 %v2015
        %v2017 = vlaneseq
        %v2018 = vshrl.u32 %v2017, 7
        %v2019 = vsub.s32 %v2016, %v2018
        %v2020 = vrot.slane %v1998, %v2019
        %v2022 = vunpack.c.l.s4 1966171168
        %v2023 = vunpack.c.0.s8 %v2022
        %v2024 = vlaneseq
        %v2025 = vshrl.u32 %v2024, 7
        %v2026 = vsub.s32 %v2023, %v2025
        %v2027 = vrot.slane %v1999, %v2026
        %v2028 = vcombine.high %v2006, %v2006
        %v2029 = vcombine.high %v2013, %v2013
        %v2030 = vcombine.high %v2020, %v2020
        %v2031 = vcombine.high %v2027, %v2027
        %2040 = vst.msk [vmem:[#allocation4 + $0x6] sm:$0x1] %vm788, %v2006
        %2041 = vst.msk [vmem:[#allocation4 + $0xe] sm:$0x1] %vm788, %v2020
        %2042 = vst.msk [vmem:[#allocation4 + $0x16] sm:$0x1] %vm788, %v2028
        %2043 = vst.msk [vmem:[#allocation4 + $0x1e] sm:$0x1] %vm788, %v2030
        %2044 = vst.msk [vmem:[#allocation4 + $0x26] sm:$0x1] %vm788, %v2013
        %2045 = vst.msk [vmem:[#allocation4 + $0x2e] sm:$0x1] %vm788, %v2027
        %2046 = vst.msk [vmem:[#allocation4 + $0x36] sm:$0x1] %vm788, %v2029
        %2047 = vst.msk [vmem:[#allocation4 + $0x3e] sm:$0x1] %vm788, %v2031
        %2048 = vset.pattern.permute.xlu0 8
        %2049 = vperm.xlu0 %2048, %v707
        %v2050 = vpop.permute.xlu0 %2049
        %v2052 = vmul.f32 %v2050, %v787
        %v2054 = vcombine.high %v2052, %v2052
        %v2056 = vunpack.c.l.s4 1966171168
        %v2057 = vunpack.c.0.s8 %v2056
        %v2058 = vlaneseq
        %v2059 = vshrl.u32 %v2058, 7
        %v2060 = vsub.s32 %v2057, %v2059
        %v2061 = vrot.slane %v2052, %v2060
        %v2063 = vunpack.c.l.s4 1966171168
        %v2064 = vunpack.c.0.s8 %v2063
        %v2065 = vlaneseq
        %v2066 = vshrl.u32 %v2065, 7
        %v2067 = vsub.s32 %v2064, %v2066
        %v2068 = vrot.slane %v2054, %v2067
        %v2069 = vcombine.high %v2061, %v2061
        %v2070 = vcombine.high %v2068, %v2068
        %v2072 = vunpack.c.l.s4 1966171168
        %v2073 = vunpack.c.0.s8 %v2072
        %v2074 = vlaneseq
        %v2075 = vshrl.u32 %v2074, 7
        %v2076 = vsub.s32 %v2073, %v2075
        %v2077 = vrot.slane %v2061, %v2076
        %v2079 = vunpack.c.l.s4 1966171168
        %v2080 = vunpack.c.0.s8 %v2079
        %v2081 = vlaneseq
        %v2082 = vshrl.u32 %v2081, 7
        %v2083 = vsub.s32 %v2080, %v2082
        %v2084 = vrot.slane %v2068, %v2083
        %v2086 = vunpack.c.l.s4 1966171168
        %v2087 = vunpack.c.0.s8 %v2086
        %v2088 = vlaneseq
        %v2089 = vshrl.u32 %v2088, 7
        %v2090 = vsub.s32 %v2087, %v2089
        %v2091 = vrot.slane %v2069, %v2090
        %v2093 = vunpack.c.l.s4 1966171168
        %v2094 = vunpack.c.0.s8 %v2093
        %v2095 = vlaneseq
        %v2096 = vshrl.u32 %v2095, 7
        %v2097 = vsub.s32 %v2094, %v2096
        %v2098 = vrot.slane %v2070, %v2097
        %v2099 = vcombine.high %v2077, %v2077
        %v2100 = vcombine.high %v2084, %v2084
        %v2101 = vcombine.high %v2091, %v2091
        %v2102 = vcombine.high %v2098, %v2098
        %2111 = vst.msk [vmem:[#allocation5 + $0x6] sm:$0x1] %vm788, %v2077
        %2112 = vst.msk [vmem:[#allocation5 + $0xe] sm:$0x1] %vm788, %v2091
        %2113 = vst.msk [vmem:[#allocation5 + $0x16] sm:$0x1] %vm788, %v2099
        %2114 = vst.msk [vmem:[#allocation5 + $0x1e] sm:$0x1] %vm788, %v2101
        %2115 = vst.msk [vmem:[#allocation5 + $0x26] sm:$0x1] %vm788, %v2084
        %2116 = vst.msk [vmem:[#allocation5 + $0x2e] sm:$0x1] %vm788, %v2098
        %2117 = vst.msk [vmem:[#allocation5 + $0x36] sm:$0x1] %vm788, %v2100
        %2118 = vst.msk [vmem:[#allocation5 + $0x3e] sm:$0x1] %vm788, %v2102
        %2119 = vset.pattern.permute.xlu0 24
        %2120 = vperm.xlu0 %2119, %v707
        %v2121 = vpop.permute.xlu0 %2120
        %v2122 = vlaneseq
        %v2123 = vshrl.u32 %v2122, 7
        %v2124 = vsub.s32 0, %v2123
        %v2125 = vrot.slane %v2121, %v2124
        %v2126 = vlaneseq
        %v2127 = vshrl.u32 %v2126, 7
        %v2128 = vsub.s32 1, %v2127
        %v2129 = vrot.slane %v2121, %v2128
        %v2130 = vlaneseq
        %v2131 = vshrl.u32 %v2130, 7
        %v2132 = vsub.s32 2, %v2131
        %v2133 = vrot.slane %v2121, %v2132
        %v2134 = vlaneseq
        %v2135 = vshrl.u32 %v2134, 7
        %v2136 = vsub.s32 3, %v2135
        %v2137 = vrot.slane %v2121, %v2136
        %v2138 = vlaneseq
        %v2139 = vshrl.u32 %v2138, 7
        %v2140 = vsub.s32 4, %v2139
        %v2141 = vrot.slane %v2121, %v2140
        %v2142 = vlaneseq
        %v2143 = vshrl.u32 %v2142, 7
        %v2144 = vsub.s32 5, %v2143
        %v2145 = vrot.slane %v2121, %v2144
        %v2146 = vlaneseq
        %v2147 = vshrl.u32 %v2146, 7
        %v2148 = vsub.s32 6, %v2147
        %v2149 = vrot.slane %v2121, %v2148
        %v2150 = vlaneseq
        %v2151 = vshrl.u32 %v2150, 7
        %v2152 = vsub.s32 7, %v2151
        %v2153 = vrot.slane %v2121, %v2152
        %2162 = vst.msk [vmem:[#allocation6 + $0x6] sm:$0x1] %vm788, %v2125
        %2163 = vst.msk [vmem:[#allocation6 + $0xe] sm:$0x1] %vm788, %v2129
        %2164 = vst.msk [vmem:[#allocation6 + $0x16] sm:$0x1] %vm788, %v2133
        %2165 = vst.msk [vmem:[#allocation6 + $0x1e] sm:$0x1] %vm788, %v2137
        %2166 = vst.msk [vmem:[#allocation6 + $0x26] sm:$0x1] %vm788, %v2141
        %2167 = vst.msk [vmem:[#allocation6 + $0x2e] sm:$0x1] %vm788, %v2145
        %2168 = vst.msk [vmem:[#allocation6 + $0x36] sm:$0x1] %vm788, %v2149
        %2169 = vst.msk [vmem:[#allocation6 + $0x3e] sm:$0x1] %vm788, %v2153
        %v2170 = vld [vmem:[#allocation20 + $0x7] sm:$0x1]
        %v2171 = vlaneseq
        %v2172 = vshrl.u32 %v2171, 7
        %v2173 = vsub.s32 0, %v2172
        %v2174 = vrot.slane %v2170, %v2173
        %v2175 = vmul.f32 %v786, %v2174
        %v2176 = vmul.f32 %v2175, 1.442695
        %v2177 = vpow.pop %v2176
        %v2179 = vcombine.high %v2177, %v2177
        %v2181 = vunpack.c.l.s4 1966171168
        %v2182 = vunpack.c.0.s8 %v2181
        %v2183 = vlaneseq
        %v2184 = vshrl.u32 %v2183, 7
        %v2185 = vsub.s32 %v2182, %v2184
        %v2186 = vrot.slane %v2177, %v2185
        %v2188 = vunpack.c.l.s4 1966171168
        %v2189 = vunpack.c.0.s8 %v2188
        %v2190 = vlaneseq
        %v2191 = vshrl.u32 %v2190, 7
        %v2192 = vsub.s32 %v2189, %v2191
        %v2193 = vrot.slane %v2179, %v2192
        %v2194 = vcombine.high %v2186, %v2186
        %v2195 = vcombine.high %v2193, %v2193
        %v2197 = vunpack.c.l.s4 1966171168
        %v2198 = vunpack.c.0.s8 %v2197
        %v2199 = vlaneseq
        %v2200 = vshrl.u32 %v2199, 7
        %v2201 = vsub.s32 %v2198, %v2200
        %v2202 = vrot.slane %v2186, %v2201
        %v2204 = vunpack.c.l.s4 1966171168
        %v2205 = vunpack.c.0.s8 %v2204
        %v2206 = vlaneseq
        %v2207 = vshrl.u32 %v2206, 7
        %v2208 = vsub.s32 %v2205, %v2207
        %v2209 = vrot.slane %v2193, %v2208
        %v2211 = vunpack.c.l.s4 1966171168
        %v2212 = vunpack.c.0.s8 %v2211
        %v2213 = vlaneseq
        %v2214 = vshrl.u32 %v2213, 7
        %v2215 = vsub.s32 %v2212, %v2214
        %v2216 = vrot.slane %v2194, %v2215
        %v2218 = vunpack.c.l.s4 1966171168
        %v2219 = vunpack.c.0.s8 %v2218
        %v2220 = vlaneseq
        %v2221 = vshrl.u32 %v2220, 7
        %v2222 = vsub.s32 %v2219, %v2221
        %v2223 = vrot.slane %v2195, %v2222
        %v2224 = vcombine.high %v2202, %v2202
        %v2225 = vcombine.high %v2209, %v2209
        %v2226 = vcombine.high %v2216, %v2216
        %v2227 = vcombine.high %v2223, %v2223
        %2236 = vst.msk [vmem:[#allocation4 + $0x7] sm:$0x1] %vm788, %v2202
        %2237 = vst.msk [vmem:[#allocation4 + $0xf] sm:$0x1] %vm788, %v2216
        %2238 = vst.msk [vmem:[#allocation4 + $0x17] sm:$0x1] %vm788, %v2224
        %2239 = vst.msk [vmem:[#allocation4 + $0x1f] sm:$0x1] %vm788, %v2226
        %2240 = vst.msk [vmem:[#allocation4 + $0x27] sm:$0x1] %vm788, %v2209
        %2241 = vst.msk [vmem:[#allocation4 + $0x2f] sm:$0x1] %vm788, %v2223
        %2242 = vst.msk [vmem:[#allocation4 + $0x37] sm:$0x1] %vm788, %v2225
        %2243 = vst.msk [vmem:[#allocation4 + $0x3f] sm:$0x1] %vm788, %v2227
        %2244 = vset.pattern.permute.xlu0 9
        %2245 = vperm.xlu0 %2244, %v707
        %v2246 = vpop.permute.xlu0 %2245
        %v2248 = vmul.f32 %v2246, %v787
        %v2250 = vcombine.high %v2248, %v2248
        %v2252 = vunpack.c.l.s4 1966171168
        %v2253 = vunpack.c.0.s8 %v2252
        %v2254 = vlaneseq
        %v2255 = vshrl.u32 %v2254, 7
        %v2256 = vsub.s32 %v2253, %v2255
        %v2257 = vrot.slane %v2248, %v2256
        %v2259 = vunpack.c.l.s4 1966171168
        %v2260 = vunpack.c.0.s8 %v2259
        %v2261 = vlaneseq
        %v2262 = vshrl.u32 %v2261, 7
        %v2263 = vsub.s32 %v2260, %v2262
        %v2264 = vrot.slane %v2250, %v2263
        %v2265 = vcombine.high %v2257, %v2257
        %v2266 = vcombine.high %v2264, %v2264
        %v2268 = vunpack.c.l.s4 1966171168
        %v2269 = vunpack.c.0.s8 %v2268
        %v2270 = vlaneseq
        %v2271 = vshrl.u32 %v2270, 7
        %v2272 = vsub.s32 %v2269, %v2271
        %v2273 = vrot.slane %v2257, %v2272
        %v2275 = vunpack.c.l.s4 1966171168
        %v2276 = vunpack.c.0.s8 %v2275
        %v2277 = vlaneseq
        %v2278 = vshrl.u32 %v2277, 7
        %v2279 = vsub.s32 %v2276, %v2278
        %v2280 = vrot.slane %v2264, %v2279
        %v2282 = vunpack.c.l.s4 1966171168
        %v2283 = vunpack.c.0.s8 %v2282
        %v2284 = vlaneseq
        %v2285 = vshrl.u32 %v2284, 7
        %v2286 = vsub.s32 %v2283, %v2285
        %v2287 = vrot.slane %v2265, %v2286
        %v2289 = vunpack.c.l.s4 1966171168
        %v2290 = vunpack.c.0.s8 %v2289
        %v2291 = vlaneseq
        %v2292 = vshrl.u32 %v2291, 7
        %v2293 = vsub.s32 %v2290, %v2292
        %v2294 = vrot.slane %v2266, %v2293
        %v2295 = vcombine.high %v2273, %v2273
        %v2296 = vcombine.high %v2280, %v2280
        %v2297 = vcombine.high %v2287, %v2287
        %v2298 = vcombine.high %v2294, %v2294
        %2307 = vst.msk [vmem:[#allocation5 + $0x7] sm:$0x1] %vm788, %v2273
        %2308 = vst.msk [vmem:[#allocation5 + $0xf] sm:$0x1] %vm788, %v2287
        %2309 = vst.msk [vmem:[#allocation5 + $0x17] sm:$0x1] %vm788, %v2295
        %2310 = vst.msk [vmem:[#allocation5 + $0x1f] sm:$0x1] %vm788, %v2297
        %2311 = vst.msk [vmem:[#allocation5 + $0x27] sm:$0x1] %vm788, %v2280
        %2312 = vst.msk [vmem:[#allocation5 + $0x2f] sm:$0x1] %vm788, %v2294
        %2313 = vst.msk [vmem:[#allocation5 + $0x37] sm:$0x1] %vm788, %v2296
        %2314 = vst.msk [vmem:[#allocation5 + $0x3f] sm:$0x1] %vm788, %v2298
        %2315 = vset.pattern.permute.xlu0 25
        %2316 = vperm.xlu0 %2315, %v707
        %v2317 = vpop.permute.xlu0 %2316
        %v2318 = vlaneseq
        %v2319 = vshrl.u32 %v2318, 7
        %v2320 = vsub.s32 0, %v2319
        %v2321 = vrot.slane %v2317, %v2320
        %v2322 = vlaneseq
        %v2323 = vshrl.u32 %v2322, 7
        %v2324 = vsub.s32 1, %v2323
        %v2325 = vrot.slane %v2317, %v2324
        %v2326 = vlaneseq
        %v2327 = vshrl.u32 %v2326, 7
        %v2328 = vsub.s32 2, %v2327
        %v2329 = vrot.slane %v2317, %v2328
        %v2330 = vlaneseq
        %v2331 = vshrl.u32 %v2330, 7
        %v2332 = vsub.s32 3, %v2331
        %v2333 = vrot.slane %v2317, %v2332
        %v2334 = vlaneseq
        %v2335 = vshrl.u32 %v2334, 7
        %v2336 = vsub.s32 4, %v2335
        %v2337 = vrot.slane %v2317, %v2336
        %v2338 = vlaneseq
        %v2339 = vshrl.u32 %v2338, 7
        %v2340 = vsub.s32 5, %v2339
        %v2341 = vrot.slane %v2317, %v2340
        %v2342 = vlaneseq
        %v2343 = vshrl.u32 %v2342, 7
        %v2344 = vsub.s32 6, %v2343
        %v2345 = vrot.slane %v2317, %v2344
        %v2346 = vlaneseq
        %v2347 = vshrl.u32 %v2346, 7
        %v2348 = vsub.s32 7, %v2347
        %v2349 = vrot.slane %v2317, %v2348
        %2358 = vst.msk [vmem:[#allocation6 + $0x7] sm:$0x1] %vm788, %v2321
        %2359 = vst.msk [vmem:[#allocation6 + $0xf] sm:$0x1] %vm788, %v2325
        %2360 = vst.msk [vmem:[#allocation6 + $0x17] sm:$0x1] %vm788, %v2329
        %2361 = vst.msk [vmem:[#allocation6 + $0x1f] sm:$0x1] %vm788, %v2333
        %2362 = vst.msk [vmem:[#allocation6 + $0x27] sm:$0x1] %vm788, %v2337
        %2363 = vst.msk [vmem:[#allocation6 + $0x2f] sm:$0x1] %vm788, %v2341
        %2364 = vst.msk [vmem:[#allocation6 + $0x37] sm:$0x1] %vm788, %v2345
        %2365 = vst.msk [vmem:[#allocation6 + $0x3f] sm:$0x1] %vm788, %v2349
        %v2366 = vld [vmem:[#allocation2] sm:$0xff]
        %v2367 = vld [vmem:[#allocation4] sm:$0xff]
        %v2368 = vmul.f32 %v2367, %v2366
        %v2369 = vld [vmem:[#allocation5] sm:$0xff]
        %v2370 = vadd.f32 %v2368, %v2369
        %v2371 = vld [vmem:[#allocation7] sm:$0x1]
        %v2372 = vld [vmem:[#allocation6] sm:$0xff]
        %v2373 = vmul.f32 %v2372, %v2370
        %v2374 = vsel %vm585, %v2373, 0.0
        %v2375 = vrot.slane %v2374, 4
        %v2376 = vadd.f32 %v2374, %v2375
        %v2377 = vrot.slane %v2376, 2
        %v2378 = vadd.f32 %v2376, %v2377
        %v2379 = vrot.slane %v2378, 1
        %v2380 = vadd.f32 %v2378, %v2379
        %v2381 = vadd.f32 %v2371, %v2380
        %2382 = vst.msk [vmem:[#allocation7] sm:$0x1] %vm788, %v2381
        %s2383 = scalar_lea.vmem [#allocation4], 8
        %v2384 = vld [vmem:[%s2383] sm:$0xff]
        %v2385 = vmul.f32 %v2384, %v2370
        %s2386 = scalar_lea.vmem [#allocation5], 8
        %v2387 = vld [vmem:[%s2386] sm:$0xff]
        %v2388 = vadd.f32 %v2385, %v2387
        %s2389 = scalar_lea.vmem [#allocation7], 1
        %v2390 = vld [vmem:[%s2389] sm:$0x1]
        %s2391 = scalar_lea.vmem [#allocation6], 8
        %v2392 = vld [vmem:[%s2391] sm:$0xff]
        %v2393 = vmul.f32 %v2392, %v2388
        %v2394 = vsel %vm585, %v2393, 0.0
        %v2395 = vrot.slane %v2394, 4
        %v2396 = vadd.f32 %v2394, %v2395
        %v2397 = vrot.slane %v2396, 2
        %v2398 = vadd.f32 %v2396, %v2397
        %v2399 = vrot.slane %v2398, 1
        %v2400 = vadd.f32 %v2398, %v2399
        %v2401 = vadd.f32 %v2390, %v2400
        %2402 = vst.msk [vmem:[%s2389] sm:$0x1] %vm788, %v2401
        %s2403 = scalar_lea.vmem [#allocation4], 16
        %v2404 = vld [vmem:[%s2403] sm:$0xff]
        %v2405 = vmul.f32 %v2404, %v2388
        %s2406 = scalar_lea.vmem [#allocation5], 16
        %v2407 = vld [vmem:[%s2406] sm:$0xff]
        %v2408 = vadd.f32 %v2405, %v2407
        %s2409 = scalar_lea.vmem [#allocation7], 2
        %v2410 = vld [vmem:[%s2409] sm:$0x1]
        %s2411 = scalar_lea.vmem [#allocation6], 16
        %v2412 = vld [vmem:[%s2411] sm:$0xff]
        %v2413 = vmul.f32 %v2412, %v2408
        %v2414 = vsel %vm585, %v2413, 0.0
        %v2415 = vrot.slane %v2414, 4
        %v2416 = vadd.f32 %v2414, %v2415
        %v2417 = vrot.slane %v2416, 2
        %v2418 = vadd.f32 %v2416, %v2417
        %v2419 = vrot.slane %v2418, 1
        %v2420 = vadd.f32 %v2418, %v2419
        %v2421 = vadd.f32 %v2410, %v2420
        %2422 = vst.msk [vmem:[%s2409] sm:$0x1] %vm788, %v2421
        %s2423 = scalar_lea.vmem [#allocation4], 24
        %v2424 = vld [vmem:[%s2423] sm:$0xff]
        %v2425 = vmul.f32 %v2424, %v2408
        %s2426 = scalar_lea.vmem [#allocation5], 24
        %v2427 = vld [vmem:[%s2426] sm:$0xff]
        %v2428 = vadd.f32 %v2425, %v2427
        %s2429 = scalar_lea.vmem [#allocation7], 3
        %v2430 = vld [vmem:[%s2429] sm:$0x1]
        %s2431 = scalar_lea.vmem [#allocation6], 24
        %v2432 = vld [vmem:[%s2431] sm:$0xff]
        %v2433 = vmul.f32 %v2432, %v2428
        %v2434 = vsel %vm585, %v2433, 0.0
        %v2435 = vrot.slane %v2434, 4
        %v2436 = vadd.f32 %v2434, %v2435
        %v2437 = vrot.slane %v2436, 2
        %v2438 = vadd.f32 %v2436, %v2437
        %v2439 = vrot.slane %v2438, 1
        %v2440 = vadd.f32 %v2438, %v2439
        %v2441 = vadd.f32 %v2430, %v2440
        %2442 = vst.msk [vmem:[%s2429] sm:$0x1] %vm788, %v2441
        %s2443 = scalar_lea.vmem [#allocation4], 32
        %v2444 = vld [vmem:[%s2443] sm:$0xff]
        %v2445 = vmul.f32 %v2444, %v2428
        %s2446 = scalar_lea.vmem [#allocation5], 32
        %v2447 = vld [vmem:[%s2446] sm:$0xff]
        %v2448 = vadd.f32 %v2445, %v2447
        %s2449 = scalar_lea.vmem [#allocation7], 4
        %v2450 = vld [vmem:[%s2449] sm:$0x1]
        %s2451 = scalar_lea.vmem [#allocation6], 32
        %v2452 = vld [vmem:[%s2451] sm:$0xff]
        %v2453 = vmul.f32 %v2452, %v2448
        %v2454 = vsel %vm585, %v2453, 0.0
        %v2455 = vrot.slane %v2454, 4
        %v2456 = vadd.f32 %v2454, %v2455
        %v2457 = vrot.slane %v2456, 2
        %v2458 = vadd.f32 %v2456, %v2457
        %v2459 = vrot.slane %v2458, 1
        %v2460 = vadd.f32 %v2458, %v2459
        %v2461 = vadd.f32 %v2450, %v2460
        %2462 = vst.msk [vmem:[%s2449] sm:$0x1] %vm788, %v2461
        %s2463 = scalar_lea.vmem [#allocation4], 40
        %v2464 = vld [vmem:[%s2463] sm:$0xff]
        %v2465 = vmul.f32 %v2464, %v2448
        %s2466 = scalar_lea.vmem [#allocation5], 40
        %v2467 = vld [vmem:[%s2466] sm:$0xff]
        %v2468 = vadd.f32 %v2465, %v2467
        %s2469 = scalar_lea.vmem [#allocation7], 5
        %v2470 = vld [vmem:[%s2469] sm:$0x1]
        %s2471 = scalar_lea.vmem [#allocation6], 40
        %v2472 = vld [vmem:[%s2471] sm:$0xff]
        %v2473 = vmul.f32 %v2472, %v2468
        %v2474 = vsel %vm585, %v2473, 0.0
        %v2475 = vrot.slane %v2474, 4
        %v2476 = vadd.f32 %v2474, %v2475
        %v2477 = vrot.slane %v2476, 2
        %v2478 = vadd.f32 %v2476, %v2477
        %v2479 = vrot.slane %v2478, 1
        %v2480 = vadd.f32 %v2478, %v2479
        %v2481 = vadd.f32 %v2470, %v2480
        %2482 = vst.msk [vmem:[%s2469] sm:$0x1] %vm788, %v2481
        %s2483 = scalar_lea.vmem [#allocation4], 48
        %v2484 = vld [vmem:[%s2483] sm:$0xff]
        %v2485 = vmul.f32 %v2484, %v2468
        %s2486 = scalar_lea.vmem [#allocation5], 48
        %v2487 = vld [vmem:[%s2486] sm:$0xff]
        %v2488 = vadd.f32 %v2485, %v2487
        %s2489 = scalar_lea.vmem [#allocation7], 6
        %v2490 = vld [vmem:[%s2489] sm:$0x1]
        %s2491 = scalar_lea.vmem [#allocation6], 48
        %v2492 = vld [vmem:[%s2491] sm:$0xff]
        %v2493 = vmul.f32 %v2492, %v2488
        %v2494 = vsel %vm585, %v2493, 0.0
        %v2495 = vrot.slane %v2494, 4
        %v2496 = vadd.f32 %v2494, %v2495
        %v2497 = vrot.slane %v2496, 2
        %v2498 = vadd.f32 %v2496, %v2497
        %v2499 = vrot.slane %v2498, 1
        %v2500 = vadd.f32 %v2498, %v2499
        %v2501 = vadd.f32 %v2490, %v2500
        %2502 = vst.msk [vmem:[%s2489] sm:$0x1] %vm788, %v2501
        %s2503 = scalar_lea.vmem [#allocation4], 56
        %v2504 = vld [vmem:[%s2503] sm:$0xff]
        %v2505 = vmul.f32 %v2504, %v2488
        %s2506 = scalar_lea.vmem [#allocation5], 56
        %v2507 = vld [vmem:[%s2506] sm:$0xff]
        %v2508 = vadd.f32 %v2505, %v2507
        %s2509 = scalar_lea.vmem [#allocation7], 7
        %v2510 = vld [vmem:[%s2509] sm:$0x1]
        %s2511 = scalar_lea.vmem [#allocation6], 56
        %v2512 = vld [vmem:[%s2511] sm:$0xff]
        %v2513 = vmul.f32 %v2512, %v2508
        %v2514 = vsel %vm585, %v2513, 0.0
        %v2515 = vrot.slane %v2514, 4
        %v2516 = vadd.f32 %v2514, %v2515
        %v2517 = vrot.slane %v2516, 2
        %v2518 = vadd.f32 %v2516, %v2517
        %v2519 = vrot.slane %v2518, 1
        %v2520 = vadd.f32 %v2518, %v2519
        %v2521 = vadd.f32 %v2510, %v2520
        %2522 = vst.msk [vmem:[%s2509] sm:$0x1] %vm788, %v2521
        %2523 = vst.msk [vmem:[#allocation2] sm:$0xff] %vm585, %v2508
        %v2524 = vld [vmem:[#allocation20 + $0x8] sm:$0x1]
        %v2525 = vlaneseq
        %v2526 = vshrl.u32 %v2525, 7
        %v2527 = vsub.s32 0, %v2526
        %v2528 = vrot.slane %v2524, %v2527
        %v2529 = vmul.f32 %v786, %v2528
        %v2530 = vmul.f32 %v2529, 1.442695
        %v2531 = vpow.pop %v2530
        %v2533 = vcombine.high %v2531, %v2531
        %v2535 = vunpack.c.l.s4 1966171168
        %v2536 = vunpack.c.0.s8 %v2535
        %v2537 = vlaneseq
        %v2538 = vshrl.u32 %v2537, 7
        %v2539 = vsub.s32 %v2536, %v2538
        %v2540 = vrot.slane %v2531, %v2539
        %v2542 = vunpack.c.l.s4 1966171168
        %v2543 = vunpack.c.0.s8 %v2542
        %v2544 = vlaneseq
        %v2545 = vshrl.u32 %v2544, 7
        %v2546 = vsub.s32 %v2543, %v2545
        %v2547 = vrot.slane %v2533, %v2546
        %v2548 = vcombine.high %v2540, %v2540
        %v2549 = vcombine.high %v2547, %v2547
        %v2551 = vunpack.c.l.s4 1966171168
        %v2552 = vunpack.c.0.s8 %v2551
        %v2553 = vlaneseq
        %v2554 = vshrl.u32 %v2553, 7
        %v2555 = vsub.s32 %v2552, %v2554
        %v2556 = vrot.slane %v2540, %v2555
        %v2558 = vunpack.c.l.s4 1966171168
        %v2559 = vunpack.c.0.s8 %v2558
        %v2560 = vlaneseq
        %v2561 = vshrl.u32 %v2560, 7
        %v2562 = vsub.s32 %v2559, %v2561
        %v2563 = vrot.slane %v2547, %v2562
        %v2565 = vunpack.c.l.s4 1966171168
        %v2566 = vunpack.c.0.s8 %v2565
        %v2567 = vlaneseq
        %v2568 = vshrl.u32 %v2567, 7
        %v2569 = vsub.s32 %v2566, %v2568
        %v2570 = vrot.slane %v2548, %v2569
        %v2572 = vunpack.c.l.s4 1966171168
        %v2573 = vunpack.c.0.s8 %v2572
        %v2574 = vlaneseq
        %v2575 = vshrl.u32 %v2574, 7
        %v2576 = vsub.s32 %v2573, %v2575
        %v2577 = vrot.slane %v2549, %v2576
        %v2578 = vcombine.high %v2556, %v2556
        %v2579 = vcombine.high %v2563, %v2563
        %v2580 = vcombine.high %v2570, %v2570
        %v2581 = vcombine.high %v2577, %v2577
        %2590 = vst.msk [vmem:[#allocation4] sm:$0x1] %vm788, %v2556
        %2591 = vst.msk [vmem:[#allocation4 + $0x8] sm:$0x1] %vm788, %v2570
        %2592 = vst.msk [vmem:[#allocation4 + $0x10] sm:$0x1] %vm788, %v2578
        %2593 = vst.msk [vmem:[#allocation4 + $0x18] sm:$0x1] %vm788, %v2580
        %2594 = vst.msk [vmem:[#allocation4 + $0x20] sm:$0x1] %vm788, %v2563
        %2595 = vst.msk [vmem:[#allocation4 + $0x28] sm:$0x1] %vm788, %v2577
        %2596 = vst.msk [vmem:[#allocation4 + $0x30] sm:$0x1] %vm788, %v2579
        %2597 = vst.msk [vmem:[#allocation4 + $0x38] sm:$0x1] %vm788, %v2581
        %2598 = vset.pattern.permute.xlu0 10
        %2599 = vperm.xlu0 %2598, %v707
        %v2600 = vpop.permute.xlu0 %2599
        %v2602 = vmul.f32 %v2600, %v787
        %v2604 = vcombine.high %v2602, %v2602
        %v2606 = vunpack.c.l.s4 1966171168
        %v2607 = vunpack.c.0.s8 %v2606
        %v2608 = vlaneseq
        %v2609 = vshrl.u32 %v2608, 7
        %v2610 = vsub.s32 %v2607, %v2609
        %v2611 = vrot.slane %v2602, %v2610
        %v2613 = vunpack.c.l.s4 1966171168
        %v2614 = vunpack.c.0.s8 %v2613
        %v2615 = vlaneseq
        %v2616 = vshrl.u32 %v2615, 7
        %v2617 = vsub.s32 %v2614, %v2616
        %v2618 = vrot.slane %v2604, %v2617
        %v2619 = vcombine.high %v2611, %v2611
        %v2620 = vcombine.high %v2618, %v2618
        %v2622 = vunpack.c.l.s4 1966171168
        %v2623 = vunpack.c.0.s8 %v2622
        %v2624 = vlaneseq
        %v2625 = vshrl.u32 %v2624, 7
        %v2626 = vsub.s32 %v2623, %v2625
        %v2627 = vrot.slane %v2611, %v2626
        %v2629 = vunpack.c.l.s4 1966171168
        %v2630 = vunpack.c.0.s8 %v2629
        %v2631 = vlaneseq
        %v2632 = vshrl.u32 %v2631, 7
        %v2633 = vsub.s32 %v2630, %v2632
        %v2634 = vrot.slane %v2618, %v2633
        %v2636 = vunpack.c.l.s4 1966171168
        %v2637 = vunpack.c.0.s8 %v2636
        %v2638 = vlaneseq
        %v2639 = vshrl.u32 %v2638, 7
        %v2640 = vsub.s32 %v2637, %v2639
        %v2641 = vrot.slane %v2619, %v2640
        %v2643 = vunpack.c.l.s4 1966171168
        %v2644 = vunpack.c.0.s8 %v2643
        %v2645 = vlaneseq
        %v2646 = vshrl.u32 %v2645, 7
        %v2647 = vsub.s32 %v2644, %v2646
        %v2648 = vrot.slane %v2620, %v2647
        %v2649 = vcombine.high %v2627, %v2627
        %v2650 = vcombine.high %v2634, %v2634
        %v2651 = vcombine.high %v2641, %v2641
        %v2652 = vcombine.high %v2648, %v2648
        %2661 = vst.msk [vmem:[#allocation5] sm:$0x1] %vm788, %v2627
        %2662 = vst.msk [vmem:[#allocation5 + $0x8] sm:$0x1] %vm788, %v2641
        %2663 = vst.msk [vmem:[#allocation5 + $0x10] sm:$0x1] %vm788, %v2649
        %2664 = vst.msk [vmem:[#allocation5 + $0x18] sm:$0x1] %vm788, %v2651
        %2665 = vst.msk [vmem:[#allocation5 + $0x20] sm:$0x1] %vm788, %v2634
        %2666 = vst.msk [vmem:[#allocation5 + $0x28] sm:$0x1] %vm788, %v2648
        %2667 = vst.msk [vmem:[#allocation5 + $0x30] sm:$0x1] %vm788, %v2650
        %2668 = vst.msk [vmem:[#allocation5 + $0x38] sm:$0x1] %vm788, %v2652
        %2669 = vset.pattern.permute.xlu0 26
        %2670 = vperm.xlu0 %2669, %v707
        %v2671 = vpop.permute.xlu0 %2670
        %v2672 = vlaneseq
        %v2673 = vshrl.u32 %v2672, 7
        %v2674 = vsub.s32 0, %v2673
        %v2675 = vrot.slane %v2671, %v2674
        %v2676 = vlaneseq
        %v2677 = vshrl.u32 %v2676, 7
        %v2678 = vsub.s32 1, %v2677
        %v2679 = vrot.slane %v2671, %v2678
        %v2680 = vlaneseq
        %v2681 = vshrl.u32 %v2680, 7
        %v2682 = vsub.s32 2, %v2681
        %v2683 = vrot.slane %v2671, %v2682
        %v2684 = vlaneseq
        %v2685 = vshrl.u32 %v2684, 7
        %v2686 = vsub.s32 3, %v2685
        %v2687 = vrot.slane %v2671, %v2686
        %v2688 = vlaneseq
        %v2689 = vshrl.u32 %v2688, 7
        %v2690 = vsub.s32 4, %v2689
        %v2691 = vrot.slane %v2671, %v2690
        %v2692 = vlaneseq
        %v2693 = vshrl.u32 %v2692, 7
        %v2694 = vsub.s32 5, %v2693
        %v2695 = vrot.slane %v2671, %v2694
        %v2696 = vlaneseq
        %v2697 = vshrl.u32 %v2696, 7
        %v2698 = vsub.s32 6, %v2697
        %v2699 = vrot.slane %v2671, %v2698
        %v2700 = vlaneseq
        %v2701 = vshrl.u32 %v2700, 7
        %v2702 = vsub.s32 7, %v2701
        %v2703 = vrot.slane %v2671, %v2702
        %2712 = vst.msk [vmem:[#allocation6] sm:$0x1] %vm788, %v2675
        %2713 = vst.msk [vmem:[#allocation6 + $0x8] sm:$0x1] %vm788, %v2679
        %2714 = vst.msk [vmem:[#allocation6 + $0x10] sm:$0x1] %vm788, %v2683
        %2715 = vst.msk [vmem:[#allocation6 + $0x18] sm:$0x1] %vm788, %v2687
        %2716 = vst.msk [vmem:[#allocation6 + $0x20] sm:$0x1] %vm788, %v2691
        %2717 = vst.msk [vmem:[#allocation6 + $0x28] sm:$0x1] %vm788, %v2695
        %2718 = vst.msk [vmem:[#allocation6 + $0x30] sm:$0x1] %vm788, %v2699
        %2719 = vst.msk [vmem:[#allocation6 + $0x38] sm:$0x1] %vm788, %v2703
        %v2720 = vld [vmem:[#allocation20 + $0x9] sm:$0x1]
        %v2721 = vlaneseq
        %v2722 = vshrl.u32 %v2721, 7
        %v2723 = vsub.s32 0, %v2722
        %v2724 = vrot.slane %v2720, %v2723
        %v2725 = vmul.f32 %v786, %v2724
        %v2726 = vmul.f32 %v2725, 1.442695
        %v2727 = vpow.pop %v2726
        %v2729 = vcombine.high %v2727, %v2727
        %v2731 = vunpack.c.l.s4 1966171168
        %v2732 = vunpack.c.0.s8 %v2731
        %v2733 = vlaneseq
        %v2734 = vshrl.u32 %v2733, 7
        %v2735 = vsub.s32 %v2732, %v2734
        %v2736 = vrot.slane %v2727, %v2735
        %v2738 = vunpack.c.l.s4 1966171168
        %v2739 = vunpack.c.0.s8 %v2738
        %v2740 = vlaneseq
        %v2741 = vshrl.u32 %v2740, 7
        %v2742 = vsub.s32 %v2739, %v2741
        %v2743 = vrot.slane %v2729, %v2742
        %v2744 = vcombine.high %v2736, %v2736
        %v2745 = vcombine.high %v2743, %v2743
        %v2747 = vunpack.c.l.s4 1966171168
        %v2748 = vunpack.c.0.s8 %v2747
        %v2749 = vlaneseq
        %v2750 = vshrl.u32 %v2749, 7
        %v2751 = vsub.s32 %v2748, %v2750
        %v2752 = vrot.slane %v2736, %v2751
        %v2754 = vunpack.c.l.s4 1966171168
        %v2755 = vunpack.c.0.s8 %v2754
        %v2756 = vlaneseq
        %v2757 = vshrl.u32 %v2756, 7
        %v2758 = vsub.s32 %v2755, %v2757
        %v2759 = vrot.slane %v2743, %v2758
        %v2761 = vunpack.c.l.s4 1966171168
        %v2762 = vunpack.c.0.s8 %v2761
        %v2763 = vlaneseq
        %v2764 = vshrl.u32 %v2763, 7
        %v2765 = vsub.s32 %v2762, %v2764
        %v2766 = vrot.slane %v2744, %v2765
        %v2768 = vunpack.c.l.s4 1966171168
        %v2769 = vunpack.c.0.s8 %v2768
        %v2770 = vlaneseq
        %v2771 = vshrl.u32 %v2770, 7
        %v2772 = vsub.s32 %v2769, %v2771
        %v2773 = vrot.slane %v2745, %v2772
        %v2774 = vcombine.high %v2752, %v2752
        %v2775 = vcombine.high %v2759, %v2759
        %v2776 = vcombine.high %v2766, %v2766
        %v2777 = vcombine.high %v2773, %v2773
        %2786 = vst.msk [vmem:[#allocation4 + $0x1] sm:$0x1] %vm788, %v2752
        %2787 = vst.msk [vmem:[#allocation4 + $0x9] sm:$0x1] %vm788, %v2766
        %2788 = vst.msk [vmem:[#allocation4 + $0x11] sm:$0x1] %vm788, %v2774
        %2789 = vst.msk [vmem:[#allocation4 + $0x19] sm:$0x1] %vm788, %v2776
        %2790 = vst.msk [vmem:[#allocation4 + $0x21] sm:$0x1] %vm788, %v2759
        %2791 = vst.msk [vmem:[#allocation4 + $0x29] sm:$0x1] %vm788, %v2773
        %2792 = vst.msk [vmem:[#allocation4 + $0x31] sm:$0x1] %vm788, %v2775
        %2793 = vst.msk [vmem:[#allocation4 + $0x39] sm:$0x1] %vm788, %v2777
        %2794 = vset.pattern.permute.xlu0 11
        %2795 = vperm.xlu0 %2794, %v707
        %v2796 = vpop.permute.xlu0 %2795
        %v2798 = vmul.f32 %v2796, %v787
        %v2800 = vcombine.high %v2798, %v2798
        %v2802 = vunpack.c.l.s4 1966171168
        %v2803 = vunpack.c.0.s8 %v2802
        %v2804 = vlaneseq
        %v2805 = vshrl.u32 %v2804, 7
        %v2806 = vsub.s32 %v2803, %v2805
        %v2807 = vrot.slane %v2798, %v2806
        %v2809 = vunpack.c.l.s4 1966171168
        %v2810 = vunpack.c.0.s8 %v2809
        %v2811 = vlaneseq
        %v2812 = vshrl.u32 %v2811, 7
        %v2813 = vsub.s32 %v2810, %v2812
        %v2814 = vrot.slane %v2800, %v2813
        %v2815 = vcombine.high %v2807, %v2807
        %v2816 = vcombine.high %v2814, %v2814
        %v2818 = vunpack.c.l.s4 1966171168
        %v2819 = vunpack.c.0.s8 %v2818
        %v2820 = vlaneseq
        %v2821 = vshrl.u32 %v2820, 7
        %v2822 = vsub.s32 %v2819, %v2821
        %v2823 = vrot.slane %v2807, %v2822
        %v2825 = vunpack.c.l.s4 1966171168
        %v2826 = vunpack.c.0.s8 %v2825
        %v2827 = vlaneseq
        %v2828 = vshrl.u32 %v2827, 7
        %v2829 = vsub.s32 %v2826, %v2828
        %v2830 = vrot.slane %v2814, %v2829
        %v2832 = vunpack.c.l.s4 1966171168
        %v2833 = vunpack.c.0.s8 %v2832
        %v2834 = vlaneseq
        %v2835 = vshrl.u32 %v2834, 7
        %v2836 = vsub.s32 %v2833, %v2835
        %v2837 = vrot.slane %v2815, %v2836
        %v2839 = vunpack.c.l.s4 1966171168
        %v2840 = vunpack.c.0.s8 %v2839
        %v2841 = vlaneseq
        %v2842 = vshrl.u32 %v2841, 7
        %v2843 = vsub.s32 %v2840, %v2842
        %v2844 = vrot.slane %v2816, %v2843
        %v2845 = vcombine.high %v2823, %v2823
        %v2846 = vcombine.high %v2830, %v2830
        %v2847 = vcombine.high %v2837, %v2837
        %v2848 = vcombine.high %v2844, %v2844
        %2857 = vst.msk [vmem:[#allocation5 + $0x1] sm:$0x1] %vm788, %v2823
        %2858 = vst.msk [vmem:[#allocation5 + $0x9] sm:$0x1] %vm788, %v2837
        %2859 = vst.msk [vmem:[#allocation5 + $0x11] sm:$0x1] %vm788, %v2845
        %2860 = vst.msk [vmem:[#allocation5 + $0x19] sm:$0x1] %vm788, %v2847
        %2861 = vst.msk [vmem:[#allocation5 + $0x21] sm:$0x1] %vm788, %v2830
        %2862 = vst.msk [vmem:[#allocation5 + $0x29] sm:$0x1] %vm788, %v2844
        %2863 = vst.msk [vmem:[#allocation5 + $0x31] sm:$0x1] %vm788, %v2846
        %2864 = vst.msk [vmem:[#allocation5 + $0x39] sm:$0x1] %vm788, %v2848
        %2865 = vset.pattern.permute.xlu0 27
        %2866 = vperm.xlu0 %2865, %v707
        %v2867 = vpop.permute.xlu0 %2866
        %v2868 = vlaneseq
        %v2869 = vshrl.u32 %v2868, 7
        %v2870 = vsub.s32 0, %v2869
        %v2871 = vrot.slane %v2867, %v2870
        %v2872 = vlaneseq
        %v2873 = vshrl.u32 %v2872, 7
        %v2874 = vsub.s32 1, %v2873
        %v2875 = vrot.slane %v2867, %v2874
        %v2876 = vlaneseq
        %v2877 = vshrl.u32 %v2876, 7
        %v2878 = vsub.s32 2, %v2877
        %v2879 = vrot.slane %v2867, %v2878
        %v2880 = vlaneseq
        %v2881 = vshrl.u32 %v2880, 7
        %v2882 = vsub.s32 3, %v2881
        %v2883 = vrot.slane %v2867, %v2882
        %v2884 = vlaneseq
        %v2885 = vshrl.u32 %v2884, 7
        %v2886 = vsub.s32 4, %v2885
        %v2887 = vrot.slane %v2867, %v2886
        %v2888 = vlaneseq
        %v2889 = vshrl.u32 %v2888, 7
        %v2890 = vsub.s32 5, %v2889
        %v2891 = vrot.slane %v2867, %v2890
        %v2892 = vlaneseq
        %v2893 = vshrl.u32 %v2892, 7
        %v2894 = vsub.s32 6, %v2893
        %v2895 = vrot.slane %v2867, %v2894
        %v2896 = vlaneseq
        %v2897 = vshrl.u32 %v2896, 7
        %v2898 = vsub.s32 7, %v2897
        %v2899 = vrot.slane %v2867, %v2898
        %2908 = vst.msk [vmem:[#allocation6 + $0x1] sm:$0x1] %vm788, %v2871
        %2909 = vst.msk [vmem:[#allocation6 + $0x9] sm:$0x1] %vm788, %v2875
        %2910 = vst.msk [vmem:[#allocation6 + $0x11] sm:$0x1] %vm788, %v2879
        %2911 = vst.msk [vmem:[#allocation6 + $0x19] sm:$0x1] %vm788, %v2883
        %2912 = vst.msk [vmem:[#allocation6 + $0x21] sm:$0x1] %vm788, %v2887
        %2913 = vst.msk [vmem:[#allocation6 + $0x29] sm:$0x1] %vm788, %v2891
        %2914 = vst.msk [vmem:[#allocation6 + $0x31] sm:$0x1] %vm788, %v2895
        %2915 = vst.msk [vmem:[#allocation6 + $0x39] sm:$0x1] %vm788, %v2899
        %v2916 = vld [vmem:[#allocation20 + $0xa] sm:$0x1]
        %v2917 = vlaneseq
        %v2918 = vshrl.u32 %v2917, 7
        %v2919 = vsub.s32 0, %v2918
        %v2920 = vrot.slane %v2916, %v2919
        %v2921 = vmul.f32 %v786, %v2920
        %v2922 = vmul.f32 %v2921, 1.442695
        %v2923 = vpow.pop %v2922
        %v2925 = vcombine.high %v2923, %v2923
        %v2927 = vunpack.c.l.s4 1966171168
        %v2928 = vunpack.c.0.s8 %v2927
        %v2929 = vlaneseq
        %v2930 = vshrl.u32 %v2929, 7
        %v2931 = vsub.s32 %v2928, %v2930
        %v2932 = vrot.slane %v2923, %v2931
        %v2934 = vunpack.c.l.s4 1966171168
        %v2935 = vunpack.c.0.s8 %v2934
        %v2936 = vlaneseq
        %v2937 = vshrl.u32 %v2936, 7
        %v2938 = vsub.s32 %v2935, %v2937
        %v2939 = vrot.slane %v2925, %v2938
        %v2940 = vcombine.high %v2932, %v2932
        %v2941 = vcombine.high %v2939, %v2939
        %v2943 = vunpack.c.l.s4 1966171168
        %v2944 = vunpack.c.0.s8 %v2943
        %v2945 = vlaneseq
        %v2946 = vshrl.u32 %v2945, 7
        %v2947 = vsub.s32 %v2944, %v2946
        %v2948 = vrot.slane %v2932, %v2947
        %v2950 = vunpack.c.l.s4 1966171168
        %v2951 = vunpack.c.0.s8 %v2950
        %v2952 = vlaneseq
        %v2953 = vshrl.u32 %v2952, 7
        %v2954 = vsub.s32 %v2951, %v2953
        %v2955 = vrot.slane %v2939, %v2954
        %v2957 = vunpack.c.l.s4 1966171168
        %v2958 = vunpack.c.0.s8 %v2957
        %v2959 = vlaneseq
        %v2960 = vshrl.u32 %v2959, 7
        %v2961 = vsub.s32 %v2958, %v2960
        %v2962 = vrot.slane %v2940, %v2961
        %v2964 = vunpack.c.l.s4 1966171168
        %v2965 = vunpack.c.0.s8 %v2964
        %v2966 = vlaneseq
        %v2967 = vshrl.u32 %v2966, 7
        %v2968 = vsub.s32 %v2965, %v2967
        %v2969 = vrot.slane %v2941, %v2968
        %v2970 = vcombine.high %v2948, %v2948
        %v2971 = vcombine.high %v2955, %v2955
        %v2972 = vcombine.high %v2962, %v2962
        %v2973 = vcombine.high %v2969, %v2969
        %2982 = vst.msk [vmem:[#allocation4 + $0x2] sm:$0x1] %vm788, %v2948
        %2983 = vst.msk [vmem:[#allocation4 + $0xa] sm:$0x1] %vm788, %v2962
        %2984 = vst.msk [vmem:[#allocation4 + $0x12] sm:$0x1] %vm788, %v2970
        %2985 = vst.msk [vmem:[#allocation4 + $0x1a] sm:$0x1] %vm788, %v2972
        %2986 = vst.msk [vmem:[#allocation4 + $0x22] sm:$0x1] %vm788, %v2955
        %2987 = vst.msk [vmem:[#allocation4 + $0x2a] sm:$0x1] %vm788, %v2969
        %2988 = vst.msk [vmem:[#allocation4 + $0x32] sm:$0x1] %vm788, %v2971
        %2989 = vst.msk [vmem:[#allocation4 + $0x3a] sm:$0x1] %vm788, %v2973
        %2990 = vset.pattern.permute.xlu0 12
        %2991 = vperm.xlu0 %2990, %v707
        %v2992 = vpop.permute.xlu0 %2991
        %v2994 = vmul.f32 %v2992, %v787
        %v2996 = vcombine.high %v2994, %v2994
        %v2998 = vunpack.c.l.s4 1966171168
        %v2999 = vunpack.c.0.s8 %v2998
        %v3000 = vlaneseq
        %v3001 = vshrl.u32 %v3000, 7
        %v3002 = vsub.s32 %v2999, %v3001
        %v3003 = vrot.slane %v2994, %v3002
        %v3005 = vunpack.c.l.s4 1966171168
        %v3006 = vunpack.c.0.s8 %v3005
        %v3007 = vlaneseq
        %v3008 = vshrl.u32 %v3007, 7
        %v3009 = vsub.s32 %v3006, %v3008
        %v3010 = vrot.slane %v2996, %v3009
        %v3011 = vcombine.high %v3003, %v3003
        %v3012 = vcombine.high %v3010, %v3010
        %v3014 = vunpack.c.l.s4 1966171168
        %v3015 = vunpack.c.0.s8 %v3014
        %v3016 = vlaneseq
        %v3017 = vshrl.u32 %v3016, 7
        %v3018 = vsub.s32 %v3015, %v3017
        %v3019 = vrot.slane %v3003, %v3018
        %v3021 = vunpack.c.l.s4 1966171168
        %v3022 = vunpack.c.0.s8 %v3021
        %v3023 = vlaneseq
        %v3024 = vshrl.u32 %v3023, 7
        %v3025 = vsub.s32 %v3022, %v3024
        %v3026 = vrot.slane %v3010, %v3025
        %v3028 = vunpack.c.l.s4 1966171168
        %v3029 = vunpack.c.0.s8 %v3028
        %v3030 = vlaneseq
        %v3031 = vshrl.u32 %v3030, 7
        %v3032 = vsub.s32 %v3029, %v3031
        %v3033 = vrot.slane %v3011, %v3032
        %v3035 = vunpack.c.l.s4 1966171168
        %v3036 = vunpack.c.0.s8 %v3035
        %v3037 = vlaneseq
        %v3038 = vshrl.u32 %v3037, 7
        %v3039 = vsub.s32 %v3036, %v3038
        %v3040 = vrot.slane %v3012, %v3039
        %v3041 = vcombine.high %v3019, %v3019
        %v3042 = vcombine.high %v3026, %v3026
        %v3043 = vcombine.high %v3033, %v3033
        %v3044 = vcombine.high %v3040, %v3040
        %3053 = vst.msk [vmem:[#allocation5 + $0x2] sm:$0x1] %vm788, %v3019
        %3054 = vst.msk [vmem:[#allocation5 + $0xa] sm:$0x1] %vm788, %v3033
        %3055 = vst.msk [vmem:[#allocation5 + $0x12] sm:$0x1] %vm788, %v3041
        %3056 = vst.msk [vmem:[#allocation5 + $0x1a] sm:$0x1] %vm788, %v3043
        %3057 = vst.msk [vmem:[#allocation5 + $0x22] sm:$0x1] %vm788, %v3026
        %3058 = vst.msk [vmem:[#allocation5 + $0x2a] sm:$0x1] %vm788, %v3040
        %3059 = vst.msk [vmem:[#allocation5 + $0x32] sm:$0x1] %vm788, %v3042
        %3060 = vst.msk [vmem:[#allocation5 + $0x3a] sm:$0x1] %vm788, %v3044
        %3061 = vset.pattern.permute.xlu0 28
        %3062 = vperm.xlu0 %3061, %v707
        %v3063 = vpop.permute.xlu0 %3062
        %v3064 = vlaneseq
        %v3065 = vshrl.u32 %v3064, 7
        %v3066 = vsub.s32 0, %v3065
        %v3067 = vrot.slane %v3063, %v3066
        %v3068 = vlaneseq
        %v3069 = vshrl.u32 %v3068, 7
        %v3070 = vsub.s32 1, %v3069
        %v3071 = vrot.slane %v3063, %v3070
        %v3072 = vlaneseq
        %v3073 = vshrl.u32 %v3072, 7
        %v3074 = vsub.s32 2, %v3073
        %v3075 = vrot.slane %v3063, %v3074
        %v3076 = vlaneseq
        %v3077 = vshrl.u32 %v3076, 7
        %v3078 = vsub.s32 3, %v3077
        %v3079 = vrot.slane %v3063, %v3078
        %v3080 = vlaneseq
        %v3081 = vshrl.u32 %v3080, 7
        %v3082 = vsub.s32 4, %v3081
        %v3083 = vrot.slane %v3063, %v3082
        %v3084 = vlaneseq
        %v3085 = vshrl.u32 %v3084, 7
        %v3086 = vsub.s32 5, %v3085
        %v3087 = vrot.slane %v3063, %v3086
        %v3088 = vlaneseq
        %v3089 = vshrl.u32 %v3088, 7
        %v3090 = vsub.s32 6, %v3089
        %v3091 = vrot.slane %v3063, %v3090
        %v3092 = vlaneseq
        %v3093 = vshrl.u32 %v3092, 7
        %v3094 = vsub.s32 7, %v3093
        %v3095 = vrot.slane %v3063, %v3094
        %3104 = vst.msk [vmem:[#allocation6 + $0x2] sm:$0x1] %vm788, %v3067
        %3105 = vst.msk [vmem:[#allocation6 + $0xa] sm:$0x1] %vm788, %v3071
        %3106 = vst.msk [vmem:[#allocation6 + $0x12] sm:$0x1] %vm788, %v3075
        %3107 = vst.msk [vmem:[#allocation6 + $0x1a] sm:$0x1] %vm788, %v3079
        %3108 = vst.msk [vmem:[#allocation6 + $0x22] sm:$0x1] %vm788, %v3083
        %3109 = vst.msk [vmem:[#allocation6 + $0x2a] sm:$0x1] %vm788, %v3087
        %3110 = vst.msk [vmem:[#allocation6 + $0x32] sm:$0x1] %vm788, %v3091
        %3111 = vst.msk [vmem:[#allocation6 + $0x3a] sm:$0x1] %vm788, %v3095
        %v3112 = vld [vmem:[#allocation20 + $0xb] sm:$0x1]
        %v3113 = vlaneseq
        %v3114 = vshrl.u32 %v3113, 7
        %v3115 = vsub.s32 0, %v3114
        %v3116 = vrot.slane %v3112, %v3115
        %v3117 = vmul.f32 %v786, %v3116
        %v3118 = vmul.f32 %v3117, 1.442695
        %v3119 = vpow.pop %v3118
        %v3121 = vcombine.high %v3119, %v3119
        %v3123 = vunpack.c.l.s4 1966171168
        %v3124 = vunpack.c.0.s8 %v3123
        %v3125 = vlaneseq
        %v3126 = vshrl.u32 %v3125, 7
        %v3127 = vsub.s32 %v3124, %v3126
        %v3128 = vrot.slane %v3119, %v3127
        %v3130 = vunpack.c.l.s4 1966171168
        %v3131 = vunpack.c.0.s8 %v3130
        %v3132 = vlaneseq
        %v3133 = vshrl.u32 %v3132, 7
        %v3134 = vsub.s32 %v3131, %v3133
        %v3135 = vrot.slane %v3121, %v3134
        %v3136 = vcombine.high %v3128, %v3128
        %v3137 = vcombine.high %v3135, %v3135
        %v3139 = vunpack.c.l.s4 1966171168
        %v3140 = vunpack.c.0.s8 %v3139
        %v3141 = vlaneseq
        %v3142 = vshrl.u32 %v3141, 7
        %v3143 = vsub.s32 %v3140, %v3142
        %v3144 = vrot.slane %v3128, %v3143
        %v3146 = vunpack.c.l.s4 1966171168
        %v3147 = vunpack.c.0.s8 %v3146
        %v3148 = vlaneseq
        %v3149 = vshrl.u32 %v3148, 7
        %v3150 = vsub.s32 %v3147, %v3149
        %v3151 = vrot.slane %v3135, %v3150
        %v3153 = vunpack.c.l.s4 1966171168
        %v3154 = vunpack.c.0.s8 %v3153
        %v3155 = vlaneseq
        %v3156 = vshrl.u32 %v3155, 7
        %v3157 = vsub.s32 %v3154, %v3156
        %v3158 = vrot.slane %v3136, %v3157
        %v3160 = vunpack.c.l.s4 1966171168
        %v3161 = vunpack.c.0.s8 %v3160
        %v3162 = vlaneseq
        %v3163 = vshrl.u32 %v3162, 7
        %v3164 = vsub.s32 %v3161, %v3163
        %v3165 = vrot.slane %v3137, %v3164
        %v3166 = vcombine.high %v3144, %v3144
        %v3167 = vcombine.high %v3151, %v3151
        %v3168 = vcombine.high %v3158, %v3158
        %v3169 = vcombine.high %v3165, %v3165
        %3178 = vst.msk [vmem:[#allocation4 + $0x3] sm:$0x1] %vm788, %v3144
        %3179 = vst.msk [vmem:[#allocation4 + $0xb] sm:$0x1] %vm788, %v3158
        %3180 = vst.msk [vmem:[#allocation4 + $0x13] sm:$0x1] %vm788, %v3166
        %3181 = vst.msk [vmem:[#allocation4 + $0x1b] sm:$0x1] %vm788, %v3168
        %3182 = vst.msk [vmem:[#allocation4 + $0x23] sm:$0x1] %vm788, %v3151
        %3183 = vst.msk [vmem:[#allocation4 + $0x2b] sm:$0x1] %vm788, %v3165
        %3184 = vst.msk [vmem:[#allocation4 + $0x33] sm:$0x1] %vm788, %v3167
        %3185 = vst.msk [vmem:[#allocation4 + $0x3b] sm:$0x1] %vm788, %v3169
        %3186 = vset.pattern.permute.xlu0 13
        %3187 = vperm.xlu0 %3186, %v707
        %v3188 = vpop.permute.xlu0 %3187
        %v3190 = vmul.f32 %v3188, %v787
        %v3192 = vcombine.high %v3190, %v3190
        %v3194 = vunpack.c.l.s4 1966171168
        %v3195 = vunpack.c.0.s8 %v3194
        %v3196 = vlaneseq
        %v3197 = vshrl.u32 %v3196, 7
        %v3198 = vsub.s32 %v3195, %v3197
        %v3199 = vrot.slane %v3190, %v3198
        %v3201 = vunpack.c.l.s4 1966171168
        %v3202 = vunpack.c.0.s8 %v3201
        %v3203 = vlaneseq
        %v3204 = vshrl.u32 %v3203, 7
        %v3205 = vsub.s32 %v3202, %v3204
        %v3206 = vrot.slane %v3192, %v3205
        %v3207 = vcombine.high %v3199, %v3199
        %v3208 = vcombine.high %v3206, %v3206
        %v3210 = vunpack.c.l.s4 1966171168
        %v3211 = vunpack.c.0.s8 %v3210
        %v3212 = vlaneseq
        %v3213 = vshrl.u32 %v3212, 7
        %v3214 = vsub.s32 %v3211, %v3213
        %v3215 = vrot.slane %v3199, %v3214
        %v3217 = vunpack.c.l.s4 1966171168
        %v3218 = vunpack.c.0.s8 %v3217
        %v3219 = vlaneseq
        %v3220 = vshrl.u32 %v3219, 7
        %v3221 = vsub.s32 %v3218, %v3220
        %v3222 = vrot.slane %v3206, %v3221
        %v3224 = vunpack.c.l.s4 1966171168
        %v3225 = vunpack.c.0.s8 %v3224
        %v3226 = vlaneseq
        %v3227 = vshrl.u32 %v3226, 7
        %v3228 = vsub.s32 %v3225, %v3227
        %v3229 = vrot.slane %v3207, %v3228
        %v3231 = vunpack.c.l.s4 1966171168
        %v3232 = vunpack.c.0.s8 %v3231
        %v3233 = vlaneseq
        %v3234 = vshrl.u32 %v3233, 7
        %v3235 = vsub.s32 %v3232, %v3234
        %v3236 = vrot.slane %v3208, %v3235
        %v3237 = vcombine.high %v3215, %v3215
        %v3238 = vcombine.high %v3222, %v3222
        %v3239 = vcombine.high %v3229, %v3229
        %v3240 = vcombine.high %v3236, %v3236
        %3249 = vst.msk [vmem:[#allocation5 + $0x3] sm:$0x1] %vm788, %v3215
        %3250 = vst.msk [vmem:[#allocation5 + $0xb] sm:$0x1] %vm788, %v3229
        %3251 = vst.msk [vmem:[#allocation5 + $0x13] sm:$0x1] %vm788, %v3237
        %3252 = vst.msk [vmem:[#allocation5 + $0x1b] sm:$0x1] %vm788, %v3239
        %3253 = vst.msk [vmem:[#allocation5 + $0x23] sm:$0x1] %vm788, %v3222
        %3254 = vst.msk [vmem:[#allocation5 + $0x2b] sm:$0x1] %vm788, %v3236
        %3255 = vst.msk [vmem:[#allocation5 + $0x33] sm:$0x1] %vm788, %v3238
        %3256 = vst.msk [vmem:[#allocation5 + $0x3b] sm:$0x1] %vm788, %v3240
        %3257 = vset.pattern.permute.xlu0 29
        %3258 = vperm.xlu0 %3257, %v707
        %v3259 = vpop.permute.xlu0 %3258
        %v3260 = vlaneseq
        %v3261 = vshrl.u32 %v3260, 7
        %v3262 = vsub.s32 0, %v3261
        %v3263 = vrot.slane %v3259, %v3262
        %v3264 = vlaneseq
        %v3265 = vshrl.u32 %v3264, 7
        %v3266 = vsub.s32 1, %v3265
        %v3267 = vrot.slane %v3259, %v3266
        %v3268 = vlaneseq
        %v3269 = vshrl.u32 %v3268, 7
        %v3270 = vsub.s32 2, %v3269
        %v3271 = vrot.slane %v3259, %v3270
        %v3272 = vlaneseq
        %v3273 = vshrl.u32 %v3272, 7
        %v3274 = vsub.s32 3, %v3273
        %v3275 = vrot.slane %v3259, %v3274
        %v3276 = vlaneseq
        %v3277 = vshrl.u32 %v3276, 7
        %v3278 = vsub.s32 4, %v3277
        %v3279 = vrot.slane %v3259, %v3278
        %v3280 = vlaneseq
        %v3281 = vshrl.u32 %v3280, 7
        %v3282 = vsub.s32 5, %v3281
        %v3283 = vrot.slane %v3259, %v3282
        %v3284 = vlaneseq
        %v3285 = vshrl.u32 %v3284, 7
        %v3286 = vsub.s32 6, %v3285
        %v3287 = vrot.slane %v3259, %v3286
        %v3288 = vlaneseq
        %v3289 = vshrl.u32 %v3288, 7
        %v3290 = vsub.s32 7, %v3289
        %v3291 = vrot.slane %v3259, %v3290
        %3300 = vst.msk [vmem:[#allocation6 + $0x3] sm:$0x1] %vm788, %v3263
        %3301 = vst.msk [vmem:[#allocation6 + $0xb] sm:$0x1] %vm788, %v3267
        %3302 = vst.msk [vmem:[#allocation6 + $0x13] sm:$0x1] %vm788, %v3271
        %3303 = vst.msk [vmem:[#allocation6 + $0x1b] sm:$0x1] %vm788, %v3275
        %3304 = vst.msk [vmem:[#allocation6 + $0x23] sm:$0x1] %vm788, %v3279
        %3305 = vst.msk [vmem:[#allocation6 + $0x2b] sm:$0x1] %vm788, %v3283
        %3306 = vst.msk [vmem:[#allocation6 + $0x33] sm:$0x1] %vm788, %v3287
        %3307 = vst.msk [vmem:[#allocation6 + $0x3b] sm:$0x1] %vm788, %v3291
        %v3308 = vld [vmem:[#allocation20 + $0xc] sm:$0x1]
        %v3309 = vlaneseq
        %v3310 = vshrl.u32 %v3309, 7
        %v3311 = vsub.s32 0, %v3310
        %v3312 = vrot.slane %v3308, %v3311
        %v3313 = vmul.f32 %v786, %v3312
        %v3314 = vmul.f32 %v3313, 1.442695
        %v3315 = vpow.pop %v3314
        %v3317 = vcombine.high %v3315, %v3315
        %v3319 = vunpack.c.l.s4 1966171168
        %v3320 = vunpack.c.0.s8 %v3319
        %v3321 = vlaneseq
        %v3322 = vshrl.u32 %v3321, 7
        %v3323 = vsub.s32 %v3320, %v3322
        %v3324 = vrot.slane %v3315, %v3323
        %v3326 = vunpack.c.l.s4 1966171168
        %v3327 = vunpack.c.0.s8 %v3326
        %v3328 = vlaneseq
        %v3329 = vshrl.u32 %v3328, 7
        %v3330 = vsub.s32 %v3327, %v3329
        %v3331 = vrot.slane %v3317, %v3330
        %v3332 = vcombine.high %v3324, %v3324
        %v3333 = vcombine.high %v3331, %v3331
        %v3335 = vunpack.c.l.s4 1966171168
        %v3336 = vunpack.c.0.s8 %v3335
        %v3337 = vlaneseq
        %v3338 = vshrl.u32 %v3337, 7
        %v3339 = vsub.s32 %v3336, %v3338
        %v3340 = vrot.slane %v3324, %v3339
        %v3342 = vunpack.c.l.s4 1966171168
        %v3343 = vunpack.c.0.s8 %v3342
        %v3344 = vlaneseq
        %v3345 = vshrl.u32 %v3344, 7
        %v3346 = vsub.s32 %v3343, %v3345
        %v3347 = vrot.slane %v3331, %v3346
        %v3349 = vunpack.c.l.s4 1966171168
        %v3350 = vunpack.c.0.s8 %v3349
        %v3351 = vlaneseq
        %v3352 = vshrl.u32 %v3351, 7
        %v3353 = vsub.s32 %v3350, %v3352
        %v3354 = vrot.slane %v3332, %v3353
        %v3356 = vunpack.c.l.s4 1966171168
        %v3357 = vunpack.c.0.s8 %v3356
        %v3358 = vlaneseq
        %v3359 = vshrl.u32 %v3358, 7
        %v3360 = vsub.s32 %v3357, %v3359
        %v3361 = vrot.slane %v3333, %v3360
        %v3362 = vcombine.high %v3340, %v3340
        %v3363 = vcombine.high %v3347, %v3347
        %v3364 = vcombine.high %v3354, %v3354
        %v3365 = vcombine.high %v3361, %v3361
        %3374 = vst.msk [vmem:[#allocation4 + $0x4] sm:$0x1] %vm788, %v3340
        %3375 = vst.msk [vmem:[#allocation4 + $0xc] sm:$0x1] %vm788, %v3354
        %3376 = vst.msk [vmem:[#allocation4 + $0x14] sm:$0x1] %vm788, %v3362
        %3377 = vst.msk [vmem:[#allocation4 + $0x1c] sm:$0x1] %vm788, %v3364
        %3378 = vst.msk [vmem:[#allocation4 + $0x24] sm:$0x1] %vm788, %v3347
        %3379 = vst.msk [vmem:[#allocation4 + $0x2c] sm:$0x1] %vm788, %v3361
        %3380 = vst.msk [vmem:[#allocation4 + $0x34] sm:$0x1] %vm788, %v3363
        %3381 = vst.msk [vmem:[#allocation4 + $0x3c] sm:$0x1] %vm788, %v3365
        %3382 = vset.pattern.permute.xlu0 14
        %3383 = vperm.xlu0 %3382, %v707
        %v3384 = vpop.permute.xlu0 %3383
        %v3386 = vmul.f32 %v3384, %v787
        %v3388 = vcombine.high %v3386, %v3386
        %v3390 = vunpack.c.l.s4 1966171168
        %v3391 = vunpack.c.0.s8 %v3390
        %v3392 = vlaneseq
        %v3393 = vshrl.u32 %v3392, 7
        %v3394 = vsub.s32 %v3391, %v3393
        %v3395 = vrot.slane %v3386, %v3394
        %v3397 = vunpack.c.l.s4 1966171168
        %v3398 = vunpack.c.0.s8 %v3397
        %v3399 = vlaneseq
        %v3400 = vshrl.u32 %v3399, 7
        %v3401 = vsub.s32 %v3398, %v3400
        %v3402 = vrot.slane %v3388, %v3401
        %v3403 = vcombine.high %v3395, %v3395
        %v3404 = vcombine.high %v3402, %v3402
        %v3406 = vunpack.c.l.s4 1966171168
        %v3407 = vunpack.c.0.s8 %v3406
        %v3408 = vlaneseq
        %v3409 = vshrl.u32 %v3408, 7
        %v3410 = vsub.s32 %v3407, %v3409
        %v3411 = vrot.slane %v3395, %v3410
        %v3413 = vunpack.c.l.s4 1966171168
        %v3414 = vunpack.c.0.s8 %v3413
        %v3415 = vlaneseq
        %v3416 = vshrl.u32 %v3415, 7
        %v3417 = vsub.s32 %v3414, %v3416
        %v3418 = vrot.slane %v3402, %v3417
        %v3420 = vunpack.c.l.s4 1966171168
        %v3421 = vunpack.c.0.s8 %v3420
        %v3422 = vlaneseq
        %v3423 = vshrl.u32 %v3422, 7
        %v3424 = vsub.s32 %v3421, %v3423
        %v3425 = vrot.slane %v3403, %v3424
        %v3427 = vunpack.c.l.s4 1966171168
        %v3428 = vunpack.c.0.s8 %v3427
        %v3429 = vlaneseq
        %v3430 = vshrl.u32 %v3429, 7
        %v3431 = vsub.s32 %v3428, %v3430
        %v3432 = vrot.slane %v3404, %v3431
        %v3433 = vcombine.high %v3411, %v3411
        %v3434 = vcombine.high %v3418, %v3418
        %v3435 = vcombine.high %v3425, %v3425
        %v3436 = vcombine.high %v3432, %v3432
        %3445 = vst.msk [vmem:[#allocation5 + $0x4] sm:$0x1] %vm788, %v3411
        %3446 = vst.msk [vmem:[#allocation5 + $0xc] sm:$0x1] %vm788, %v3425
        %3447 = vst.msk [vmem:[#allocation5 + $0x14] sm:$0x1] %vm788, %v3433
        %3448 = vst.msk [vmem:[#allocation5 + $0x1c] sm:$0x1] %vm788, %v3435
        %3449 = vst.msk [vmem:[#allocation5 + $0x24] sm:$0x1] %vm788, %v3418
        %3450 = vst.msk [vmem:[#allocation5 + $0x2c] sm:$0x1] %vm788, %v3432
        %3451 = vst.msk [vmem:[#allocation5 + $0x34] sm:$0x1] %vm788, %v3434
        %3452 = vst.msk [vmem:[#allocation5 + $0x3c] sm:$0x1] %vm788, %v3436
        %3453 = vset.pattern.permute.xlu0 30
        %3454 = vperm.xlu0 %3453, %v707
        %v3455 = vpop.permute.xlu0 %3454
        %v3456 = vlaneseq
        %v3457 = vshrl.u32 %v3456, 7
        %v3458 = vsub.s32 0, %v3457
        %v3459 = vrot.slane %v3455, %v3458
        %v3460 = vlaneseq
        %v3461 = vshrl.u32 %v3460, 7
        %v3462 = vsub.s32 1, %v3461
        %v3463 = vrot.slane %v3455, %v3462
        %v3464 = vlaneseq
        %v3465 = vshrl.u32 %v3464, 7
        %v3466 = vsub.s32 2, %v3465
        %v3467 = vrot.slane %v3455, %v3466
        %v3468 = vlaneseq
        %v3469 = vshrl.u32 %v3468, 7
        %v3470 = vsub.s32 3, %v3469
        %v3471 = vrot.slane %v3455, %v3470
        %v3472 = vlaneseq
        %v3473 = vshrl.u32 %v3472, 7
        %v3474 = vsub.s32 4, %v3473
        %v3475 = vrot.slane %v3455, %v3474
        %v3476 = vlaneseq
        %v3477 = vshrl.u32 %v3476, 7
        %v3478 = vsub.s32 5, %v3477
        %v3479 = vrot.slane %v3455, %v3478
        %v3480 = vlaneseq
        %v3481 = vshrl.u32 %v3480, 7
        %v3482 = vsub.s32 6, %v3481
        %v3483 = vrot.slane %v3455, %v3482
        %v3484 = vlaneseq
        %v3485 = vshrl.u32 %v3484, 7
        %v3486 = vsub.s32 7, %v3485
        %v3487 = vrot.slane %v3455, %v3486
        %3496 = vst.msk [vmem:[#allocation6 + $0x4] sm:$0x1] %vm788, %v3459
        %3497 = vst.msk [vmem:[#allocation6 + $0xc] sm:$0x1] %vm788, %v3463
        %3498 = vst.msk [vmem:[#allocation6 + $0x14] sm:$0x1] %vm788, %v3467
        %3499 = vst.msk [vmem:[#allocation6 + $0x1c] sm:$0x1] %vm788, %v3471
        %3500 = vst.msk [vmem:[#allocation6 + $0x24] sm:$0x1] %vm788, %v3475
        %3501 = vst.msk [vmem:[#allocation6 + $0x2c] sm:$0x1] %vm788, %v3479
        %3502 = vst.msk [vmem:[#allocation6 + $0x34] sm:$0x1] %vm788, %v3483
        %3503 = vst.msk [vmem:[#allocation6 + $0x3c] sm:$0x1] %vm788, %v3487
        %v3504 = vld [vmem:[#allocation20 + $0xd] sm:$0x1]
        %v3505 = vlaneseq
        %v3506 = vshrl.u32 %v3505, 7
        %v3507 = vsub.s32 0, %v3506
        %v3508 = vrot.slane %v3504, %v3507
        %v3509 = vmul.f32 %v786, %v3508
        %v3510 = vmul.f32 %v3509, 1.442695
        %v3511 = vpow.pop %v3510
        %v3513 = vcombine.high %v3511, %v3511
        %v3515 = vunpack.c.l.s4 1966171168
        %v3516 = vunpack.c.0.s8 %v3515
        %v3517 = vlaneseq
        %v3518 = vshrl.u32 %v3517, 7
        %v3519 = vsub.s32 %v3516, %v3518
        %v3520 = vrot.slane %v3511, %v3519
        %v3522 = vunpack.c.l.s4 1966171168
        %v3523 = vunpack.c.0.s8 %v3522
        %v3524 = vlaneseq
        %v3525 = vshrl.u32 %v3524, 7
        %v3526 = vsub.s32 %v3523, %v3525
        %v3527 = vrot.slane %v3513, %v3526
        %v3528 = vcombine.high %v3520, %v3520
        %v3529 = vcombine.high %v3527, %v3527
        %v3531 = vunpack.c.l.s4 1966171168
        %v3532 = vunpack.c.0.s8 %v3531
        %v3533 = vlaneseq
        %v3534 = vshrl.u32 %v3533, 7
        %v3535 = vsub.s32 %v3532, %v3534
        %v3536 = vrot.slane %v3520, %v3535
        %v3538 = vunpack.c.l.s4 1966171168
        %v3539 = vunpack.c.0.s8 %v3538
        %v3540 = vlaneseq
        %v3541 = vshrl.u32 %v3540, 7
        %v3542 = vsub.s32 %v3539, %v3541
        %v3543 = vrot.slane %v3527, %v3542
        %v3545 = vunpack.c.l.s4 1966171168
        %v3546 = vunpack.c.0.s8 %v3545
        %v3547 = vlaneseq
        %v3548 = vshrl.u32 %v3547, 7
        %v3549 = vsub.s32 %v3546, %v3548
        %v3550 = vrot.slane %v3528, %v3549
        %v3552 = vunpack.c.l.s4 1966171168
        %v3553 = vunpack.c.0.s8 %v3552
        %v3554 = vlaneseq
        %v3555 = vshrl.u32 %v3554, 7
        %v3556 = vsub.s32 %v3553, %v3555
        %v3557 = vrot.slane %v3529, %v3556
        %v3558 = vcombine.high %v3536, %v3536
        %v3559 = vcombine.high %v3543, %v3543
        %v3560 = vcombine.high %v3550, %v3550
        %v3561 = vcombine.high %v3557, %v3557
        %3570 = vst.msk [vmem:[#allocation4 + $0x5] sm:$0x1] %vm788, %v3536
        %3571 = vst.msk [vmem:[#allocation4 + $0xd] sm:$0x1] %vm788, %v3550
        %3572 = vst.msk [vmem:[#allocation4 + $0x15] sm:$0x1] %vm788, %v3558
        %3573 = vst.msk [vmem:[#allocation4 + $0x1d] sm:$0x1] %vm788, %v3560
        %3574 = vst.msk [vmem:[#allocation4 + $0x25] sm:$0x1] %vm788, %v3543
        %3575 = vst.msk [vmem:[#allocation4 + $0x2d] sm:$0x1] %vm788, %v3557
        %3576 = vst.msk [vmem:[#allocation4 + $0x35] sm:$0x1] %vm788, %v3559
        %3577 = vst.msk [vmem:[#allocation4 + $0x3d] sm:$0x1] %vm788, %v3561
        %3578 = vset.pattern.permute.xlu0 15
        %3579 = vperm.xlu0 %3578, %v707
        %v3580 = vpop.permute.xlu0 %3579
        %v3582 = vmul.f32 %v3580, %v787
        %v3584 = vcombine.high %v3582, %v3582
        %v3586 = vunpack.c.l.s4 1966171168
        %v3587 = vunpack.c.0.s8 %v3586
        %v3588 = vlaneseq
        %v3589 = vshrl.u32 %v3588, 7
        %v3590 = vsub.s32 %v3587, %v3589
        %v3591 = vrot.slane %v3582, %v3590
        %v3593 = vunpack.c.l.s4 1966171168
        %v3594 = vunpack.c.0.s8 %v3593
        %v3595 = vlaneseq
        %v3596 = vshrl.u32 %v3595, 7
        %v3597 = vsub.s32 %v3594, %v3596
        %v3598 = vrot.slane %v3584, %v3597
        %v3599 = vcombine.high %v3591, %v3591
        %v3600 = vcombine.high %v3598, %v3598
        %v3602 = vunpack.c.l.s4 1966171168
        %v3603 = vunpack.c.0.s8 %v3602
        %v3604 = vlaneseq
        %v3605 = vshrl.u32 %v3604, 7
        %v3606 = vsub.s32 %v3603, %v3605
        %v3607 = vrot.slane %v3591, %v3606
        %v3609 = vunpack.c.l.s4 1966171168
        %v3610 = vunpack.c.0.s8 %v3609
        %v3611 = vlaneseq
        %v3612 = vshrl.u32 %v3611, 7
        %v3613 = vsub.s32 %v3610, %v3612
        %v3614 = vrot.slane %v3598, %v3613
        %v3616 = vunpack.c.l.s4 1966171168
        %v3617 = vunpack.c.0.s8 %v3616
        %v3618 = vlaneseq
        %v3619 = vshrl.u32 %v3618, 7
        %v3620 = vsub.s32 %v3617, %v3619
        %v3621 = vrot.slane %v3599, %v3620
        %v3623 = vunpack.c.l.s4 1966171168
        %v3624 = vunpack.c.0.s8 %v3623
        %v3625 = vlaneseq
        %v3626 = vshrl.u32 %v3625, 7
        %v3627 = vsub.s32 %v3624, %v3626
        %v3628 = vrot.slane %v3600, %v3627
        %v3629 = vcombine.high %v3607, %v3607
        %v3630 = vcombine.high %v3614, %v3614
        %v3631 = vcombine.high %v3621, %v3621
        %v3632 = vcombine.high %v3628, %v3628
        %3641 = vst.msk [vmem:[#allocation5 + $0x5] sm:$0x1] %vm788, %v3607
        %3642 = vst.msk [vmem:[#allocation5 + $0xd] sm:$0x1] %vm788, %v3621
        %3643 = vst.msk [vmem:[#allocation5 + $0x15] sm:$0x1] %vm788, %v3629
        %3644 = vst.msk [vmem:[#allocation5 + $0x1d] sm:$0x1] %vm788, %v3631
        %3645 = vst.msk [vmem:[#allocation5 + $0x25] sm:$0x1] %vm788, %v3614
        %3646 = vst.msk [vmem:[#allocation5 + $0x2d] sm:$0x1] %vm788, %v3628
        %3647 = vst.msk [vmem:[#allocation5 + $0x35] sm:$0x1] %vm788, %v3630
        %3648 = vst.msk [vmem:[#allocation5 + $0x3d] sm:$0x1] %vm788, %v3632
        %3649 = vset.pattern.permute.xlu0 31
        %3650 = vperm.xlu0 %3649, %v707
        %v3651 = vpop.permute.xlu0 %3650
        %v3652 = vlaneseq
        %v3653 = vshrl.u32 %v3652, 7
        %v3654 = vsub.s32 0, %v3653
        %v3655 = vrot.slane %v3651, %v3654
        %v3656 = vlaneseq
        %v3657 = vshrl.u32 %v3656, 7
        %v3658 = vsub.s32 1, %v3657
        %v3659 = vrot.slane %v3651, %v3658
        %v3660 = vlaneseq
        %v3661 = vshrl.u32 %v3660, 7
        %v3662 = vsub.s32 2, %v3661
        %v3663 = vrot.slane %v3651, %v3662
        %v3664 = vlaneseq
        %v3665 = vshrl.u32 %v3664, 7
        %v3666 = vsub.s32 3, %v3665
        %v3667 = vrot.slane %v3651, %v3666
        %v3668 = vlaneseq
        %v3669 = vshrl.u32 %v3668, 7
        %v3670 = vsub.s32 4, %v3669
        %v3671 = vrot.slane %v3651, %v3670
        %v3672 = vlaneseq
        %v3673 = vshrl.u32 %v3672, 7
        %v3674 = vsub.s32 5, %v3673
        %v3675 = vrot.slane %v3651, %v3674
        %v3676 = vlaneseq
        %v3677 = vshrl.u32 %v3676, 7
        %v3678 = vsub.s32 6, %v3677
        %v3679 = vrot.slane %v3651, %v3678
        %v3680 = vlaneseq
        %v3681 = vshrl.u32 %v3680, 7
        %v3682 = vsub.s32 7, %v3681
        %v3683 = vrot.slane %v3651, %v3682
        %3692 = vst.msk [vmem:[#allocation6 + $0x5] sm:$0x1] %vm788, %v3655
        %3693 = vst.msk [vmem:[#allocation6 + $0xd] sm:$0x1] %vm788, %v3659
        %3694 = vst.msk [vmem:[#allocation6 + $0x15] sm:$0x1] %vm788, %v3663
        %3695 = vst.msk [vmem:[#allocation6 + $0x1d] sm:$0x1] %vm788, %v3667
        %3696 = vst.msk [vmem:[#allocation6 + $0x25] sm:$0x1] %vm788, %v3671
        %3697 = vst.msk [vmem:[#allocation6 + $0x2d] sm:$0x1] %vm788, %v3675
        %3698 = vst.msk [vmem:[#allocation6 + $0x35] sm:$0x1] %vm788, %v3679
        %3699 = vst.msk [vmem:[#allocation6 + $0x3d] sm:$0x1] %vm788, %v3683
        %v3700 = vld [vmem:[#allocation20 + $0xe] sm:$0x1]
        %v3701 = vlaneseq
        %v3702 = vshrl.u32 %v3701, 7
        %v3703 = vsub.s32 0, %v3702
        %v3704 = vrot.slane %v3700, %v3703
        %v3705 = vmul.f32 %v786, %v3704
        %v3706 = vmul.f32 %v3705, 1.442695
        %v3707 = vpow.pop %v3706
        %v3709 = vcombine.high %v3707, %v3707
        %v3711 = vunpack.c.l.s4 1966171168
        %v3712 = vunpack.c.0.s8 %v3711
        %v3713 = vlaneseq
        %v3714 = vshrl.u32 %v3713, 7
        %v3715 = vsub.s32 %v3712, %v3714
        %v3716 = vrot.slane %v3707, %v3715
        %v3718 = vunpack.c.l.s4 1966171168
        %v3719 = vunpack.c.0.s8 %v3718
        %v3720 = vlaneseq
        %v3721 = vshrl.u32 %v3720, 7
        %v3722 = vsub.s32 %v3719, %v3721
        %v3723 = vrot.slane %v3709, %v3722
        %v3724 = vcombine.high %v3716, %v3716
        %v3725 = vcombine.high %v3723, %v3723
        %v3727 = vunpack.c.l.s4 1966171168
        %v3728 = vunpack.c.0.s8 %v3727
        %v3729 = vlaneseq
        %v3730 = vshrl.u32 %v3729, 7
        %v3731 = vsub.s32 %v3728, %v3730
        %v3732 = vrot.slane %v3716, %v3731
        %v3734 = vunpack.c.l.s4 1966171168
        %v3735 = vunpack.c.0.s8 %v3734
        %v3736 = vlaneseq
        %v3737 = vshrl.u32 %v3736, 7
        %v3738 = vsub.s32 %v3735, %v3737
        %v3739 = vrot.slane %v3723, %v3738
        %v3741 = vunpack.c.l.s4 1966171168
        %v3742 = vunpack.c.0.s8 %v3741
        %v3743 = vlaneseq
        %v3744 = vshrl.u32 %v3743, 7
        %v3745 = vsub.s32 %v3742, %v3744
        %v3746 = vrot.slane %v3724, %v3745
        %v3748 = vunpack.c.l.s4 1966171168
        %v3749 = vunpack.c.0.s8 %v3748
        %v3750 = vlaneseq
        %v3751 = vshrl.u32 %v3750, 7
        %v3752 = vsub.s32 %v3749, %v3751
        %v3753 = vrot.slane %v3725, %v3752
        %v3754 = vcombine.high %v3732, %v3732
        %v3755 = vcombine.high %v3739, %v3739
        %v3756 = vcombine.high %v3746, %v3746
        %v3757 = vcombine.high %v3753, %v3753
        %3766 = vst.msk [vmem:[#allocation4 + $0x6] sm:$0x1] %vm788, %v3732
        %3767 = vst.msk [vmem:[#allocation4 + $0xe] sm:$0x1] %vm788, %v3746
        %3768 = vst.msk [vmem:[#allocation4 + $0x16] sm:$0x1] %vm788, %v3754
        %3769 = vst.msk [vmem:[#allocation4 + $0x1e] sm:$0x1] %vm788, %v3756
        %3770 = vst.msk [vmem:[#allocation4 + $0x26] sm:$0x1] %vm788, %v3739
        %3771 = vst.msk [vmem:[#allocation4 + $0x2e] sm:$0x1] %vm788, %v3753
        %3772 = vst.msk [vmem:[#allocation4 + $0x36] sm:$0x1] %vm788, %v3755
        %3773 = vst.msk [vmem:[#allocation4 + $0x3e] sm:$0x1] %vm788, %v3757
        %3774 = vset.pattern.permute.xlu0 16
        %3775 = vperm.xlu0 %3774, %v707
        %v3776 = vpop.permute.xlu0 %3775
        %v3778 = vmul.f32 %v3776, %v787
        %v3780 = vcombine.high %v3778, %v3778
        %v3782 = vunpack.c.l.s4 1966171168
        %v3783 = vunpack.c.0.s8 %v3782
        %v3784 = vlaneseq
        %v3785 = vshrl.u32 %v3784, 7
        %v3786 = vsub.s32 %v3783, %v3785
        %v3787 = vrot.slane %v3778, %v3786
        %v3789 = vunpack.c.l.s4 1966171168
        %v3790 = vunpack.c.0.s8 %v3789
        %v3791 = vlaneseq
        %v3792 = vshrl.u32 %v3791, 7
        %v3793 = vsub.s32 %v3790, %v3792
        %v3794 = vrot.slane %v3780, %v3793
        %v3795 = vcombine.high %v3787, %v3787
        %v3796 = vcombine.high %v3794, %v3794
        %v3798 = vunpack.c.l.s4 1966171168
        %v3799 = vunpack.c.0.s8 %v3798
        %v3800 = vlaneseq
        %v3801 = vshrl.u32 %v3800, 7
        %v3802 = vsub.s32 %v3799, %v3801
        %v3803 = vrot.slane %v3787, %v3802
        %v3805 = vunpack.c.l.s4 1966171168
        %v3806 = vunpack.c.0.s8 %v3805
        %v3807 = vlaneseq
        %v3808 = vshrl.u32 %v3807, 7
        %v3809 = vsub.s32 %v3806, %v3808
        %v3810 = vrot.slane %v3794, %v3809
        %v3812 = vunpack.c.l.s4 1966171168
        %v3813 = vunpack.c.0.s8 %v3812
        %v3814 = vlaneseq
        %v3815 = vshrl.u32 %v3814, 7
        %v3816 = vsub.s32 %v3813, %v3815
        %v3817 = vrot.slane %v3795, %v3816
        %v3819 = vunpack.c.l.s4 1966171168
        %v3820 = vunpack.c.0.s8 %v3819
        %v3821 = vlaneseq
        %v3822 = vshrl.u32 %v3821, 7
        %v3823 = vsub.s32 %v3820, %v3822
        %v3824 = vrot.slane %v3796, %v3823
        %v3825 = vcombine.high %v3803, %v3803
        %v3826 = vcombine.high %v3810, %v3810
        %v3827 = vcombine.high %v3817, %v3817
        %v3828 = vcombine.high %v3824, %v3824
        %3837 = vst.msk [vmem:[#allocation5 + $0x6] sm:$0x1] %vm788, %v3803
        %3838 = vst.msk [vmem:[#allocation5 + $0xe] sm:$0x1] %vm788, %v3817
        %3839 = vst.msk [vmem:[#allocation5 + $0x16] sm:$0x1] %vm788, %v3825
        %3840 = vst.msk [vmem:[#allocation5 + $0x1e] sm:$0x1] %vm788, %v3827
        %3841 = vst.msk [vmem:[#allocation5 + $0x26] sm:$0x1] %vm788, %v3810
        %3842 = vst.msk [vmem:[#allocation5 + $0x2e] sm:$0x1] %vm788, %v3824
        %3843 = vst.msk [vmem:[#allocation5 + $0x36] sm:$0x1] %vm788, %v3826
        %3844 = vst.msk [vmem:[#allocation5 + $0x3e] sm:$0x1] %vm788, %v3828
        %3845 = vset.pattern.permute.xlu0 32
        %3846 = vperm.xlu0 %3845, %v707
        %v3847 = vpop.permute.xlu0 %3846
        %v3848 = vlaneseq
        %v3849 = vshrl.u32 %v3848, 7
        %v3850 = vsub.s32 0, %v3849
        %v3851 = vrot.slane %v3847, %v3850
        %v3852 = vlaneseq
        %v3853 = vshrl.u32 %v3852, 7
        %v3854 = vsub.s32 1, %v3853
        %v3855 = vrot.slane %v3847, %v3854
        %v3856 = vlaneseq
        %v3857 = vshrl.u32 %v3856, 7
        %v3858 = vsub.s32 2, %v3857
        %v3859 = vrot.slane %v3847, %v3858
        %v3860 = vlaneseq
        %v3861 = vshrl.u32 %v3860, 7
        %v3862 = vsub.s32 3, %v3861
        %v3863 = vrot.slane %v3847, %v3862
        %v3864 = vlaneseq
        %v3865 = vshrl.u32 %v3864, 7
        %v3866 = vsub.s32 4, %v3865
        %v3867 = vrot.slane %v3847, %v3866
        %v3868 = vlaneseq
        %v3869 = vshrl.u32 %v3868, 7
        %v3870 = vsub.s32 5, %v3869
        %v3871 = vrot.slane %v3847, %v3870
        %v3872 = vlaneseq
        %v3873 = vshrl.u32 %v3872, 7
        %v3874 = vsub.s32 6, %v3873
        %v3875 = vrot.slane %v3847, %v3874
        %v3876 = vlaneseq
        %v3877 = vshrl.u32 %v3876, 7
        %v3878 = vsub.s32 7, %v3877
        %v3879 = vrot.slane %v3847, %v3878
        %3888 = vst.msk [vmem:[#allocation6 + $0x6] sm:$0x1] %vm788, %v3851
        %3889 = vst.msk [vmem:[#allocation6 + $0xe] sm:$0x1] %vm788, %v3855
        %3890 = vst.msk [vmem:[#allocation6 + $0x16] sm:$0x1] %vm788, %v3859
        %3891 = vst.msk [vmem:[#allocation6 + $0x1e] sm:$0x1] %vm788, %v3863
        %3892 = vst.msk [vmem:[#allocation6 + $0x26] sm:$0x1] %vm788, %v3867
        %3893 = vst.msk [vmem:[#allocation6 + $0x2e] sm:$0x1] %vm788, %v3871
        %3894 = vst.msk [vmem:[#allocation6 + $0x36] sm:$0x1] %vm788, %v3875
        %3895 = vst.msk [vmem:[#allocation6 + $0x3e] sm:$0x1] %vm788, %v3879
        %v3896 = vld [vmem:[#allocation20 + $0xf] sm:$0x1]
        %v3897 = vlaneseq
        %v3898 = vshrl.u32 %v3897, 7
        %v3899 = vsub.s32 0, %v3898
        %v3900 = vrot.slane %v3896, %v3899
        %v3901 = vmul.f32 %v786, %v3900
        %v3902 = vmul.f32 %v3901, 1.442695
        %v3903 = vpow.pop %v3902
        %v3905 = vcombine.high %v3903, %v3903
        %v3907 = vunpack.c.l.s4 1966171168
        %v3908 = vunpack.c.0.s8 %v3907
        %v3909 = vlaneseq
        %v3910 = vshrl.u32 %v3909, 7
        %v3911 = vsub.s32 %v3908, %v3910
        %v3912 = vrot.slane %v3903, %v3911
        %v3914 = vunpack.c.l.s4 1966171168
        %v3915 = vunpack.c.0.s8 %v3914
        %v3916 = vlaneseq
        %v3917 = vshrl.u32 %v3916, 7
        %v3918 = vsub.s32 %v3915, %v3917
        %v3919 = vrot.slane %v3905, %v3918
        %v3920 = vcombine.high %v3912, %v3912
        %v3921 = vcombine.high %v3919, %v3919
        %v3923 = vunpack.c.l.s4 1966171168
        %v3924 = vunpack.c.0.s8 %v3923
        %v3925 = vlaneseq
        %v3926 = vshrl.u32 %v3925, 7
        %v3927 = vsub.s32 %v3924, %v3926
        %v3928 = vrot.slane %v3912, %v3927
        %v3930 = vunpack.c.l.s4 1966171168
        %v3931 = vunpack.c.0.s8 %v3930
        %v3932 = vlaneseq
        %v3933 = vshrl.u32 %v3932, 7
        %v3934 = vsub.s32 %v3931, %v3933
        %v3935 = vrot.slane %v3919, %v3934
        %v3937 = vunpack.c.l.s4 1966171168
        %v3938 = vunpack.c.0.s8 %v3937
        %v3939 = vlaneseq
        %v3940 = vshrl.u32 %v3939, 7
        %v3941 = vsub.s32 %v3938, %v3940
        %v3942 = vrot.slane %v3920, %v3941
        %v3944 = vunpack.c.l.s4 1966171168
        %v3945 = vunpack.c.0.s8 %v3944
        %v3946 = vlaneseq
        %v3947 = vshrl.u32 %v3946, 7
        %v3948 = vsub.s32 %v3945, %v3947
        %v3949 = vrot.slane %v3921, %v3948
        %v3950 = vcombine.high %v3928, %v3928
        %v3951 = vcombine.high %v3935, %v3935
        %v3952 = vcombine.high %v3942, %v3942
        %v3953 = vcombine.high %v3949, %v3949
        %3962 = vst.msk [vmem:[#allocation4 + $0x7] sm:$0x1] %vm788, %v3928
        %3963 = vst.msk [vmem:[#allocation4 + $0xf] sm:$0x1] %vm788, %v3942
        %3964 = vst.msk [vmem:[#allocation4 + $0x17] sm:$0x1] %vm788, %v3950
        %3965 = vst.msk [vmem:[#allocation4 + $0x1f] sm:$0x1] %vm788, %v3952
        %3966 = vst.msk [vmem:[#allocation4 + $0x27] sm:$0x1] %vm788, %v3935
        %3967 = vst.msk [vmem:[#allocation4 + $0x2f] sm:$0x1] %vm788, %v3949
        %3968 = vst.msk [vmem:[#allocation4 + $0x37] sm:$0x1] %vm788, %v3951
        %3969 = vst.msk [vmem:[#allocation4 + $0x3f] sm:$0x1] %vm788, %v3953
        %3970 = vset.pattern.permute.xlu0 17
        %3971 = vperm.xlu0 %3970, %v707
        %v3972 = vpop.permute.xlu0 %3971
        %v3974 = vmul.f32 %v3972, %v787
        %v3976 = vcombine.high %v3974, %v3974
        %v3978 = vunpack.c.l.s4 1966171168
        %v3979 = vunpack.c.0.s8 %v3978
        %v3980 = vlaneseq
        %v3981 = vshrl.u32 %v3980, 7
        %v3982 = vsub.s32 %v3979, %v3981
        %v3983 = vrot.slane %v3974, %v3982
        %v3985 = vunpack.c.l.s4 1966171168
        %v3986 = vunpack.c.0.s8 %v3985
        %v3987 = vlaneseq
        %v3988 = vshrl.u32 %v3987, 7
        %v3989 = vsub.s32 %v3986, %v3988
        %v3990 = vrot.slane %v3976, %v3989
        %v3991 = vcombine.high %v3983, %v3983
        %v3992 = vcombine.high %v3990, %v3990
        %v3994 = vunpack.c.l.s4 1966171168
        %v3995 = vunpack.c.0.s8 %v3994
        %v3996 = vlaneseq
        %v3997 = vshrl.u32 %v3996, 7
        %v3998 = vsub.s32 %v3995, %v3997
        %v3999 = vrot.slane %v3983, %v3998
        %v4001 = vunpack.c.l.s4 1966171168
        %v4002 = vunpack.c.0.s8 %v4001
        %v4003 = vlaneseq
        %v4004 = vshrl.u32 %v4003, 7
        %v4005 = vsub.s32 %v4002, %v4004
        %v4006 = vrot.slane %v3990, %v4005
        %v4008 = vunpack.c.l.s4 1966171168
        %v4009 = vunpack.c.0.s8 %v4008
        %v4010 = vlaneseq
        %v4011 = vshrl.u32 %v4010, 7
        %v4012 = vsub.s32 %v4009, %v4011
        %v4013 = vrot.slane %v3991, %v4012
        %v4015 = vunpack.c.l.s4 1966171168
        %v4016 = vunpack.c.0.s8 %v4015
        %v4017 = vlaneseq
        %v4018 = vshrl.u32 %v4017, 7
        %v4019 = vsub.s32 %v4016, %v4018
        %v4020 = vrot.slane %v3992, %v4019
        %v4021 = vcombine.high %v3999, %v3999
        %v4022 = vcombine.high %v4006, %v4006
        %v4023 = vcombine.high %v4013, %v4013
        %v4024 = vcombine.high %v4020, %v4020
        %4033 = vst.msk [vmem:[#allocation5 + $0x7] sm:$0x1] %vm788, %v3999
        %4034 = vst.msk [vmem:[#allocation5 + $0xf] sm:$0x1] %vm788, %v4013
        %4035 = vst.msk [vmem:[#allocation5 + $0x17] sm:$0x1] %vm788, %v4021
        %4036 = vst.msk [vmem:[#allocation5 + $0x1f] sm:$0x1] %vm788, %v4023
        %4037 = vst.msk [vmem:[#allocation5 + $0x27] sm:$0x1] %vm788, %v4006
        %4038 = vst.msk [vmem:[#allocation5 + $0x2f] sm:$0x1] %vm788, %v4020
        %4039 = vst.msk [vmem:[#allocation5 + $0x37] sm:$0x1] %vm788, %v4022
        %4040 = vst.msk [vmem:[#allocation5 + $0x3f] sm:$0x1] %vm788, %v4024
        %4041 = vset.pattern.permute.xlu0 33
        %4042 = vperm.xlu0 %4041, %v707
        %v4043 = vpop.permute.xlu0 %4042
        %v4044 = vlaneseq
        %v4045 = vshrl.u32 %v4044, 7
        %v4046 = vsub.s32 0, %v4045
        %v4047 = vrot.slane %v4043, %v4046
        %v4048 = vlaneseq
        %v4049 = vshrl.u32 %v4048, 7
        %v4050 = vsub.s32 1, %v4049
        %v4051 = vrot.slane %v4043, %v4050
        %v4052 = vlaneseq
        %v4053 = vshrl.u32 %v4052, 7
        %v4054 = vsub.s32 2, %v4053
        %v4055 = vrot.slane %v4043, %v4054
        %v4056 = vlaneseq
        %v4057 = vshrl.u32 %v4056, 7
        %v4058 = vsub.s32 3, %v4057
        %v4059 = vrot.slane %v4043, %v4058
        %v4060 = vlaneseq
        %v4061 = vshrl.u32 %v4060, 7
        %v4062 = vsub.s32 4, %v4061
        %v4063 = vrot.slane %v4043, %v4062
        %v4064 = vlaneseq
        %v4065 = vshrl.u32 %v4064, 7
        %v4066 = vsub.s32 5, %v4065
        %v4067 = vrot.slane %v4043, %v4066
        %v4068 = vlaneseq
        %v4069 = vshrl.u32 %v4068, 7
        %v4070 = vsub.s32 6, %v4069
        %v4071 = vrot.slane %v4043, %v4070
        %v4072 = vlaneseq
        %v4073 = vshrl.u32 %v4072, 7
        %v4074 = vsub.s32 7, %v4073
        %v4075 = vrot.slane %v4043, %v4074
        %4084 = vst.msk [vmem:[#allocation6 + $0x7] sm:$0x1] %vm788, %v4047
        %4085 = vst.msk [vmem:[#allocation6 + $0xf] sm:$0x1] %vm788, %v4051
        %4086 = vst.msk [vmem:[#allocation6 + $0x17] sm:$0x1] %vm788, %v4055
        %4087 = vst.msk [vmem:[#allocation6 + $0x1f] sm:$0x1] %vm788, %v4059
        %4088 = vst.msk [vmem:[#allocation6 + $0x27] sm:$0x1] %vm788, %v4063
        %4089 = vst.msk [vmem:[#allocation6 + $0x2f] sm:$0x1] %vm788, %v4067
        %4090 = vst.msk [vmem:[#allocation6 + $0x37] sm:$0x1] %vm788, %v4071
        %4091 = vst.msk [vmem:[#allocation6 + $0x3f] sm:$0x1] %vm788, %v4075
        %v4092 = vld [vmem:[#allocation2 + $0x8] sm:$0xff]
        %v4093 = vld [vmem:[#allocation4] sm:$0xff]
        %v4094 = vmul.f32 %v4093, %v4092
        %v4095 = vld [vmem:[#allocation5] sm:$0xff]
        %v4096 = vadd.f32 %v4094, %v4095
        %v4097 = vld [vmem:[#allocation7] sm:$0x1]
        %v4098 = vld [vmem:[#allocation6] sm:$0xff]
        %v4099 = vmul.f32 %v4098, %v4096
        %v4100 = vsel %vm585, %v4099, 0.0
        %v4101 = vrot.slane %v4100, 4
        %v4102 = vadd.f32 %v4100, %v4101
        %v4103 = vrot.slane %v4102, 2
        %v4104 = vadd.f32 %v4102, %v4103
        %v4105 = vrot.slane %v4104, 1
        %v4106 = vadd.f32 %v4104, %v4105
        %v4107 = vadd.f32 %v4097, %v4106
        %4108 = vst.msk [vmem:[#allocation7] sm:$0x1] %vm788, %v4107
        %v4109 = vld [vmem:[%s2383] sm:$0xff]
        %v4110 = vmul.f32 %v4109, %v4096
        %v4111 = vld [vmem:[%s2386] sm:$0xff]
        %v4112 = vadd.f32 %v4110, %v4111
        %v4113 = vld [vmem:[%s2389] sm:$0x1]
        %v4114 = vld [vmem:[%s2391] sm:$0xff]
        %v4115 = vmul.f32 %v4114, %v4112
        %v4116 = vsel %vm585, %v4115, 0.0
        %v4117 = vrot.slane %v4116, 4
        %v4118 = vadd.f32 %v4116, %v4117
        %v4119 = vrot.slane %v4118, 2
        %v4120 = vadd.f32 %v4118, %v4119
        %v4121 = vrot.slane %v4120, 1
        %v4122 = vadd.f32 %v4120, %v4121
        %v4123 = vadd.f32 %v4113, %v4122
        %4124 = vst.msk [vmem:[%s2389] sm:$0x1] %vm788, %v4123
        %v4125 = vld [vmem:[%s2403] sm:$0xff]
        %v4126 = vmul.f32 %v4125, %v4112
        %v4127 = vld [vmem:[%s2406] sm:$0xff]
        %v4128 = vadd.f32 %v4126, %v4127
        %v4129 = vld [vmem:[%s2409] sm:$0x1]
        %v4130 = vld [vmem:[%s2411] sm:$0xff]
        %v4131 = vmul.f32 %v4130, %v4128
        %v4132 = vsel %vm585, %v4131, 0.0
        %v4133 = vrot.slane %v4132, 4
        %v4134 = vadd.f32 %v4132, %v4133
        %v4135 = vrot.slane %v4134, 2
        %v4136 = vadd.f32 %v4134, %v4135
        %v4137 = vrot.slane %v4136, 1
        %v4138 = vadd.f32 %v4136, %v4137
        %v4139 = vadd.f32 %v4129, %v4138
        %4140 = vst.msk [vmem:[%s2409] sm:$0x1] %vm788, %v4139
        %v4141 = vld [vmem:[%s2423] sm:$0xff]
        %v4142 = vmul.f32 %v4141, %v4128
        %v4143 = vld [vmem:[%s2426] sm:$0xff]
        %v4144 = vadd.f32 %v4142, %v4143
        %v4145 = vld [vmem:[%s2429] sm:$0x1]
        %v4146 = vld [vmem:[%s2431] sm:$0xff]
        %v4147 = vmul.f32 %v4146, %v4144
        %v4148 = vsel %vm585, %v4147, 0.0
        %v4149 = vrot.slane %v4148, 4
        %v4150 = vadd.f32 %v4148, %v4149
        %v4151 = vrot.slane %v4150, 2
        %v4152 = vadd.f32 %v4150, %v4151
        %v4153 = vrot.slane %v4152, 1
        %v4154 = vadd.f32 %v4152, %v4153
        %v4155 = vadd.f32 %v4145, %v4154
        %4156 = vst.msk [vmem:[%s2429] sm:$0x1] %vm788, %v4155
        %v4157 = vld [vmem:[%s2443] sm:$0xff]
        %v4158 = vmul.f32 %v4157, %v4144
        %v4159 = vld [vmem:[%s2446] sm:$0xff]
        %v4160 = vadd.f32 %v4158, %v4159
        %v4161 = vld [vmem:[%s2449] sm:$0x1]
        %v4162 = vld [vmem:[%s2451] sm:$0xff]
        %v4163 = vmul.f32 %v4162, %v4160
        %v4164 = vsel %vm585, %v4163, 0.0
        %v4165 = vrot.slane %v4164, 4
        %v4166 = vadd.f32 %v4164, %v4165
        %v4167 = vrot.slane %v4166, 2
        %v4168 = vadd.f32 %v4166, %v4167
        %v4169 = vrot.slane %v4168, 1
        %v4170 = vadd.f32 %v4168, %v4169
        %v4171 = vadd.f32 %v4161, %v4170
        %4172 = vst.msk [vmem:[%s2449] sm:$0x1] %vm788, %v4171
        %v4173 = vld [vmem:[%s2463] sm:$0xff]
        %v4174 = vmul.f32 %v4173, %v4160
        %v4175 = vld [vmem:[%s2466] sm:$0xff]
        %v4176 = vadd.f32 %v4174, %v4175
        %v4177 = vld [vmem:[%s2469] sm:$0x1]
        %v4178 = vld [vmem:[%s2471] sm:$0xff]
        %v4179 = vmul.f32 %v4178, %v4176
        %v4180 = vsel %vm585, %v4179, 0.0
        %v4181 = vrot.slane %v4180, 4
        %v4182 = vadd.f32 %v4180, %v4181
        %v4183 = vrot.slane %v4182, 2
        %v4184 = vadd.f32 %v4182, %v4183
        %v4185 = vrot.slane %v4184, 1
        %v4186 = vadd.f32 %v4184, %v4185
        %v4187 = vadd.f32 %v4177, %v4186
        %4188 = vst.msk [vmem:[%s2469] sm:$0x1] %vm788, %v4187
        %v4189 = vld [vmem:[%s2483] sm:$0xff]
        %v4190 = vmul.f32 %v4189, %v4176
        %v4191 = vld [vmem:[%s2486] sm:$0xff]
        %v4192 = vadd.f32 %v4190, %v4191
        %v4193 = vld [vmem:[%s2489] sm:$0x1]
        %v4194 = vld [vmem:[%s2491] sm:$0xff]
        %v4195 = vmul.f32 %v4194, %v4192
        %v4196 = vsel %vm585, %v4195, 0.0
        %v4197 = vrot.slane %v4196, 4
        %v4198 = vadd.f32 %v4196, %v4197
        %v4199 = vrot.slane %v4198, 2
        %v4200 = vadd.f32 %v4198, %v4199
        %v4201 = vrot.slane %v4200, 1
        %v4202 = vadd.f32 %v4200, %v4201
        %v4203 = vadd.f32 %v4193, %v4202
        %4204 = vst.msk [vmem:[%s2489] sm:$0x1] %vm788, %v4203
        %v4205 = vld [vmem:[%s2503] sm:$0xff]
        %v4206 = vmul.f32 %v4205, %v4192
        %v4207 = vld [vmem:[%s2506] sm:$0xff]
        %v4208 = vadd.f32 %v4206, %v4207
        %v4209 = vld [vmem:[%s2509] sm:$0x1]
        %v4210 = vld [vmem:[%s2511] sm:$0xff]
        %v4211 = vmul.f32 %v4210, %v4208
        %v4212 = vsel %vm585, %v4211, 0.0
        %v4213 = vrot.slane %v4212, 4
        %v4214 = vadd.f32 %v4212, %v4213
        %v4215 = vrot.slane %v4214, 2
        %v4216 = vadd.f32 %v4214, %v4215
        %v4217 = vrot.slane %v4216, 1
        %v4218 = vadd.f32 %v4216, %v4217
        %v4219 = vadd.f32 %v4209, %v4218
        %4220 = vst.msk [vmem:[%s2509] sm:$0x1] %vm788, %v4219
        %4221 = vst.msk [vmem:[#allocation2 + $0x8] sm:$0xff] %vm585, %v4208
        %v4222 = vld [vmem:[#allocation7] sm:$0x1]
        %v4223 = vld [vmem:[#allocation7 + $0x1] sm:$0x1]
        %v4224 = vld [vmem:[#allocation7 + $0x2] sm:$0x1]
        %v4225 = vld [vmem:[#allocation7 + $0x3] sm:$0x1]
        %v4226 = vld [vmem:[#allocation7 + $0x4] sm:$0x1]
        %v4227 = vld [vmem:[#allocation7 + $0x5] sm:$0x1]
        %v4228 = vld [vmem:[#allocation7 + $0x6] sm:$0x1]
        %v4229 = vld [vmem:[#allocation7 + $0x7] sm:$0x1]
        %v4230 = vld [vmem:[#allocation22] sm:$0x1]
        %v4232 = vlaneseq
        %v4233 = vshrl.u32 %v4232, 7
        %v4234 = vsub.s32 0, %v4233
        %v4235 = vrot.slane %v4230, %v4234
        %v4237 = vmul.f32 %v4235, %v632
        %v4239 = vcombine.high %v4237, %v4237
        %v4241 = vunpack.c.l.s4 1966171168
        %v4242 = vunpack.c.0.s8 %v4241
        %v4243 = vlaneseq
        %v4244 = vshrl.u32 %v4243, 7
        %v4245 = vsub.s32 %v4242, %v4244
        %v4246 = vrot.slane %v4237, %v4245
        %v4248 = vunpack.c.l.s4 1966171168
        %v4249 = vunpack.c.0.s8 %v4248
        %v4250 = vlaneseq
        %v4251 = vshrl.u32 %v4250, 7
        %v4252 = vsub.s32 %v4249, %v4251
        %v4253 = vrot.slane %v4239, %v4252
        %v4254 = vcombine.high %v4246, %v4246
        %v4255 = vcombine.high %v4253, %v4253
        %v4257 = vunpack.c.l.s4 1966171168
        %v4258 = vunpack.c.0.s8 %v4257
        %v4259 = vlaneseq
        %v4260 = vshrl.u32 %v4259, 7
        %v4261 = vsub.s32 %v4258, %v4260
        %v4262 = vrot.slane %v4246, %v4261
        %v4264 = vunpack.c.l.s4 1966171168
        %v4265 = vunpack.c.0.s8 %v4264
        %v4266 = vlaneseq
        %v4267 = vshrl.u32 %v4266, 7
        %v4268 = vsub.s32 %v4265, %v4267
        %v4269 = vrot.slane %v4253, %v4268
        %v4271 = vunpack.c.l.s4 1966171168
        %v4272 = vunpack.c.0.s8 %v4271
        %v4273 = vlaneseq
        %v4274 = vshrl.u32 %v4273, 7
        %v4275 = vsub.s32 %v4272, %v4274
        %v4276 = vrot.slane %v4254, %v4275
        %v4278 = vunpack.c.l.s4 1966171168
        %v4279 = vunpack.c.0.s8 %v4278
        %v4280 = vlaneseq
        %v4281 = vshrl.u32 %v4280, 7
        %v4282 = vsub.s32 %v4279, %v4281
        %v4283 = vrot.slane %v4255, %v4282
        %v4284 = vcombine.high %v4262, %v4262
        %v4285 = vcombine.high %v4269, %v4269
        %v4286 = vcombine.high %v4276, %v4276
        %v4287 = vcombine.high %v4283, %v4283
        %v4296 = vadd.f32 %v4222, %v4262
        %v4297 = vadd.f32 %v4223, %v4276
        %v4298 = vadd.f32 %v4224, %v4284
        %v4299 = vadd.f32 %v4225, %v4286
        %v4300 = vadd.f32 %v4226, %v4269
        %v4301 = vadd.f32 %v4227, %v4283
        %v4302 = vadd.f32 %v4228, %v4285
        %v4303 = vadd.f32 %v4229, %v4287
        %v4304 = vxor.u32 %v580, 2147483648
        %v4305 = vmul.f32 %v4304, 1.442695
        %v4306 = vpow.pop %v4305
        %v4307 = vadd.f32 %v4306, 1.0
        %v4308 = vrcp.pop %v4307
        %v4309 = vmul.f32 1.0, %v4308
        %v4310 = vmul.f32 %v580, %v4309
        %v4312 = vcombine.high %v4310, %v4310
        %v4314 = vunpack.c.l.s4 1966171168
        %v4315 = vunpack.c.0.s8 %v4314
        %v4316 = vlaneseq
        %v4317 = vshrl.u32 %v4316, 7
        %v4318 = vsub.s32 %v4315, %v4317
        %v4319 = vrot.slane %v4310, %v4318
        %v4321 = vunpack.c.l.s4 1966171168
        %v4322 = vunpack.c.0.s8 %v4321
        %v4323 = vlaneseq
        %v4324 = vshrl.u32 %v4323, 7
        %v4325 = vsub.s32 %v4322, %v4324
        %v4326 = vrot.slane %v4312, %v4325
        %v4327 = vcombine.high %v4319, %v4319
        %v4328 = vcombine.high %v4326, %v4326
        %v4330 = vunpack.c.l.s4 1966171168
        %v4331 = vunpack.c.0.s8 %v4330
        %v4332 = vlaneseq
        %v4333 = vshrl.u32 %v4332, 7
        %v4334 = vsub.s32 %v4331, %v4333
        %v4335 = vrot.slane %v4319, %v4334
        %v4337 = vunpack.c.l.s4 1966171168
        %v4338 = vunpack.c.0.s8 %v4337
        %v4339 = vlaneseq
        %v4340 = vshrl.u32 %v4339, 7
        %v4341 = vsub.s32 %v4338, %v4340
        %v4342 = vrot.slane %v4326, %v4341
        %v4344 = vunpack.c.l.s4 1966171168
        %v4345 = vunpack.c.0.s8 %v4344
        %v4346 = vlaneseq
        %v4347 = vshrl.u32 %v4346, 7
        %v4348 = vsub.s32 %v4345, %v4347
        %v4349 = vrot.slane %v4327, %v4348
        %v4351 = vunpack.c.l.s4 1966171168
        %v4352 = vunpack.c.0.s8 %v4351
        %v4353 = vlaneseq
        %v4354 = vshrl.u32 %v4353, 7
        %v4355 = vsub.s32 %v4352, %v4354
        %v4356 = vrot.slane %v4328, %v4355
        %v4357 = vcombine.high %v4335, %v4335
        %v4358 = vcombine.high %v4342, %v4342
        %v4359 = vcombine.high %v4349, %v4349
        %v4360 = vcombine.high %v4356, %v4356
        %4361 = vrot.lane.b32.xlu0 %v4335, 64
        %v4362 = vpop.permute.xlu0 %4361
        %4363 = vrot.lane.b32.xlu0 %v4349, 64
        %v4364 = vpop.permute.xlu0 %4363
        %4365 = vrot.lane.b32.xlu0 %v4357, 64
        %v4366 = vpop.permute.xlu0 %4365
        %4367 = vrot.lane.b32.xlu0 %v4359, 64
        %v4368 = vpop.permute.xlu0 %4367
        %4369 = vrot.lane.b32.xlu0 %v4342, 64
        %v4370 = vpop.permute.xlu0 %4369
        %4371 = vrot.lane.b32.xlu0 %v4356, 64
        %v4372 = vpop.permute.xlu0 %4371
        %4373 = vrot.lane.b32.xlu0 %v4358, 64
        %v4374 = vpop.permute.xlu0 %4373
        %4375 = vrot.lane.b32.xlu0 %v4360, 64
        %v4376 = vpop.permute.xlu0 %4375
        %v4385 = vmul.f32 %v4296, %v4362
        %v4386 = vmul.f32 %v4297, %v4364
        %v4387 = vmul.f32 %v4298, %v4366
        %v4388 = vmul.f32 %v4299, %v4368
        %v4389 = vmul.f32 %v4300, %v4370
        %v4390 = vmul.f32 %v4301, %v4372
        %v4391 = vmul.f32 %v4302, %v4374
        %v4392 = vmul.f32 %v4303, %v4376
        %v4393 = vld [vmem:[#allocation23] sm:$0xf]
        %v4394 = vld [vmem:[#allocation23 + $0x4] sm:$0xf]
        %v4395 = vld [vmem:[#allocation23 + $0x8] sm:$0xf]
        %v4396 = vld [vmem:[#allocation23 + $0xc] sm:$0xf]
        %v4397 = vld [vmem:[#allocation23 + $0x10] sm:$0xf]
        %v4398 = vld [vmem:[#allocation23 + $0x14] sm:$0xf]
        %v4399 = vld [vmem:[#allocation23 + $0x18] sm:$0xf]
        %v4400 = vld [vmem:[#allocation23 + $0x1c] sm:$0xf]
        %v4401 = vpack.c.bf16 %v4385, %v4385
        %v4402 = vpack.c.bf16 %v4386, %v4386
        %v4403 = vpack.c.bf16 %v4387, %v4387
        %v4404 = vpack.c.bf16 %v4388, %v4388
        %v4405 = vpack.c.bf16 %v4389, %v4389
        %v4406 = vpack.c.bf16 %v4390, %v4390
        %v4407 = vpack.c.bf16 %v4391, %v4391
        %v4408 = vpack.c.bf16 %v4392, %v4392
        %v4417 = vunpack.c.l.b16 %v4401
        %v4418 = vunpack.c.l.b16 %v4402
        %v4419 = vunpack.c.l.b16 %v4403
        %v4420 = vunpack.c.l.b16 %v4404
        %v4421 = vunpack.c.l.b16 %v4405
        %v4422 = vunpack.c.l.b16 %v4406
        %v4423 = vunpack.c.l.b16 %v4407
        %v4424 = vunpack.c.l.b16 %v4408
        %v4425 = vrot.slane %v4418, 7
        %vm4426 = vcmask 1041409
        %v4427 = vsel %vm4426, %v4425, %v4417
        %v4428 = vrot.slane %v4419, 6
        %vm4429 = vcmask 1042434
        %v4430 = vsel %vm4429, %v4428, %v4427
        %v4431 = vrot.slane %v4420, 5
        %vm4432 = vcmask 1043459
        %v4433 = vsel %vm4432, %v4431, %v4430
        %v4434 = vrot.slane %v4421, 4
        %vm4435 = vcmask 1044484
        %v4436 = vsel %vm4435, %v4434, %v4433
        %v4437 = vrot.slane %v4422, 3
        %vm4438 = vcmask 1045509
        %v4439 = vsel %vm4438, %v4437, %v4436
        %v4440 = vrot.slane %v4423, 2
        %vm4441 = vcmask 1046534
        %v4442 = vsel %vm4441, %v4440, %v4439
        %v4443 = vrot.slane %v4424, 1
        %vm4444 = vcmask 1047559
        %v4445 = vsel %vm4444, %v4443, %v4442
        %v4446 = vpack.c.b16 %v4445, %v4445
        %v4455 = vunpack.c.l.b16 %v4393
        %v4456 = vunpack.c.l.b16 %v4394
        %v4457 = vunpack.c.l.b16 %v4395
        %v4458 = vunpack.c.l.b16 %v4396
        %v4459 = vunpack.c.l.b16 %v4397
        %v4460 = vunpack.c.l.b16 %v4398
        %v4461 = vunpack.c.l.b16 %v4399
        %v4462 = vunpack.c.l.b16 %v4400
        %v4463 = vpack.c.b16 %v4456, %v4455
        %v4464 = vpack.c.b16 %v4458, %v4457
        %v4465 = vpack.c.b16 %v4460, %v4459
        %v4466 = vpack.c.b16 %v4462, %v4461
        %v4472 = vsel %vm585, %v4446, 0
        %4474 = vmatprep.subr.bf16.mxu0 0
        %4475 = vmatpush1.bf16.msra.mxu0 %v4463
        %4476 = vmatprep.subr.bf16.mxu0 0
        %4477 = vmatpush1.bf16.msra.mxu0 %v4464
        %4478 = vmatprep.subr.bf16.mxu0 0
        %4479 = vmatpush1.bf16.msra.mxu0 %v4465
        %4480 = vmatprep.subr.bf16.mxu0 0
        %4481 = vmatpush1.bf16.msra.mxu0 %v4466
        %4482 = vmatprep.subr.bf16.mxu0 0
        %4483 = vmatpush1.bf16.msra.mxu0 0
        %4484 = vmatprep.subr.bf16.mxu0 0
        %4485 = vmatpush1.bf16.msra.mxu0 0
        %4486 = vmatprep.subr.bf16.mxu0 0
        %4487 = vmatpush1.bf16.msra.mxu0 0
        %4488 = vmatprep.subr.bf16.mxu0 0
        %4489 = vmatpush1.bf16.msra.mxu0 0
        %4490 = vmatprep.subr.bf16.mxu0 0
        %4491 = vmatpush1.bf16.msra.mxu0 0
        %4492 = vmatprep.subr.bf16.mxu0 0
        %4493 = vmatpush1.bf16.msra.mxu0 0
        %4494 = vmatprep.subr.bf16.mxu0 0
        %4495 = vmatpush1.bf16.msra.mxu0 0
        %4496 = vmatprep.subr.bf16.mxu0 0
        %4497 = vmatpush1.bf16.msra.mxu0 0
        %4498 = vmatprep.subr.bf16.mxu0 0
        %4499 = vmatpush1.bf16.msra.mxu0 0
        %4500 = vmatprep.subr.bf16.mxu0 0
        %4501 = vmatpush1.bf16.msra.mxu0 0
        %4502 = vmatprep.subr.bf16.mxu0 0
        %4503 = vmatpush1.bf16.msra.mxu0 0
        %4504 = vmatprep.subr.bf16.mxu0 0
        %4505 = vmatpush1.bf16.msra.mxu0 0
        %4506 = vmatprep.mubr.bf16.mxu0 0
        %4507 = vmatmul.mubr.bf16.gmra.mrb[0].mxu0 %v4472
        %v4508 = vpop.f32.mrb[0].mxu0
        %v4509 = vadd.f32 0.0, %v4508
        %v4510 = vpop.f32.mrb[0].mxu0
        %v4511 = vpop.f32.mrb[0].mxu0
        %v4512 = vpop.f32.mrb[0].mxu0
        %4513 = vdwg.mxu0
        %4514 = vst.msk [vmem:[%s513] sm:$0xff] %vm541, %v4509
        %s4515 = sand.u32 %s271, 1
        %s4516 = scalar_lea.sflag [#allocation10], %s4515
        %s4517 = sand.u32 %s271, 1
        %s4518 = smul.addr %s4517, 8
        %s4519 = scalar_lea.vmem [#allocation25], %s4518
        // Predicated region
        $region105: #{tpu_custom_call.1} parent=59 // pred_check
          %p4520 = pneg %p281
        $region106: #{tpu_custom_call.1} parent=59 // pred_check_branch
          %4522 = sbr.rel (%p4520) target = $region108
        $region107: #{tpu_custom_call.1} parent=59 // pred_region
          %s4524 = ssub.s32 128, 128
          %4525 = vsyncadd %s4516, %s4524
          %s4526 = smul.addr %s36, 2
          %s4527 = sadd.s32 %s37, %s4526
          %s4528 = smul.addr %s4527, 128
          %s4529 = scalar_lea.hbm %s10, %s4528
          %s4531 = sshll.u32 %s4519, 4
          %s4532 = int_to_ptr.vmem [resolvable:$true] %s4531
          %4534 = dma.vmem_to_hbm [thread:$0]  %s4532, 128, %s4529, %s4516
        $region108: #{tpu_custom_call.1} parent=59 // pred_fallthru
          _
      $region60: #{tpu_custom_call.1} parent=5 // pred_fallthru
        _
      %p4535 = scmp.le.s32.totalorder 2, %s27
      // Predicated region
      $region109: #{tpu_custom_call.1} parent=5 // pred_check
        %p4536 = pneg %p4535
      $region110: #{tpu_custom_call.1} parent=5 // pred_check_branch
        %4538 = sbr.rel (%p4536) target = $region112
      $region111: #{tpu_custom_call.1} parent=5 // pred_region
        %s4539 = ssub.s32 %s27, 2
        // Predicated region
        $region113: #{tpu_custom_call.1} parent=111 // pred_check
          %p4540 = pneg %p287
        $region114: #{tpu_custom_call.1} parent=111 // pred_check_branch
          %4542 = sbr.rel (%p4540) target = $region116
        $region115: #{tpu_custom_call.1} parent=111 // pred_region
          %s4543 = sand.u32 %s272, 1
          %s4544 = scalar_lea.sflag [#allocation10], %s4543
          %s4545 = sand.u32 %s272, 1
          %s4546 = smul.addr %s4545, 8
          %s4547 = scalar_lea.vmem [#allocation25], %s4546
          %4548 = dma.done %s4544, 128
        $region116: #{tpu_custom_call.1} parent=111 // pred_fallthru
          _
      $region112: #{tpu_custom_call.1} parent=5 // pred_fallthru
        _
    $region6: #{tpu_custom_call.1} parent=1 // loop_footer
      %s31 = sadd.s32 1, %s27
    $region7: #{tpu_custom_call.1} parent=1 // loop_footer_branch
      %26 = sbr.rel target = $region3
    $region8: #{tpu_custom_call.1} parent=1 // loop_exit
      _
    %4549 = vsyncpa [#allocation9], 1
    %s4550 = scalar_lea.sflag [#allocation9], 1
    %4551 = vsyncpa %s4550, 1
    %4552 = vsyncpa [#allocation12], 1
    %4553 = vsyncpa [#allocation15], 1
    %4554 = vsyncpa [#allocation18], 1
    %4555 = vsyncpa [#allocation21], 1
    %4556 = vsyncpa [#allocation24], 1
    %4557 = vsyncpa [#allocation10], 1
    %s4558 = scalar_lea.sflag [#allocation10], 1
    %4559 = vsyncpa %s4558, 1

</llo_original>
